<compile_context>
chip_gen: v7x
topology: tpu7x:2x2x1
jax: 0.10.0
libtpu: 0.0.40
codegen_flags: <defaults>
</compile_context>

<pallas_src>
import functools
import math

import jax
import jax.numpy as jnp
from jax.experimental import pallas as pl
from jax.experimental.pallas import tpu as pltpu

LANE = 128


def _round_up(x, m):
    return (x + m - 1) // m * m


def _pick_tile(n_pad):
    """Largest row tile in {1024, 512, 256} that divides n_pad and leaves >= 2 row tiles."""
    for t in (1024, 512, 256):
        if n_pad % t == 0 and n_pad // t >= 2:
            return t
    return min(n_pad, 256)


def _fused_vmem_bytes(n_pad, f_pad, h_pad, c_pad, tm):
    """Conservative VMEM footprint estimate for the fused path (2x for pipelined buffers)."""
    resident = 2 * (n_pad * n_pad * 2 + n_pad * f_pad * 2
                    + f_pad * h_pad * 2 + h_pad * c_pad * 2
                    + h_pad * 4 + c_pad * 4)
    scratch = n_pad * c_pad * 2                 # S2 (bf16)
    transients = 3 * n_pad * h_pad * 4          # s1 / A@s1 / relu intermediates (f32)
    out = 2 * tm * c_pad * 4
    return resident + scratch + transients + out


# ---------------------------------------------------------------------------
# Fast path: fused two-layer kernel, adjacency VMEM-resident (read from HBM once).
# ---------------------------------------------------------------------------
def _fused_gcn_kernel(adj_ref, x_ref, w1_ref, b1_ref, w2_ref, b2_ref, out_ref,
                      s2_ref, *, tm, n_class):
    i = pl.program_id(0)

    @pl.when(i == 0)
    def _():
        # Layer 1 for ALL rows: H = relu(A @ (X @ W1) + b1); then S2 = H @ W2, kept in VMEM.
        s1 = jnp.dot(x_ref[...], w1_ref[...], preferred_element_type=jnp.float32)
        h = jnp.dot(adj_ref[...], s1.astype(jnp.bfloat16),
                    preferred_element_type=jnp.float32) + b1_ref[...]
        h = jnp.maximum(h, 0.0).astype(jnp.bfloat16)
        # TODO(synk): dropout between layers is identity in inference mode.
        s2_ref[...] = jnp.dot(h, w2_ref[...],
                              preferred_element_type=jnp.float32).astype(jnp.bfloat16)

    # Layer 2 for this row tile: log_softmax(A[rows] @ S2 + b2) over the valid class lanes.
    row0 = pl.multiple_of(i * tm, tm)
    z = jnp.dot(adj_ref[pl.ds(row0, tm), :], s2_ref[...],
                preferred_element_type=jnp.float32) + b2_ref[...]
    lane_idx = jax.lax.broadcasted_iota(jnp.int32, z.shape, 1)
    z = jnp.where(lane_idx < n_class, z, -jnp.inf)
    m = jnp.max(z, axis=-1, keepdims=True)
    shifted = z - m
    lse = jnp.log(jnp.sum(jnp.exp(shifted), axis=-1, keepdims=True))
    out_ref[...] = (shifted - lse).astype(out_ref.dtype)


def _fused_gcn(adj_p, x_p, w1_p, b1_p, w2_p, b2_p, *, n_class, tm):
    n_pad, f_pad = x_p.shape
    h_pad = w1_p.shape[1]
    c_pad = w2_p.shape[1]
    grid = (n_pad // tm,)

    flops = (2 * n_pad * f_pad * h_pad + 2 * n_pad * n_pad * h_pad
             + 2 * n_pad * h_pad * c_pad + 2 * n_pad * n_pad * c_pad)
    bytes_accessed = (adj_p.size * 2 + x_p.size * 2 + w1_p.size * 2 + w2_p.size * 2
                      + b1_p.size * 4 + b2_p.size * 4 + n_pad * c_pad * 4)

    kernel = functools.partial(_fused_gcn_kernel, tm=tm, n_class=n_class)
    return pl.pallas_call(
        kernel,
        out_shape=jax.ShapeDtypeStruct((n_pad, c_pad), jnp.float32),
        grid_spec=pltpu.PrefetchScalarGridSpec(
            num_scalar_prefetch=0,
            grid=grid,
            in_specs=[
                pl.BlockSpec((n_pad, n_pad), lambda i: (0, 0)),   # adj: resident, 1 HBM read
                pl.BlockSpec((n_pad, f_pad), lambda i: (0, 0)),   # X: resident
                pl.BlockSpec((f_pad, h_pad), lambda i: (0, 0)),   # W1 (resident)
                pl.BlockSpec((1, h_pad), lambda i: (0, 0)),       # b1
                pl.BlockSpec((h_pad, c_pad), lambda i: (0, 0)),   # W2
                pl.BlockSpec((1, c_pad), lambda i: (0, 0)),       # b2
            ],
            out_specs=pl.BlockSpec((tm, c_pad), lambda i: (i, 0)),
            scratch_shapes=[pltpu.VMEM((n_pad, c_pad), jnp.bfloat16)],  # S2
        ),
        compiler_params=pltpu.CompilerParams(
            dimension_semantics=("arbitrary",),      # step 0 fills the S2 scratch sequentially
            vmem_limit_bytes=48 * 1024 * 1024,
        ),
        cost_estimate=pl.CostEstimate(
            flops=flops, transcendentals=n_pad * c_pad + n_pad,
            bytes_accessed=bytes_accessed),
    )(adj_p, x_p, w1_p, b1_p, w2_p, b2_p)


# ---------------------------------------------------------------------------
# Fallback path for large graphs: S = X @ W (row-tiled) then tiled A @ S propagate.
# ---------------------------------------------------------------------------
def _matmul_kernel(x_ref, w_ref, o_ref):
    o_ref[...] = jnp.dot(x_ref[...], w_ref[...],
                         preferred_element_type=jnp.float32).astype(o_ref.dtype)


def _matmul(x_p, w_p, *, tm):
    """S = X @ W, row-tiled, weights resident (constant index_map)."""
    n_pad, d_in = x_p.shape
    d_out = w_p.shape[1]
    return pl.pallas_call(
        _matmul_kernel,
        out_shape=jax.ShapeDtypeStruct((n_pad, d_out), jnp.bfloat16),
        grid_spec=pltpu.PrefetchScalarGridSpec(
            num_scalar_prefetch=0,
            grid=(n_pad // tm,),
            in_specs=[pl.BlockSpec((tm, d_in), lambda i: (i, 0)),
                      pl.BlockSpec((d_in, d_out), lambda i: (0, 0))],
            out_specs=pl.BlockSpec((tm, d_out), lambda i: (i, 0)),
        ),
        compiler_params=pltpu.CompilerParams(
            dimension_semantics=("parallel",),
            vmem_limit_bytes=48 * 1024 * 1024,
        ),
        cost_estimate=pl.CostEstimate(
            flops=2 * n_pad * d_in * d_out, transcendentals=0,
            bytes_accessed=x_p.size * 2 + w_p.size * 2 + n_pad * d_out * 2),
    )(x_p, w_p)


def _propagate_kernel(adj_ref, s_ref, b_ref, out_ref, acc_ref, *, activation, n_valid):
    """acc += adj_tile @ S_slab; at the last k-step add bias and apply activation."""
    k = pl.program_id(1)

    @pl.when(k == 0)
    def _():
        acc_ref[...] = jnp.zeros_like(acc_ref)

    acc_ref[...] += jnp.dot(adj_ref[...], s_ref[...], preferred_element_type=jnp.float32)

    @pl.when(k == pl.num_programs(1) - 1)
    def _():
        z = acc_ref[...] + b_ref[...]
        if activation == "relu":
            out_ref[...] = jnp.maximum(z, 0.0).astype(out_ref.dtype)
        else:  # masked, numerically stable log_softmax over the first n_valid lanes
            lane_idx = jax.lax.broadcasted_iota(jnp.int32, z.shape, 1)
            z = jnp.where(lane_idx < n_valid, z, -jnp.inf)
            m = jnp.max(z, axis=-1, keepdims=True)
            shifted = z - m
            lse = jnp.log(jnp.sum(jnp.exp(shifted), axis=-1, keepdims=True))
            out_ref[...] = (shifted - lse).astype(out_ref.dtype)


def _propagate(adj_p, s_p, b_p, *, out_dtype, activation, n_valid, tm, tk):
    n_pad = adj_p.shape[0]
    d_out = s_p.shape[1]
    grid = (n_pad // tm, n_pad // tk)

    flops = 2 * n_pad * n_pad * d_out
    transcendentals = n_pad * d_out + n_pad if activation == "log_softmax" else 0
    bytes_accessed = (adj_p.size * 2 + grid[0] * s_p.size * 2 + b_p.size * 4
                      + n_pad * d_out * jnp.dtype(out_dtype).itemsize)

    kernel = functools.partial(_propagate_kernel, activation=activation, n_valid=n_valid)
    return pl.pallas_call(
        kernel,
        out_shape=jax.ShapeDtypeStruct((n_pad, d_out), out_dtype),
        grid_spec=pltpu.PrefetchScalarGridSpec(
            num_scalar_prefetch=0,
            grid=grid,
            in_specs=[
                pl.BlockSpec((tm, tk), lambda i, k: (i, k)),       # adj tile (streamed)
                pl.BlockSpec((tk, d_out), lambda i, k: (k, 0)),    # S slab for this k
                pl.BlockSpec((1, d_out), lambda i, k: (0, 0)),     # bias (resident)
            ],
            out_specs=pl.BlockSpec((tm, d_out), lambda i, k: (i, 0)),
            scratch_shapes=[pltpu.VMEM((tm, d_out), jnp.float32)],
        ),
        compiler_params=pltpu.CompilerParams(
            dimension_semantics=("parallel", "arbitrary"),
            vmem_limit_bytes=48 * 1024 * 1024,
        ),
        cost_estimate=pl.CostEstimate(
            flops=flops, transcendentals=transcendentals, bytes_accessed=bytes_accessed),
    )(adj_p, s_p, b_p)


# ---------------------------------------------------------------------------
# Forward wrapper
# ---------------------------------------------------------------------------
@functools.partial(jax.jit, static_argnames=("force_path",))
def gcn_forward(x, adj, w1, b1, w2, b2, force_path=None):
    n, n_feat = x.shape
    n_hid = w1.shape[1]
    n_class = w2.shape[1]

    n_pad = _round_up(n, 256)
    f_pad = _round_up(n_feat, LANE)
    h_pad = _round_up(n_hid, LANE)
    c_pad = _round_up(n_class, LANE)
    tile = _pick_tile(n_pad)

    # Zero-pad to lane-dense / tile-divisible shapes; padded rows/cols are inert
    # (padded adjacency columns are zero, so padded H rows never reach valid outputs).
    adj_p = jnp.zeros((n_pad, n_pad), jnp.bfloat16).at[:n, :n].set(adj.astype(jnp.bfloat16))
    x_p = jnp.zeros((n_pad, f_pad), jnp.bfloat16).at[:n, :n_feat].set(x.astype(jnp.bfloat16))
    w1_p = jnp.zeros((f_pad, h_pad), jnp.bfloat16).at[:n_feat, :n_hid].set(w1.astype(jnp.bfloat16))
    b1_p = jnp.zeros((1, h_pad), jnp.float32).at[0, :n_hid].set(b1.astype(jnp.float32))
    w2_p = jnp.zeros((h_pad, c_pad), jnp.bfloat16).at[:n_hid, :n_class].set(w2.astype(jnp.bfloat16))
    b2_p = jnp.zeros((1, c_pad), jnp.float32).at[0, :n_class].set(b2.astype(jnp.float32))

    use_fused = (force_path != "tiled") and (
        force_path == "fused"
        or _fused_vmem_bytes(n_pad, f_pad, h_pad, c_pad, tile) <= 28 * 1024 * 1024)

    if use_fused:
        # adj read from HBM exactly once for both layers.
        out_p = _fused_gcn(adj_p, x_p, w1_p, b1_p, w2_p, b2_p, n_class=n_class, tm=tile)
    else:
        # Layer 1: H = relu(A @ (X @ W1) + b1)
        s1 = _matmul(x_p, w1_p, tm=tile)
        h = _propagate(adj_p, s1, b1_p, out_dtype=jnp.bfloat16,
                       activation="relu", n_valid=n_hid, tm=tile, tk=tile)
        # TODO(synk): dropout skipped (identity in inference mode).
        # Layer 2: log_softmax(A @ (H @ W2) + b2)
        s2 = _matmul(h, w2_p, tm=tile)
        out_p = _propagate(adj_p, s2, b2_p, out_dtype=jnp.float32,
                           activation="log_softmax", n_valid=n_class, tm=tile, tk=tile)
    return out_p[:n, :n_class]


def init_gc_params(key, in_features, out_features):
    """Matches GraphConvolution.reset_parameters: U(-stdv, stdv), stdv = 1/sqrt(out)."""
    stdv = 1.0 / math.sqrt(out_features)
    k_w, k_b = jax.random.split(key)
    w = jax.random.uniform(k_w, (in_features, out_features), jnp.float32,
                           minval=-stdv, maxval=stdv)
    b = jax.random.uniform(k_b, (out_features,), jnp.float32, minval=-stdv, maxval=stdv)
    return w, b


if __name__ == "__main__":
    # Small-but-real shapes: 512 nodes, 64 input features, 32 hidden, 8 classes.
    n_nodes, n_feat, n_hid, n_class = 512, 64, 32, 8

    key = jax.random.PRNGKey(0)
    k_x, k_adj, k_gc1, k_gc2 = jax.random.split(key, 4)

    x = jax.random.normal(k_x, (n_nodes, n_feat), jnp.float32)

    # Symmetric-normalized dense adjacency N(A) = D^-1/2 (A + I) D^-1/2.
    a_raw = (jax.random.uniform(k_adj, (n_nodes, n_nodes)) > 0.95).astype(jnp.float32)
    a_sym = jnp.clip(a_raw + a_raw.T, 0.0, 1.0) + jnp.eye(n_nodes, dtype=jnp.float32)
    deg_inv_sqrt = 1.0 / jnp.sqrt(jnp.sum(a_sym, axis=1))
    adj = a_sym * deg_inv_sqrt[:, None] * deg_inv_sqrt[None, :]

    w1, b1 = init_gc_params(k_gc1, n_feat, n_hid)
    w2, b2 = init_gc_params(k_gc2, n_hid, n_class)

    # References.
    adj_b = adj.astype(jnp.bfloat16)
    s1 = jnp.dot(x.astype(jnp.bfloat16), w1.astype(jnp.bfloat16),
                 preferred_element_type=jnp.float32)
    h_ref = jnp.maximum(
        jnp.dot(adj_b, s1.astype(jnp.bfloat16), preferred_element_type=jnp.float32)
        + b1[None, :], 0.0).astype(jnp.bfloat16)
    s2 = jnp.dot(h_ref, w2.astype(jnp.bfloat16), preferred_element_type=jnp.float32)
    z_ref = jnp.dot(adj_b, s2.astype(jnp.bfloat16),
                    preferred_element_type=jnp.float32) + b2[None, :]
    ref_mixed = jax.nn.log_softmax(z_ref, axis=1)           # same mixed-precision scheme
    h32 = jnp.maximum(adj @ (x @ w1) + b1[None, :], 0.0)
    ref_f32 = jax.nn.log_softmax(adj @ (h32 @ w2) + b2[None, :], axis=1)  # module semantics

    # Fused fast path (default for this size): adj read from HBM once.
    out_fused = gcn_forward(x, adj, w1, b1, w2, b2)
    jax.block_until_ready(out_fused)
    assert jnp.allclose(out_fused, ref_mixed, atol=5e-3, rtol=5e-3), "fused: mixed-precision mismatch"
    assert jnp.allclose(out_fused, ref_f32, atol=5e-2, rtol=5e-2), "fused: f32 reference mismatch"

    # Tiled fallback path (used for large graphs) — validated on the same inputs.
    out_tiled = gcn_forward(x, adj, w1, b1, w2, b2, force_path="tiled")
    jax.block_until_ready(out_tiled)
    assert jnp.allclose(out_tiled, ref_mixed, atol=5e-3, rtol=5e-3), "tiled: mixed-precision mismatch"
    assert jnp.allclose(out_tiled, ref_f32, atol=5e-2, rtol=5e-2), "tiled: f32 reference mismatch"

    print("KERNEL_OK")
</pallas_src>

<mosaic_0001>
module attributes {stable_mosaic.version = 11 : i64} {
  func.func @_fused_gcn_kernel(%arg0: i32, %arg1: memref<512x512xbf16, #tpu.memory_space<vmem>>, %arg2: memref<512x128xbf16, #tpu.memory_space<vmem>>, %arg3: memref<128x128xbf16, #tpu.memory_space<vmem>>, %arg4: memref<1x128xf32, #tpu.memory_space<vmem>>, %arg5: memref<128x128xbf16, #tpu.memory_space<vmem>>, %arg6: memref<1x128xf32, #tpu.memory_space<vmem>>, %arg7: memref<256x128xf32, #tpu.memory_space<vmem>>, %arg8: memref<512x128xbf16, #tpu.memory_space<vmem>>) attributes {dimension_semantics = [#tpu.dimension_semantics<arbitrary>], iteration_bounds = array<i64: 2>, scalar_prefetch = 0 : i64, scratch_operands = 1 : i64, tpu.core_type = #tpu.core_type<tc>, window_params = [{pipeline_mode = #tpu.pipeline_mode<synchronous>, transform_indices = @transform_0, window_bounds = array<i64: 512, 512>}, {pipeline_mode = #tpu.pipeline_mode<synchronous>, transform_indices = @transform_1, window_bounds = array<i64: 512, 128>}, {pipeline_mode = #tpu.pipeline_mode<synchronous>, transform_indices = @transform_2, window_bounds = array<i64: 128, 128>}, {pipeline_mode = #tpu.pipeline_mode<synchronous>, transform_indices = @transform_3, window_bounds = array<i64: 1, 128>}, {pipeline_mode = #tpu.pipeline_mode<synchronous>, transform_indices = @transform_4, window_bounds = array<i64: 128, 128>}, {pipeline_mode = #tpu.pipeline_mode<synchronous>, transform_indices = @transform_5, window_bounds = array<i64: 1, 128>}, {transform_indices = @transform_6, window_bounds = array<i64: 256, 128>}]} {
    %c0_i32 = arith.constant 0 : i32
    %0 = arith.cmpi eq, %arg0, %c0_i32 : i32
    %1 = arith.extui %0 : i1 to i32
    %c0_i32_0 = arith.constant 0 : i32
    %2 = arith.cmpi ne, %1, %c0_i32_0 : i32
    scf.if %2 {
      %c0_10 = arith.constant 0 : index
      %c0_11 = arith.constant 0 : index
      %28 = vector.load %arg2[%c0_10, %c0_11] : memref<512x128xbf16, #tpu.memory_space<vmem>>, vector<512x128xbf16>
      %c0_12 = arith.constant 0 : index
      %c0_13 = arith.constant 0 : index
      %29 = vector.load %arg3[%c0_12, %c0_13] : memref<128x128xbf16, #tpu.memory_space<vmem>>, vector<128x128xbf16>
      %cst_14 = arith.constant dense<0.000000e+00> : vector<512x128xf32>
      %30 = tpu.matmul %28, %29, %cst_14 {dimension_numbers = #tpu.dot_dimension_numbers<[1], [0], [0], [1], [0, 0, 1, 1], [], []>} : vector<512x128xbf16>, vector<128x128xbf16>, vector<512x128xf32> -> vector<512x128xf32>
      %c0_15 = arith.constant 0 : index
      %c0_16 = arith.constant 0 : index
      %31 = vector.load %arg1[%c0_15, %c0_16] : memref<512x512xbf16, #tpu.memory_space<vmem>>, vector<512x512xbf16>
      %32 = arith.truncf %30 : vector<512x128xf32> to vector<512x128xbf16>
      %cst_17 = arith.constant dense<0.000000e+00> : vector<512x128xf32>
      %33 = tpu.matmul %31, %32, %cst_17 {dimension_numbers = #tpu.dot_dimension_numbers<[1], [0], [0], [1], [0, 0, 1, 1], [], []>} : vector<512x512xbf16>, vector<512x128xbf16>, vector<512x128xf32> -> vector<512x128xf32>
      %c0_18 = arith.constant 0 : index
      %c0_19 = arith.constant 0 : index
      %34 = vector.load %arg4[%c0_18, %c0_19] : memref<1x128xf32, #tpu.memory_space<vmem>>, vector<1x128xf32>
      %35 = vector.broadcast %34 : vector<1x128xf32> to vector<512x128xf32>
      %36 = arith.addf %33, %35 : vector<512x128xf32>
      %cst_20 = arith.constant 0.000000e+00 : f32
      %37 = vector.broadcast %cst_20 : f32 to vector<512x128xf32>
      %38 = arith.maximumf %36, %37 : vector<512x128xf32>
      %39 = arith.truncf %38 : vector<512x128xf32> to vector<512x128xbf16>
      %c0_21 = arith.constant 0 : index
      %c0_22 = arith.constant 0 : index
      %40 = vector.load %arg5[%c0_21, %c0_22] : memref<128x128xbf16, #tpu.memory_space<vmem>>, vector<128x128xbf16>
      %cst_23 = arith.constant dense<0.000000e+00> : vector<512x128xf32>
      %41 = tpu.matmul %39, %40, %cst_23 {dimension_numbers = #tpu.dot_dimension_numbers<[1], [0], [0], [1], [0, 0, 1, 1], [], []>} : vector<512x128xbf16>, vector<128x128xbf16>, vector<512x128xf32> -> vector<512x128xf32>
      %42 = arith.truncf %41 : vector<512x128xf32> to vector<512x128xbf16>
      %c0_24 = arith.constant 0 : index
      %c0_25 = arith.constant 0 : index
      %43 = vector.load %arg8[%c0_24, %c0_25] : memref<512x128xbf16, #tpu.memory_space<vmem>>, vector<512x128xbf16>
      tpu.vector_store %arg8[%c0_24, %c0_25], %42 {strides = array<i32>} : memref<512x128xbf16, #tpu.memory_space<vmem>>, vector<512x128xbf16>,
    } else {
    }
    %c256_i32 = arith.constant 256 : i32
    %3 = arith.muli %arg0, %c256_i32 : i32
    %4 = tpu.assume_multiple %3, 256 : i32
    %5 = arith.index_cast %4 : i32 to index
    %c0 = arith.constant 0 : index
    %6 = vector.load %arg1[%5, %c0] : memref<512x512xbf16, #tpu.memory_space<vmem>>, vector<256x512xbf16>
    %c0_1 = arith.constant 0 : index
    %c0_2 = arith.constant 0 : index
    %7 = vector.load %arg8[%c0_1, %c0_2] : memref<512x128xbf16, #tpu.memory_space<vmem>>, vector<512x128xbf16>
    %cst = arith.constant dense<0.000000e+00> : vector<256x128xf32>
    %8 = tpu.matmul %6, %7, %cst {dimension_numbers = #tpu.dot_dimension_numbers<[1], [0], [0], [1], [0, 0, 1, 1], [], []>} : vector<256x512xbf16>, vector<512x128xbf16>, vector<256x128xf32> -> vector<256x128xf32>
    %c0_3 = arith.constant 0 : index
    %c0_4 = arith.constant 0 : index
    %9 = vector.load %arg6[%c0_3, %c0_4] : memref<1x128xf32, #tpu.memory_space<vmem>>, vector<1x128xf32>
    %10 = vector.broadcast %9 : vector<1x128xf32> to vector<256x128xf32>
    %11 = arith.addf %8, %10 : vector<256x128xf32>
    %12 = tpu.iota {dimensions = array<i32: 1>} : vector<256x128xi32>
    %c8_i32 = arith.constant 8 : i32
    %13 = vector.broadcast %c8_i32 : i32 to vector<256x128xi32>
    %14 = arith.cmpi slt, %12, %13 : vector<256x128xi32>
    %cst_5 = arith.constant 0xFF800000 : f32
    %15 = vector.broadcast %cst_5 : f32 to vector<256x128xf32>
    %16 = arith.select %14, %11, %15 : vector<256x128xi1>, vector<256x128xf32>
    %cst_6 = arith.constant dense<0xFF800000> : vector<256xf32>
    %17 = vector.multi_reduction <maximumf>, %16, %cst_6 [1] : vector<256x128xf32> to vector<256xf32>
    %18 = vector.shape_cast %17 : vector<256xf32> to vector<256x1xf32>
    %19 = vector.broadcast %18 : vector<256x1xf32> to vector<256x128xf32>
    %20 = arith.subf %16, %19 : vector<256x128xf32>
    %21 = math.exp %20 : vector<256x128xf32>
    %cst_7 = arith.constant dense<0.000000e+00> : vector<256xf32>
    %22 = vector.multi_reduction <add>, %21, %cst_7 [1] : vector<256x128xf32> to vector<256xf32>
    %23 = vector.shape_cast %22 : vector<256xf32> to vector<256x1xf32>
    %24 = math.log %23 : vector<256x1xf32>
    %25 = vector.broadcast %24 : vector<256x1xf32> to vector<256x128xf32>
    %26 = arith.subf %20, %25 : vector<256x128xf32>
    %c0_8 = arith.constant 0 : index
    %c0_9 = arith.constant 0 : index
    %27 = vector.load %arg7[%c0_8, %c0_9] : memref<256x128xf32, #tpu.memory_space<vmem>>, vector<256x128xf32>
    tpu.vector_store %arg7[%c0_8, %c0_9], %26 {strides = array<i32>} : memref<256x128xf32, #tpu.memory_space<vmem>>, vector<256x128xf32>,
    return
  }
  func.func @transform_0(%arg0: i32) -> (i32, i32) {
    %c0_i32 = arith.constant 0 : i32
    %c0_i32_0 = arith.constant 0 : i32
    %c0_i32_1 = arith.constant 0 : i32
    return %c0_i32, %c0_i32_0 : i32, i32
  }
  func.func @transform_1(%arg0: i32) -> (i32, i32) {
    %c0_i32 = arith.constant 0 : i32
    %c0_i32_0 = arith.constant 0 : i32
    %c0_i32_1 = arith.constant 0 : i32
    return %c0_i32, %c0_i32_0 : i32, i32
  }
  func.func @transform_2(%arg0: i32) -> (i32, i32) {
    %c0_i32 = arith.constant 0 : i32
    %c0_i32_0 = arith.constant 0 : i32
    %c0_i32_1 = arith.constant 0 : i32
    return %c0_i32, %c0_i32_0 : i32, i32
  }
  func.func @transform_3(%arg0: i32) -> (i32, i32) {
    %c0_i32 = arith.constant 0 : i32
    %c0_i32_0 = arith.constant 0 : i32
    %c0_i32_1 = arith.constant 0 : i32
    return %c0_i32, %c0_i32_0 : i32, i32
  }
  func.func @transform_4(%arg0: i32) -> (i32, i32) {
    %c0_i32 = arith.constant 0 : i32
    %c0_i32_0 = arith.constant 0 : i32
    %c0_i32_1 = arith.constant 0 : i32
    return %c0_i32, %c0_i32_0 : i32, i32
  }
  func.func @transform_5(%arg0: i32) -> (i32, i32) {
    %c0_i32 = arith.constant 0 : i32
    %c0_i32_0 = arith.constant 0 : i32
    %c0_i32_1 = arith.constant 0 : i32
    return %c0_i32, %c0_i32_0 : i32, i32
  }
  func.func @transform_6(%arg0: i32) -> (i32, i32) {
    %c0_i32 = arith.constant 0 : i32
    %c0_i32_0 = arith.constant 0 : i32
    return %arg0, %c0_i32 : i32, i32
  }
}

</mosaic_0001>

<llo_original>
// kernel: gcn_forward.1
$region0: #{gcn_forward.1}
  #allocation0 [shape = 'u32[]', space=smem, size = 0x4, offset = 0x4, fixed_abs, tag = 'smem constant byte address 0x4 - core index']
  #allocation1 [shape = 'u32[144,128]{1,0:T(1,128)}', space=vmem, size = 0x12000, scoped, tag = 'internal scratch']
  #allocation2 [shape = 'bf16[512,128]{1,0:T(16,128)(2,1)}', space=vmem, size = 0x20000, scoped, tag = 'scratch operand']
  %s0 = inlined_call_operand.vmem [shape: bf16[512,512], index: 0, kind: input, shape index: {}]
  %s1 = inlined_call_operand.vmem [shape: bf16[512,128], index: 1, kind: input, shape index: {}]
  %s2 = inlined_call_operand.vmem [shape: bf16[128,128], index: 2, kind: input, shape index: {}]
  %s3 = inlined_call_operand.vmem [shape: f32[1,128], index: 3, kind: input, shape index: {}]
  %s4 = inlined_call_operand.vmem [shape: bf16[128,128], index: 4, kind: input, shape index: {}]
  %s5 = inlined_call_operand.vmem [shape: f32[1,128], index: 5, kind: input, shape index: {}]
  %s6 = inlined_call_operand.vmem [shape: f32[512,128], index: 6, kind: output, shape index: {}]
  %s7 = sld [smem:[#allocation0]]
  $region61: #{gcn_forward.1} parent=0
    _
  %s9 = ssub.s32 1, %s7
  %s10 = scalar_select 0, %s9, %s7
  loop: start=0, step=1, limit=4
  $region2: #{gcn_forward.1} parent=0 // loop_pre_header
    _
  $region3: #{gcn_forward.1} parent=0 // loop_header
    %s12 = sphi 0, %s16
    %p13 = scmp.ge.s32.totalorder %s12, 4
    %s20 = sphi 0, %s20
    %s22 = sphi 0, %s20
    %s23 = sphi 0, %s22
    %s37 = sphi 0, %s23
    %s41 = sphi 0, %s41
    %s43 = sphi 0, %s41
    %s44 = sphi 0, %s43
    %s58 = sphi 0, %s44
    %s62 = sphi 0, %s62
    %s64 = sphi 0, %s62
    %s65 = sphi 0, %s64
    %s79 = sphi 0, %s65
    %s83 = sphi 0, %s83
    %s85 = sphi 0, %s83
    %s86 = sphi 0, %s85
    %s100 = sphi 0, %s86
    %s104 = sphi 0, %s104
    %s106 = sphi 0, %s104
    %s107 = sphi 0, %s106
    %s121 = sphi 0, %s107
    %s125 = sphi 0, %s125
    %s127 = sphi 0, %s125
    %s128 = sphi 0, %s127
    %s142 = sphi 0, %s128
    %s148 = sphi 0, %s150
    %s151 = sphi 0, %s148
    %s152 = sphi 0, %s151
    %s168 = sphi 0, %s152
  $region4: #{gcn_forward.1} parent=0 // loop_header_branch
    %15 = sbr.rel (%p13) target = $region8
  $region5: #{gcn_forward.1} parent=0 // loop_body
    %s17 = ssub.s32 %s12, 1
    %s18 = ssub.s32 %s12, 2
    %s19 = sadd.s32 %s12, 1
    %s21 = sadd.s32 %s20, 1
    %p24 = scmp.eq.s32.totalorder %s12, 1
    %p25 = scmp.ne.s32.totalorder %s20, %s22
    %p26 = scmp.eq.s32.totalorder %s12, 0
    %p27 = por %p25, %p26
    %p28 = scmp.ne.s32.totalorder %s20, %s22
    %p29 = scmp.eq.s32.totalorder %s17, 1
    %p30 = por %p28, %p29
    %p31 = scmp.ne.s32.totalorder %s22, %s23
    %p32 = scmp.eq.s32.totalorder %s17, 0
    %p33 = por %p31, %p32
    %p34 = scmp.ne.s32.totalorder %s22, %s23
    %p35 = scmp.eq.s32.totalorder %s18, 1
    %p36 = por %p34, %p35
    %p38 = scmp.ne.s32.totalorder %s23, %s37
    %p39 = scmp.eq.s32.totalorder %s18, 0
    %p40 = por %p38, %p39
    %s42 = sadd.s32 %s41, 1
    %p45 = scmp.eq.s32.totalorder %s12, 1
    %p46 = scmp.ne.s32.totalorder %s41, %s43
    %p47 = scmp.eq.s32.totalorder %s12, 0
    %p48 = por %p46, %p47
    %p49 = scmp.ne.s32.totalorder %s41, %s43
    %p50 = scmp.eq.s32.totalorder %s17, 1
    %p51 = por %p49, %p50
    %p52 = scmp.ne.s32.totalorder %s43, %s44
    %p53 = scmp.eq.s32.totalorder %s17, 0
    %p54 = por %p52, %p53
    %p55 = scmp.ne.s32.totalorder %s43, %s44
    %p56 = scmp.eq.s32.totalorder %s18, 1
    %p57 = por %p55, %p56
    %p59 = scmp.ne.s32.totalorder %s44, %s58
    %p60 = scmp.eq.s32.totalorder %s18, 0
    %p61 = por %p59, %p60
    %s63 = sadd.s32 %s62, 1
    %p66 = scmp.eq.s32.totalorder %s12, 1
    %p67 = scmp.ne.s32.totalorder %s62, %s64
    %p68 = scmp.eq.s32.totalorder %s12, 0
    %p69 = por %p67, %p68
    %p70 = scmp.ne.s32.totalorder %s62, %s64
    %p71 = scmp.eq.s32.totalorder %s17, 1
    %p72 = por %p70, %p71
    %p73 = scmp.ne.s32.totalorder %s64, %s65
    %p74 = scmp.eq.s32.totalorder %s17, 0
    %p75 = por %p73, %p74
    %p76 = scmp.ne.s32.totalorder %s64, %s65
    %p77 = scmp.eq.s32.totalorder %s18, 1
    %p78 = por %p76, %p77
    %p80 = scmp.ne.s32.totalorder %s65, %s79
    %p81 = scmp.eq.s32.totalorder %s18, 0
    %p82 = por %p80, %p81
    %s84 = sadd.s32 %s83, 1
    %p87 = scmp.eq.s32.totalorder %s12, 1
    %p88 = scmp.ne.s32.totalorder %s83, %s85
    %p89 = scmp.eq.s32.totalorder %s12, 0
    %p90 = por %p88, %p89
    %p91 = scmp.ne.s32.totalorder %s83, %s85
    %p92 = scmp.eq.s32.totalorder %s17, 1
    %p93 = por %p91, %p92
    %p94 = scmp.ne.s32.totalorder %s85, %s86
    %p95 = scmp.eq.s32.totalorder %s17, 0
    %p96 = por %p94, %p95
    %p97 = scmp.ne.s32.totalorder %s85, %s86
    %p98 = scmp.eq.s32.totalorder %s18, 1
    %p99 = por %p97, %p98
    %p101 = scmp.ne.s32.totalorder %s86, %s100
    %p102 = scmp.eq.s32.totalorder %s18, 0
    %p103 = por %p101, %p102
    %s105 = sadd.s32 %s104, 1
    %p108 = scmp.eq.s32.totalorder %s12, 1
    %p109 = scmp.ne.s32.totalorder %s104, %s106
    %p110 = scmp.eq.s32.totalorder %s12, 0
    %p111 = por %p109, %p110
    %p112 = scmp.ne.s32.totalorder %s104, %s106
    %p113 = scmp.eq.s32.totalorder %s17, 1
    %p114 = por %p112, %p113
    %p115 = scmp.ne.s32.totalorder %s106, %s107
    %p116 = scmp.eq.s32.totalorder %s17, 0
    %p117 = por %p115, %p116
    %p118 = scmp.ne.s32.totalorder %s106, %s107
    %p119 = scmp.eq.s32.totalorder %s18, 1
    %p120 = por %p118, %p119
    %p122 = scmp.ne.s32.totalorder %s107, %s121
    %p123 = scmp.eq.s32.totalorder %s18, 0
    %p124 = por %p122, %p123
    %s126 = sadd.s32 %s125, 1
    %p129 = scmp.eq.s32.totalorder %s12, 1
    %p130 = scmp.ne.s32.totalorder %s125, %s127
    %p131 = scmp.eq.s32.totalorder %s12, 0
    %p132 = por %p130, %p131
    %p133 = scmp.ne.s32.totalorder %s125, %s127
    %p134 = scmp.eq.s32.totalorder %s17, 1
    %p135 = por %p133, %p134
    %p136 = scmp.ne.s32.totalorder %s127, %s128
    %p137 = scmp.eq.s32.totalorder %s17, 0
    %p138 = por %p136, %p137
    %p139 = scmp.ne.s32.totalorder %s127, %s128
    %p140 = scmp.eq.s32.totalorder %s18, 1
    %p141 = por %p139, %p140
    %p143 = scmp.ne.s32.totalorder %s128, %s142
    %p144 = scmp.eq.s32.totalorder %s18, 0
    %p145 = por %p143, %p144
    %s146 = ssub.s32 %s12, %s19
    %p147 = scmp.eq.s32.totalorder %s146, 0
    %s149 = sadd.s32 %s148, 1
    %s150 = scalar_select %p147, %s148, %s149
    %p153 = pneg %p147
    %p154 = scmp.eq.s32.totalorder %s12, 1
    %p155 = por %p153, %p154
    %p156 = scmp.ne.s32.totalorder %s148, %s151
    %p157 = scmp.eq.s32.totalorder %s12, 0
    %p158 = por %p156, %p157
    %p159 = scmp.ne.s32.totalorder %s148, %s151
    %p160 = scmp.eq.s32.totalorder %s17, 1
    %p161 = por %p159, %p160
    %p162 = scmp.ne.s32.totalorder %s151, %s152
    %p163 = scmp.eq.s32.totalorder %s17, 0
    %p164 = por %p162, %p163
    %p165 = scmp.ne.s32.totalorder %s151, %s152
    %p166 = scmp.eq.s32.totalorder %s18, 1
    %p167 = por %p165, %p166
    %p169 = scmp.ne.s32.totalorder %s152, %s168
    %p170 = scmp.eq.s32.totalorder %s18, 0
    %p171 = por %p169, %p170
    %p172 = scmp.le.s32.totalorder 1, %s12
    %p173 = scmp.lt.s32.totalorder %s12, 3
    %p174 = pnand %p172, %p173
    %p175 = pneg %p174
    // Predicated region
    $region9: #{gcn_forward.1} parent=5 // pred_check
      _
    $region10: #{gcn_forward.1} parent=5 // pred_check_branch
      %177 = sbr.rel (%p174) target = $region12
    $region11: #{gcn_forward.1} parent=5 // pred_region
      %s178 = ssub.s32 %s12, 1
      // Predicated region
      $region13: #{gcn_forward.1} parent=11 // pred_check
        %p179 = pneg %p33
      $region14: #{gcn_forward.1} parent=11 // pred_check_branch
        %181 = sbr.rel (%p179) target = $region16
      $region15: #{gcn_forward.1} parent=11 // pred_region
        _
      $region16: #{gcn_forward.1} parent=11 // pred_fallthru
        _
      // Predicated region
      $region17: #{gcn_forward.1} parent=11 // pred_check
        %p182 = pneg %p54
      $region18: #{gcn_forward.1} parent=11 // pred_check_branch
        %184 = sbr.rel (%p182) target = $region20
      $region19: #{gcn_forward.1} parent=11 // pred_region
        _
      $region20: #{gcn_forward.1} parent=11 // pred_fallthru
        _
      // Predicated region
      $region21: #{gcn_forward.1} parent=11 // pred_check
        %p185 = pneg %p75
      $region22: #{gcn_forward.1} parent=11 // pred_check_branch
        %187 = sbr.rel (%p185) target = $region24
      $region23: #{gcn_forward.1} parent=11 // pred_region
        _
      $region24: #{gcn_forward.1} parent=11 // pred_fallthru
        _
      // Predicated region
      $region25: #{gcn_forward.1} parent=11 // pred_check
        %p188 = pneg %p96
      $region26: #{gcn_forward.1} parent=11 // pred_check_branch
        %190 = sbr.rel (%p188) target = $region28
      $region27: #{gcn_forward.1} parent=11 // pred_region
        _
      $region28: #{gcn_forward.1} parent=11 // pred_fallthru
        _
      // Predicated region
      $region29: #{gcn_forward.1} parent=11 // pred_check
        %p191 = pneg %p117
      $region30: #{gcn_forward.1} parent=11 // pred_check_branch
        %193 = sbr.rel (%p191) target = $region32
      $region31: #{gcn_forward.1} parent=11 // pred_region
        _
      $region32: #{gcn_forward.1} parent=11 // pred_fallthru
        _
      // Predicated region
      $region33: #{gcn_forward.1} parent=11 // pred_check
        %p194 = pneg %p138
      $region34: #{gcn_forward.1} parent=11 // pred_check_branch
        %196 = sbr.rel (%p194) target = $region36
      $region35: #{gcn_forward.1} parent=11 // pred_region
        _
      $region36: #{gcn_forward.1} parent=11 // pred_fallthru
        _
    $region12: #{gcn_forward.1} parent=5 // pred_fallthru
      _
    %p197 = scmp.lt.s32.totalorder %s12, 2
    // Predicated region
    $region37: #{gcn_forward.1} parent=5 // pred_check
      %p198 = pneg %p197
    $region38: #{gcn_forward.1} parent=5 // pred_check_branch
      %200 = sbr.rel (%p198) target = $region40
    $region39: #{gcn_forward.1} parent=5 // pred_region
      _
    $region40: #{gcn_forward.1} parent=5 // pred_fallthru
      _
    %p201 = scmp.le.s32.totalorder 1, %s12
    %p202 = scmp.lt.s32.totalorder %s12, 3
    %p203 = pnand %p201, %p202
    %p204 = pneg %p203
    // Predicated region
    $region41: #{gcn_forward.1} parent=5 // pred_check
      _
    $region42: #{gcn_forward.1} parent=5 // pred_check_branch
      %206 = sbr.rel (%p203) target = $region44
    $region43: #{gcn_forward.1} parent=5 // pred_region
      %s207 = ssub.s32 %s12, 1
      %p208 = pneg %p33
      %p209 = pneg %p30
      %p210 = pneg %p54
      %p211 = pneg %p51
      %p212 = pneg %p75
      %p213 = pneg %p72
      %p214 = pneg %p96
      %p215 = pneg %p93
      %p216 = pneg %p117
      %p217 = pneg %p114
      %p218 = pneg %p138
      %p219 = pneg %p135
      %p220 = pneg %p164
      %p221 = pneg %p161
      %s222 = smul.u32 32, %s17
      %p223 = scmp.lt.s32.totalorder %s222, 63
      %s224 = scalar_select %p223, %s222, 63
      %s225 = smul.addr %s224, 8
      %s226 = scalar_lea.vmem %s6, %s225
      %s227 = smul.u32 32, %s17
      %p228 = scmp.lt.s32.totalorder %s227, 63
      %s229 = scalar_select %p228, %s227, 63
      %s230 = smul.addr %s229, 8
      %s231 = scalar_lea.vmem %s6, %s230
      %s232 = smul.u32 32, %s17
      %p234 = scmp.eq.s32.totalorder %s17, 0
      // Predicated region
      $region45: #{gcn_forward.1} parent=43 // pred_check
        %p235 = pneg %p234
      $region46: #{gcn_forward.1} parent=43 // pred_check_branch
        %237 = sbr.rel (%p235) target = $region48
      $region47: #{gcn_forward.1} parent=43 // pred_region
        %v238 = vld [vmem:[%s1] sm:$0xf]
        %v239 = vld [vmem:[%s1 + $0x4] sm:$0xf]
        %v240 = vld [vmem:[%s1 + $0x8] sm:$0xf]
        %v241 = vld [vmem:[%s1 + $0xc] sm:$0xf]
        %v242 = vld [vmem:[%s1 + $0x10] sm:$0xf]
        %v243 = vld [vmem:[%s1 + $0x14] sm:$0xf]
        %v244 = vld [vmem:[%s1 + $0x18] sm:$0xf]
        %v245 = vld [vmem:[%s1 + $0x1c] sm:$0xf]
        %v246 = vld [vmem:[%s1 + $0x20] sm:$0xf]
        %v247 = vld [vmem:[%s1 + $0x24] sm:$0xf]
        %v248 = vld [vmem:[%s1 + $0x28] sm:$0xf]
        %v249 = vld [vmem:[%s1 + $0x2c] sm:$0xf]
        %v250 = vld [vmem:[%s1 + $0x30] sm:$0xf]
        %v251 = vld [vmem:[%s1 + $0x34] sm:$0xf]
        %v252 = vld [vmem:[%s1 + $0x38] sm:$0xf]
        %v253 = vld [vmem:[%s1 + $0x3c] sm:$0xf]
        %v254 = vld [vmem:[%s1 + $0x40] sm:$0xf]
        %v255 = vld [vmem:[%s1 + $0x44] sm:$0xf]
        %v256 = vld [vmem:[%s1 + $0x48] sm:$0xf]
        %v257 = vld [vmem:[%s1 + $0x4c] sm:$0xf]
        %v258 = vld [vmem:[%s1 + $0x50] sm:$0xf]
        %v259 = vld [vmem:[%s1 + $0x54] sm:$0xf]
        %v260 = vld [vmem:[%s1 + $0x58] sm:$0xf]
        %v261 = vld [vmem:[%s1 + $0x5c] sm:$0xf]
        %v262 = vld [vmem:[%s1 + $0x60] sm:$0xf]
        %v263 = vld [vmem:[%s1 + $0x64] sm:$0xf]
        %v264 = vld [vmem:[%s1 + $0x68] sm:$0xf]
        %v265 = vld [vmem:[%s1 + $0x6c] sm:$0xf]
        %v266 = vld [vmem:[%s1 + $0x70] sm:$0xf]
        %v267 = vld [vmem:[%s1 + $0x74] sm:$0xf]
        %v268 = vld [vmem:[%s1 + $0x78] sm:$0xf]
        %v269 = vld [vmem:[%s1 + $0x7c] sm:$0xf]
        %v270 = vld [vmem:[%s1 + $0x80] sm:$0xf]
        %v271 = vld [vmem:[%s1 + $0x84] sm:$0xf]
        %v272 = vld [vmem:[%s1 + $0x88] sm:$0xf]
        %v273 = vld [vmem:[%s1 + $0x8c] sm:$0xf]
        %v274 = vld [vmem:[%s1 + $0x90] sm:$0xf]
        %v275 = vld [vmem:[%s1 + $0x94] sm:$0xf]
        %v276 = vld [vmem:[%s1 + $0x98] sm:$0xf]
        %v277 = vld [vmem:[%s1 + $0x9c] sm:$0xf]
        %v278 = vld [vmem:[%s1 + $0xa0] sm:$0xf]
        %v279 = vld [vmem:[%s1 + $0xa4] sm:$0xf]
        %v280 = vld [vmem:[%s1 + $0xa8] sm:$0xf]
        %v281 = vld [vmem:[%s1 + $0xac] sm:$0xf]
        %v282 = vld [vmem:[%s1 + $0xb0] sm:$0xf]
        %v283 = vld [vmem:[%s1 + $0xb4] sm:$0xf]
        %v284 = vld [vmem:[%s1 + $0xb8] sm:$0xf]
        %v285 = vld [vmem:[%s1 + $0xbc] sm:$0xf]
        %v286 = vld [vmem:[%s1 + $0xc0] sm:$0xf]
        %v287 = vld [vmem:[%s1 + $0xc4] sm:$0xf]
        %v288 = vld [vmem:[%s1 + $0xc8] sm:$0xf]
        %v289 = vld [vmem:[%s1 + $0xcc] sm:$0xf]
        %v290 = vld [vmem:[%s1 + $0xd0] sm:$0xf]
        %v291 = vld [vmem:[%s1 + $0xd4] sm:$0xf]
        %v292 = vld [vmem:[%s1 + $0xd8] sm:$0xf]
        %v293 = vld [vmem:[%s1 + $0xdc] sm:$0xf]
        %v294 = vld [vmem:[%s1 + $0xe0] sm:$0xf]
        %v295 = vld [vmem:[%s1 + $0xe4] sm:$0xf]
        %v296 = vld [vmem:[%s1 + $0xe8] sm:$0xf]
        %v297 = vld [vmem:[%s1 + $0xec] sm:$0xf]
        %v298 = vld [vmem:[%s1 + $0xf0] sm:$0xf]
        %v299 = vld [vmem:[%s1 + $0xf4] sm:$0xf]
        %v300 = vld [vmem:[%s1 + $0xf8] sm:$0xf]
        %v301 = vld [vmem:[%s1 + $0xfc] sm:$0xf]
        %v302 = vld [vmem:[%s2] sm:$0xf]
        %v303 = vld [vmem:[%s2 + $0x4] sm:$0xf]
        %v304 = vld [vmem:[%s2 + $0x8] sm:$0xf]
        %v305 = vld [vmem:[%s2 + $0xc] sm:$0xf]
        %v306 = vld [vmem:[%s2 + $0x10] sm:$0xf]
        %v307 = vld [vmem:[%s2 + $0x14] sm:$0xf]
        %v308 = vld [vmem:[%s2 + $0x18] sm:$0xf]
        %v309 = vld [vmem:[%s2 + $0x1c] sm:$0xf]
        %v310 = vld [vmem:[%s2 + $0x20] sm:$0xf]
        %v311 = vld [vmem:[%s2 + $0x24] sm:$0xf]
        %v312 = vld [vmem:[%s2 + $0x28] sm:$0xf]
        %v313 = vld [vmem:[%s2 + $0x2c] sm:$0xf]
        %v314 = vld [vmem:[%s2 + $0x30] sm:$0xf]
        %v315 = vld [vmem:[%s2 + $0x34] sm:$0xf]
        %v316 = vld [vmem:[%s2 + $0x38] sm:$0xf]
        %v317 = vld [vmem:[%s2 + $0x3c] sm:$0xf]
        %v382 = vunpack.c.l.b16 %v238
        %v383 = vunpack.c.l.b16 %v239
        %v384 = vunpack.c.l.b16 %v240
        %v385 = vunpack.c.l.b16 %v241
        %v386 = vunpack.c.l.b16 %v242
        %v387 = vunpack.c.l.b16 %v243
        %v388 = vunpack.c.l.b16 %v244
        %v389 = vunpack.c.l.b16 %v245
        %v390 = vunpack.c.l.b16 %v246
        %v391 = vunpack.c.l.b16 %v247
        %v392 = vunpack.c.l.b16 %v248
        %v393 = vunpack.c.l.b16 %v249
        %v394 = vunpack.c.l.b16 %v250
        %v395 = vunpack.c.l.b16 %v251
        %v396 = vunpack.c.l.b16 %v252
        %v397 = vunpack.c.l.b16 %v253
        %v398 = vunpack.c.l.b16 %v254
        %v399 = vunpack.c.l.b16 %v255
        %v400 = vunpack.c.l.b16 %v256
        %v401 = vunpack.c.l.b16 %v257
        %v402 = vunpack.c.l.b16 %v258
        %v403 = vunpack.c.l.b16 %v259
        %v404 = vunpack.c.l.b16 %v260
        %v405 = vunpack.c.l.b16 %v261
        %v406 = vunpack.c.l.b16 %v262
        %v407 = vunpack.c.l.b16 %v263
        %v408 = vunpack.c.l.b16 %v264
        %v409 = vunpack.c.l.b16 %v265
        %v410 = vunpack.c.l.b16 %v266
        %v411 = vunpack.c.l.b16 %v267
        %v412 = vunpack.c.l.b16 %v268
        %v413 = vunpack.c.l.b16 %v269
        %v414 = vunpack.c.l.b16 %v270
        %v415 = vunpack.c.l.b16 %v271
        %v416 = vunpack.c.l.b16 %v272
        %v417 = vunpack.c.l.b16 %v273
        %v418 = vunpack.c.l.b16 %v274
        %v419 = vunpack.c.l.b16 %v275
        %v420 = vunpack.c.l.b16 %v276
        %v421 = vunpack.c.l.b16 %v277
        %v422 = vunpack.c.l.b16 %v278
        %v423 = vunpack.c.l.b16 %v279
        %v424 = vunpack.c.l.b16 %v280
        %v425 = vunpack.c.l.b16 %v281
        %v426 = vunpack.c.l.b16 %v282
        %v427 = vunpack.c.l.b16 %v283
        %v428 = vunpack.c.l.b16 %v284
        %v429 = vunpack.c.l.b16 %v285
        %v430 = vunpack.c.l.b16 %v286
        %v431 = vunpack.c.l.b16 %v287
        %v432 = vunpack.c.l.b16 %v288
        %v433 = vunpack.c.l.b16 %v289
        %v434 = vunpack.c.l.b16 %v290
        %v435 = vunpack.c.l.b16 %v291
        %v436 = vunpack.c.l.b16 %v292
        %v437 = vunpack.c.l.b16 %v293
        %v438 = vunpack.c.l.b16 %v294
        %v439 = vunpack.c.l.b16 %v295
        %v440 = vunpack.c.l.b16 %v296
        %v441 = vunpack.c.l.b16 %v297
        %v442 = vunpack.c.l.b16 %v298
        %v443 = vunpack.c.l.b16 %v299
        %v444 = vunpack.c.l.b16 %v300
        %v445 = vunpack.c.l.b16 %v301
        %v446 = vpack.c.b16 %v383, %v382
        %v447 = vpack.c.b16 %v385, %v384
        %v448 = vpack.c.b16 %v387, %v386
        %v449 = vpack.c.b16 %v389, %v388
        %v450 = vpack.c.b16 %v391, %v390
        %v451 = vpack.c.b16 %v393, %v392
        %v452 = vpack.c.b16 %v395, %v394
        %v453 = vpack.c.b16 %v397, %v396
        %v454 = vpack.c.b16 %v399, %v398
        %v455 = vpack.c.b16 %v401, %v400
        %v456 = vpack.c.b16 %v403, %v402
        %v457 = vpack.c.b16 %v405, %v404
        %v458 = vpack.c.b16 %v407, %v406
        %v459 = vpack.c.b16 %v409, %v408
        %v460 = vpack.c.b16 %v411, %v410
        %v461 = vpack.c.b16 %v413, %v412
        %v462 = vpack.c.b16 %v415, %v414
        %v463 = vpack.c.b16 %v417, %v416
        %v464 = vpack.c.b16 %v419, %v418
        %v465 = vpack.c.b16 %v421, %v420
        %v466 = vpack.c.b16 %v423, %v422
        %v467 = vpack.c.b16 %v425, %v424
        %v468 = vpack.c.b16 %v427, %v426
        %v469 = vpack.c.b16 %v429, %v428
        %v470 = vpack.c.b16 %v431, %v430
        %v471 = vpack.c.b16 %v433, %v432
        %v472 = vpack.c.b16 %v435, %v434
        %v473 = vpack.c.b16 %v437, %v436
        %v474 = vpack.c.b16 %v439, %v438
        %v475 = vpack.c.b16 %v441, %v440
        %v476 = vpack.c.b16 %v443, %v442
        %v477 = vpack.c.b16 %v445, %v444
        %v526 = vunpack.c.l.b16 %v302
        %v527 = vunpack.c.l.b16 %v303
        %v528 = vunpack.c.l.b16 %v304
        %v529 = vunpack.c.l.b16 %v305
        %v530 = vunpack.c.l.b16 %v306
        %v531 = vunpack.c.l.b16 %v307
        %v532 = vunpack.c.l.b16 %v308
        %v533 = vunpack.c.l.b16 %v309
        %v534 = vunpack.c.l.b16 %v310
        %v535 = vunpack.c.l.b16 %v311
        %v536 = vunpack.c.l.b16 %v312
        %v537 = vunpack.c.l.b16 %v313
        %v538 = vunpack.c.l.b16 %v314
        %v539 = vunpack.c.l.b16 %v315
        %v540 = vunpack.c.l.b16 %v316
        %v541 = vunpack.c.l.b16 %v317
        %v542 = vpack.c.b16 %v527, %v526
        %v543 = vpack.c.b16 %v529, %v528
        %v544 = vpack.c.b16 %v531, %v530
        %v545 = vpack.c.b16 %v533, %v532
        %v546 = vpack.c.b16 %v535, %v534
        %v547 = vpack.c.b16 %v537, %v536
        %v548 = vpack.c.b16 %v539, %v538
        %v549 = vpack.c.b16 %v541, %v540
        %558 = vmatprep.subr.bf16.mxu0 0
        %559 = vmatpush1.bf16.msra.mxu0 %v542
        %560 = vmatprep.subr.bf16.mxu0 0
        %561 = vmatpush1.bf16.msra.mxu0 %v543
        %562 = vmatprep.subr.bf16.mxu0 0
        %563 = vmatpush1.bf16.msra.mxu0 %v544
        %564 = vmatprep.subr.bf16.mxu0 0
        %565 = vmatpush1.bf16.msra.mxu0 %v545
        %566 = vmatprep.subr.bf16.mxu0 0
        %567 = vmatpush1.bf16.msra.mxu0 %v546
        %568 = vmatprep.subr.bf16.mxu0 0
        %569 = vmatpush1.bf16.msra.mxu0 %v547
        %570 = vmatprep.subr.bf16.mxu0 0
        %571 = vmatpush1.bf16.msra.mxu0 %v548
        %572 = vmatprep.subr.bf16.mxu0 0
        %573 = vmatpush1.bf16.msra.mxu0 %v549
        %574 = vmatprep.subr.bf16.mxu0 0
        %575 = vmatpush1.bf16.msra.mxu0 0
        %576 = vmatprep.subr.bf16.mxu0 0
        %577 = vmatpush1.bf16.msra.mxu0 0
        %578 = vmatprep.subr.bf16.mxu0 0
        %579 = vmatpush1.bf16.msra.mxu0 0
        %580 = vmatprep.subr.bf16.mxu0 0
        %581 = vmatpush1.bf16.msra.mxu0 0
        %582 = vmatprep.subr.bf16.mxu0 0
        %583 = vmatpush1.bf16.msra.mxu0 0
        %584 = vmatprep.subr.bf16.mxu0 0
        %585 = vmatpush1.bf16.msra.mxu0 0
        %586 = vmatprep.subr.bf16.mxu0 0
        %587 = vmatpush1.bf16.msra.mxu0 0
        %588 = vmatprep.subr.bf16.mxu0 0
        %589 = vmatpush1.bf16.msra.mxu0 0
        %590 = vmatprep.mubr.bf16.mxu0 0
        %591 = vmatmul.mubr.bf16.gmra.mrb[0].mxu0 %v446
        %v592 = vpop.f32.mrb[0].mxu0
        %v593 = vadd.f32 0.0, %v592
        %v594 = vpop.f32.mrb[0].mxu0
        %v595 = vpop.f32.mrb[0].mxu0
        %v596 = vadd.f32 0.0, %v595
        %v597 = vpop.f32.mrb[0].mxu0
        %598 = vmatprep.mubr.bf16.mxu0 0
        %599 = vmatmul.mubr.bf16.gmra.mrb[0].mxu0 %v447
        %v600 = vpop.f32.mrb[0].mxu0
        %v601 = vadd.f32 0.0, %v600
        %v602 = vpop.f32.mrb[0].mxu0
        %v603 = vpop.f32.mrb[0].mxu0
        %v604 = vadd.f32 0.0, %v603
        %v605 = vpop.f32.mrb[0].mxu0
        %606 = vmatprep.mubr.bf16.mxu0 0
        %607 = vmatmul.mubr.bf16.gmra.mrb[0].mxu0 %v448
        %v608 = vpop.f32.mrb[0].mxu0
        %v609 = vadd.f32 0.0, %v608
        %v610 = vpop.f32.mrb[0].mxu0
        %v611 = vpop.f32.mrb[0].mxu0
        %v612 = vadd.f32 0.0, %v611
        %v613 = vpop.f32.mrb[0].mxu0
        %614 = vmatprep.mubr.bf16.mxu0 0
        %615 = vmatmul.mubr.bf16.gmra.mrb[0].mxu0 %v449
        %v616 = vpop.f32.mrb[0].mxu0
        %v617 = vadd.f32 0.0, %v616
        %v618 = vpop.f32.mrb[0].mxu0
        %v619 = vpop.f32.mrb[0].mxu0
        %v620 = vadd.f32 0.0, %v619
        %v621 = vpop.f32.mrb[0].mxu0
        %622 = vmatprep.mubr.bf16.mxu0 0
        %623 = vmatmul.mubr.bf16.gmra.mrb[0].mxu0 %v450
        %v624 = vpop.f32.mrb[0].mxu0
        %v625 = vadd.f32 0.0, %v624
        %v626 = vpop.f32.mrb[0].mxu0
        %v627 = vpop.f32.mrb[0].mxu0
        %v628 = vadd.f32 0.0, %v627
        %v629 = vpop.f32.mrb[0].mxu0
        %630 = vmatprep.mubr.bf16.mxu0 0
        %631 = vmatmul.mubr.bf16.gmra.mrb[0].mxu0 %v451
        %v632 = vpop.f32.mrb[0].mxu0
        %v633 = vadd.f32 0.0, %v632
        %v634 = vpop.f32.mrb[0].mxu0
        %v635 = vpop.f32.mrb[0].mxu0
        %v636 = vadd.f32 0.0, %v635
        %v637 = vpop.f32.mrb[0].mxu0
        %638 = vmatprep.mubr.bf16.mxu0 0
        %639 = vmatmul.mubr.bf16.gmra.mrb[0].mxu0 %v452
        %v640 = vpop.f32.mrb[0].mxu0
        %v641 = vadd.f32 0.0, %v640
        %v642 = vpop.f32.mrb[0].mxu0
        %v643 = vpop.f32.mrb[0].mxu0
        %v644 = vadd.f32 0.0, %v643
        %v645 = vpop.f32.mrb[0].mxu0
        %646 = vmatprep.mubr.bf16.mxu0 0
        %647 = vmatmul.mubr.bf16.gmra.mrb[0].mxu0 %v453
        %v648 = vpop.f32.mrb[0].mxu0
        %v649 = vadd.f32 0.0, %v648
        %v650 = vpop.f32.mrb[0].mxu0
        %v651 = vpop.f32.mrb[0].mxu0
        %v652 = vadd.f32 0.0, %v651
        %v653 = vpop.f32.mrb[0].mxu0
        %654 = vmatprep.mubr.bf16.mxu0 0
        %655 = vmatmul.mubr.bf16.gmra.mrb[0].mxu0 %v454
        %v656 = vpop.f32.mrb[0].mxu0
        %v657 = vadd.f32 0.0, %v656
        %v658 = vpop.f32.mrb[0].mxu0
        %v659 = vpop.f32.mrb[0].mxu0
        %v660 = vadd.f32 0.0, %v659
        %v661 = vpop.f32.mrb[0].mxu0
        %662 = vmatprep.mubr.bf16.mxu0 0
        %663 = vmatmul.mubr.bf16.gmra.mrb[0].mxu0 %v455
        %v664 = vpop.f32.mrb[0].mxu0
        %v665 = vadd.f32 0.0, %v664
        %v666 = vpop.f32.mrb[0].mxu0
        %v667 = vpop.f32.mrb[0].mxu0
        %v668 = vadd.f32 0.0, %v667
        %v669 = vpop.f32.mrb[0].mxu0
        %670 = vmatprep.mubr.bf16.mxu0 0
        %671 = vmatmul.mubr.bf16.gmra.mrb[0].mxu0 %v456
        %v672 = vpop.f32.mrb[0].mxu0
        %v673 = vadd.f32 0.0, %v672
        %v674 = vpop.f32.mrb[0].mxu0
        %v675 = vpop.f32.mrb[0].mxu0
        %v676 = vadd.f32 0.0, %v675
        %v677 = vpop.f32.mrb[0].mxu0
        %678 = vmatprep.mubr.bf16.mxu0 0
        %679 = vmatmul.mubr.bf16.gmra.mrb[0].mxu0 %v457
        %v680 = vpop.f32.mrb[0].mxu0
        %v681 = vadd.f32 0.0, %v680
        %v682 = vpop.f32.mrb[0].mxu0
        %v683 = vpop.f32.mrb[0].mxu0
        %v684 = vadd.f32 0.0, %v683
        %v685 = vpop.f32.mrb[0].mxu0
        %686 = vmatprep.mubr.bf16.mxu0 0
        %687 = vmatmul.mubr.bf16.gmra.mrb[0].mxu0 %v458
        %v688 = vpop.f32.mrb[0].mxu0
        %v689 = vadd.f32 0.0, %v688
        %v690 = vpop.f32.mrb[0].mxu0
        %v691 = vpop.f32.mrb[0].mxu0
        %v692 = vadd.f32 0.0, %v691
        %v693 = vpop.f32.mrb[0].mxu0
        %694 = vmatprep.mubr.bf16.mxu0 0
        %695 = vmatmul.mubr.bf16.gmra.mrb[0].mxu0 %v459
        %v696 = vpop.f32.mrb[0].mxu0
        %v697 = vadd.f32 0.0, %v696
        %v698 = vpop.f32.mrb[0].mxu0
        %v699 = vpop.f32.mrb[0].mxu0
        %v700 = vadd.f32 0.0, %v699
        %v701 = vpop.f32.mrb[0].mxu0
        %702 = vmatprep.mubr.bf16.mxu0 0
        %703 = vmatmul.mubr.bf16.gmra.mrb[0].mxu0 %v460
        %v704 = vpop.f32.mrb[0].mxu0
        %v705 = vadd.f32 0.0, %v704
        %v706 = vpop.f32.mrb[0].mxu0
        %v707 = vpop.f32.mrb[0].mxu0
        %v708 = vadd.f32 0.0, %v707
        %v709 = vpop.f32.mrb[0].mxu0
        %710 = vmatprep.mubr.bf16.mxu0 0
        %711 = vmatmul.mubr.bf16.gmra.mrb[0].mxu0 %v461
        %v712 = vpop.f32.mrb[0].mxu0
        %v713 = vadd.f32 0.0, %v712
        %v714 = vpop.f32.mrb[0].mxu0
        %v715 = vpop.f32.mrb[0].mxu0
        %v716 = vadd.f32 0.0, %v715
        %v717 = vpop.f32.mrb[0].mxu0
        %718 = vmatprep.mubr.bf16.mxu0 0
        %719 = vmatmul.mubr.bf16.gmra.mrb[0].mxu0 %v462
        %v720 = vpop.f32.mrb[0].mxu0
        %v721 = vadd.f32 0.0, %v720
        %v722 = vpop.f32.mrb[0].mxu0
        %v723 = vpop.f32.mrb[0].mxu0
        %v724 = vadd.f32 0.0, %v723
        %v725 = vpop.f32.mrb[0].mxu0
        %726 = vmatprep.mubr.bf16.mxu0 0
        %727 = vmatmul.mubr.bf16.gmra.mrb[0].mxu0 %v463
        %v728 = vpop.f32.mrb[0].mxu0
        %v729 = vadd.f32 0.0, %v728
        %v730 = vpop.f32.mrb[0].mxu0
        %v731 = vpop.f32.mrb[0].mxu0
        %v732 = vadd.f32 0.0, %v731
        %v733 = vpop.f32.mrb[0].mxu0
        %734 = vmatprep.mubr.bf16.mxu0 0
        %735 = vmatmul.mubr.bf16.gmra.mrb[0].mxu0 %v464
        %v736 = vpop.f32.mrb[0].mxu0
        %v737 = vadd.f32 0.0, %v736
        %v738 = vpop.f32.mrb[0].mxu0
        %v739 = vpop.f32.mrb[0].mxu0
        %v740 = vadd.f32 0.0, %v739
        %v741 = vpop.f32.mrb[0].mxu0
        %742 = vmatprep.mubr.bf16.mxu0 0
        %743 = vmatmul.mubr.bf16.gmra.mrb[0].mxu0 %v465
        %v744 = vpop.f32.mrb[0].mxu0
        %v745 = vadd.f32 0.0, %v744
        %v746 = vpop.f32.mrb[0].mxu0
        %v747 = vpop.f32.mrb[0].mxu0
        %v748 = vadd.f32 0.0, %v747
        %v749 = vpop.f32.mrb[0].mxu0
        %750 = vmatprep.mubr.bf16.mxu0 0
        %751 = vmatmul.mubr.bf16.gmra.mrb[0].mxu0 %v466
        %v752 = vpop.f32.mrb[0].mxu0
        %v753 = vadd.f32 0.0, %v752
        %v754 = vpop.f32.mrb[0].mxu0
        %v755 = vpop.f32.mrb[0].mxu0
        %v756 = vadd.f32 0.0, %v755
        %v757 = vpop.f32.mrb[0].mxu0
        %758 = vmatprep.mubr.bf16.mxu0 0
        %759 = vmatmul.mubr.bf16.gmra.mrb[0].mxu0 %v467
        %v760 = vpop.f32.mrb[0].mxu0
        %v761 = vadd.f32 0.0, %v760
        %v762 = vpop.f32.mrb[0].mxu0
        %v763 = vpop.f32.mrb[0].mxu0
        %v764 = vadd.f32 0.0, %v763
        %v765 = vpop.f32.mrb[0].mxu0
        %766 = vmatprep.mubr.bf16.mxu0 0
        %767 = vmatmul.mubr.bf16.gmra.mrb[0].mxu0 %v468
        %v768 = vpop.f32.mrb[0].mxu0
        %v769 = vadd.f32 0.0, %v768
        %v770 = vpop.f32.mrb[0].mxu0
        %v771 = vpop.f32.mrb[0].mxu0
        %v772 = vadd.f32 0.0, %v771
        %v773 = vpop.f32.mrb[0].mxu0
        %774 = vmatprep.mubr.bf16.mxu0 0
        %775 = vmatmul.mubr.bf16.gmra.mrb[0].mxu0 %v469
        %v776 = vpop.f32.mrb[0].mxu0
        %v777 = vadd.f32 0.0, %v776
        %v778 = vpop.f32.mrb[0].mxu0
        %v779 = vpop.f32.mrb[0].mxu0
        %v780 = vadd.f32 0.0, %v779
        %v781 = vpop.f32.mrb[0].mxu0
        %782 = vmatprep.mubr.bf16.mxu0 0
        %783 = vmatmul.mubr.bf16.gmra.mrb[0].mxu0 %v470
        %v784 = vpop.f32.mrb[0].mxu0
        %v785 = vadd.f32 0.0, %v784
        %v786 = vpop.f32.mrb[0].mxu0
        %v787 = vpop.f32.mrb[0].mxu0
        %v788 = vadd.f32 0.0, %v787
        %v789 = vpop.f32.mrb[0].mxu0
        %790 = vmatprep.mubr.bf16.mxu0 0
        %791 = vmatmul.mubr.bf16.gmra.mrb[0].mxu0 %v471
        %v792 = vpop.f32.mrb[0].mxu0
        %v793 = vadd.f32 0.0, %v792
        %v794 = vpop.f32.mrb[0].mxu0
        %v795 = vpop.f32.mrb[0].mxu0
        %v796 = vadd.f32 0.0, %v795
        %v797 = vpop.f32.mrb[0].mxu0
        %798 = vmatprep.mubr.bf16.mxu0 0
        %799 = vmatmul.mubr.bf16.gmra.mrb[0].mxu0 %v472
        %v800 = vpop.f32.mrb[0].mxu0
        %v801 = vadd.f32 0.0, %v800
        %v802 = vpop.f32.mrb[0].mxu0
        %v803 = vpop.f32.mrb[0].mxu0
        %v804 = vadd.f32 0.0, %v803
        %v805 = vpop.f32.mrb[0].mxu0
        %806 = vmatprep.mubr.bf16.mxu0 0
        %807 = vmatmul.mubr.bf16.gmra.mrb[0].mxu0 %v473
        %v808 = vpop.f32.mrb[0].mxu0
        %v809 = vadd.f32 0.0, %v808
        %v810 = vpop.f32.mrb[0].mxu0
        %v811 = vpop.f32.mrb[0].mxu0
        %v812 = vadd.f32 0.0, %v811
        %v813 = vpop.f32.mrb[0].mxu0
        %814 = vmatprep.mubr.bf16.mxu0 0
        %815 = vmatmul.mubr.bf16.gmra.mrb[0].mxu0 %v474
        %v816 = vpop.f32.mrb[0].mxu0
        %v817 = vadd.f32 0.0, %v816
        %v818 = vpop.f32.mrb[0].mxu0
        %v819 = vpop.f32.mrb[0].mxu0
        %v820 = vadd.f32 0.0, %v819
        %v821 = vpop.f32.mrb[0].mxu0
        %822 = vmatprep.mubr.bf16.mxu0 0
        %823 = vmatmul.mubr.bf16.gmra.mrb[0].mxu0 %v475
        %v824 = vpop.f32.mrb[0].mxu0
        %v825 = vadd.f32 0.0, %v824
        %v826 = vpop.f32.mrb[0].mxu0
        %v827 = vpop.f32.mrb[0].mxu0
        %v828 = vadd.f32 0.0, %v827
        %v829 = vpop.f32.mrb[0].mxu0
        %830 = vmatprep.mubr.bf16.mxu0 0
        %831 = vmatmul.mubr.bf16.gmra.mrb[0].mxu0 %v476
        %v832 = vpop.f32.mrb[0].mxu0
        %v833 = vadd.f32 0.0, %v832
        %v834 = vpop.f32.mrb[0].mxu0
        %v835 = vpop.f32.mrb[0].mxu0
        %v836 = vadd.f32 0.0, %v835
        %v837 = vpop.f32.mrb[0].mxu0
        %838 = vmatprep.mubr.bf16.mxu0 0
        %839 = vmatmul.mubr.bf16.gmra.mrb[0].mxu0 %v477
        %v840 = vpop.f32.mrb[0].mxu0
        %v841 = vadd.f32 0.0, %v840
        %v842 = vpop.f32.mrb[0].mxu0
        %v843 = vpop.f32.mrb[0].mxu0
        %v844 = vadd.f32 0.0, %v843
        %v845 = vpop.f32.mrb[0].mxu0
        %846 = vdwg.mxu0
        %v847 = vld [vmem:[%s0] sm:$0xff]
        %v848 = vld [vmem:[%s0 + $0x8] sm:$0xff]
        %v849 = vld [vmem:[%s0 + $0x10] sm:$0xff]
        %v850 = vld [vmem:[%s0 + $0x18] sm:$0xff]
        %v851 = vld [vmem:[%s0 + $0x20] sm:$0xff]
        %v852 = vld [vmem:[%s0 + $0x28] sm:$0xff]
        %v853 = vld [vmem:[%s0 + $0x30] sm:$0xff]
        %v854 = vld [vmem:[%s0 + $0x38] sm:$0xff]
        %v855 = vld [vmem:[%s0 + $0x40] sm:$0xff]
        %v856 = vld [vmem:[%s0 + $0x48] sm:$0xff]
        %v857 = vld [vmem:[%s0 + $0x50] sm:$0xff]
        %v858 = vld [vmem:[%s0 + $0x58] sm:$0xff]
        %v859 = vld [vmem:[%s0 + $0x60] sm:$0xff]
        %v860 = vld [vmem:[%s0 + $0x68] sm:$0xff]
        %v861 = vld [vmem:[%s0 + $0x70] sm:$0xff]
        %v862 = vld [vmem:[%s0 + $0x78] sm:$0xff]
        %v863 = vld [vmem:[%s0 + $0x80] sm:$0xff]
        %v864 = vld [vmem:[%s0 + $0x88] sm:$0xff]
        %v865 = vld [vmem:[%s0 + $0x90] sm:$0xff]
        %v866 = vld [vmem:[%s0 + $0x98] sm:$0xff]
        %v867 = vld [vmem:[%s0 + $0xa0] sm:$0xff]
        %v868 = vld [vmem:[%s0 + $0xa8] sm:$0xff]
        %v869 = vld [vmem:[%s0 + $0xb0] sm:$0xff]
        %v870 = vld [vmem:[%s0 + $0xb8] sm:$0xff]
        %v871 = vld [vmem:[%s0 + $0xc0] sm:$0xff]
        %v872 = vld [vmem:[%s0 + $0xc8] sm:$0xff]
        %v873 = vld [vmem:[%s0 + $0xd0] sm:$0xff]
        %v874 = vld [vmem:[%s0 + $0xd8] sm:$0xff]
        %v875 = vld [vmem:[%s0 + $0xe0] sm:$0xff]
        %v876 = vld [vmem:[%s0 + $0xe8] sm:$0xff]
        %v877 = vld [vmem:[%s0 + $0xf0] sm:$0xff]
        %v878 = vld [vmem:[%s0 + $0xf8] sm:$0xff]
        %v879 = vld [vmem:[%s0 + $0x100] sm:$0xff]
        %v880 = vld [vmem:[%s0 + $0x108] sm:$0xff]
        %v881 = vld [vmem:[%s0 + $0x110] sm:$0xff]
        %v882 = vld [vmem:[%s0 + $0x118] sm:$0xff]
        %v883 = vld [vmem:[%s0 + $0x120] sm:$0xff]
        %v884 = vld [vmem:[%s0 + $0x128] sm:$0xff]
        %v885 = vld [vmem:[%s0 + $0x130] sm:$0xff]
        %v886 = vld [vmem:[%s0 + $0x138] sm:$0xff]
        %v887 = vld [vmem:[%s0 + $0x140] sm:$0xff]
        %v888 = vld [vmem:[%s0 + $0x148] sm:$0xff]
        %v889 = vld [vmem:[%s0 + $0x150] sm:$0xff]
        %v890 = vld [vmem:[%s0 + $0x158] sm:$0xff]
        %v891 = vld [vmem:[%s0 + $0x160] sm:$0xff]
        %v892 = vld [vmem:[%s0 + $0x168] sm:$0xff]
        %v893 = vld [vmem:[%s0 + $0x170] sm:$0xff]
        %v894 = vld [vmem:[%s0 + $0x178] sm:$0xff]
        %v895 = vld [vmem:[%s0 + $0x180] sm:$0xff]
        %v896 = vld [vmem:[%s0 + $0x188] sm:$0xff]
        %v897 = vld [vmem:[%s0 + $0x190] sm:$0xff]
        %v898 = vld [vmem:[%s0 + $0x198] sm:$0xff]
        %v899 = vld [vmem:[%s0 + $0x1a0] sm:$0xff]
        %v900 = vld [vmem:[%s0 + $0x1a8] sm:$0xff]
        %v901 = vld [vmem:[%s0 + $0x1b0] sm:$0xff]
        %v902 = vld [vmem:[%s0 + $0x1b8] sm:$0xff]
        %v903 = vld [vmem:[%s0 + $0x1c0] sm:$0xff]
        %v904 = vld [vmem:[%s0 + $0x1c8] sm:$0xff]
        %v905 = vld [vmem:[%s0 + $0x1d0] sm:$0xff]
        %v906 = vld [vmem:[%s0 + $0x1d8] sm:$0xff]
        %v907 = vld [vmem:[%s0 + $0x1e0] sm:$0xff]
        %v908 = vld [vmem:[%s0 + $0x1e8] sm:$0xff]
        %v909 = vld [vmem:[%s0 + $0x1f0] sm:$0xff]
        %v910 = vld [vmem:[%s0 + $0x1f8] sm:$0xff]
        %v911 = vld [vmem:[%s0 + $0x200] sm:$0xff]
        %v912 = vld [vmem:[%s0 + $0x208] sm:$0xff]
        %v913 = vld [vmem:[%s0 + $0x210] sm:$0xff]
        %v914 = vld [vmem:[%s0 + $0x218] sm:$0xff]
        %v915 = vld [vmem:[%s0 + $0x220] sm:$0xff]
        %v916 = vld [vmem:[%s0 + $0x228] sm:$0xff]
        %v917 = vld [vmem:[%s0 + $0x230] sm:$0xff]
        %v918 = vld [vmem:[%s0 + $0x238] sm:$0xff]
        %v919 = vld [vmem:[%s0 + $0x240] sm:$0xff]
        %v920 = vld [vmem:[%s0 + $0x248] sm:$0xff]
        %v921 = vld [vmem:[%s0 + $0x250] sm:$0xff]
        %v922 = vld [vmem:[%s0 + $0x258] sm:$0xff]
        %v923 = vld [vmem:[%s0 + $0x260] sm:$0xff]
        %v924 = vld [vmem:[%s0 + $0x268] sm:$0xff]
        %v925 = vld [vmem:[%s0 + $0x270] sm:$0xff]
        %v926 = vld [vmem:[%s0 + $0x278] sm:$0xff]
        %v927 = vld [vmem:[%s0 + $0x280] sm:$0xff]
        %v928 = vld [vmem:[%s0 + $0x288] sm:$0xff]
        %v929 = vld [vmem:[%s0 + $0x290] sm:$0xff]
        %v930 = vld [vmem:[%s0 + $0x298] sm:$0xff]
        %v931 = vld [vmem:[%s0 + $0x2a0] sm:$0xff]
        %v932 = vld [vmem:[%s0 + $0x2a8] sm:$0xff]
        %v933 = vld [vmem:[%s0 + $0x2b0] sm:$0xff]
        %v934 = vld [vmem:[%s0 + $0x2b8] sm:$0xff]
        %v935 = vld [vmem:[%s0 + $0x2c0] sm:$0xff]
        %v936 = vld [vmem:[%s0 + $0x2c8] sm:$0xff]
        %v937 = vld [vmem:[%s0 + $0x2d0] sm:$0xff]
        %v938 = vld [vmem:[%s0 + $0x2d8] sm:$0xff]
        %v939 = vld [vmem:[%s0 + $0x2e0] sm:$0xff]
        %v940 = vld [vmem:[%s0 + $0x2e8] sm:$0xff]
        %v941 = vld [vmem:[%s0 + $0x2f0] sm:$0xff]
        %v942 = vld [vmem:[%s0 + $0x2f8] sm:$0xff]
        %v943 = vld [vmem:[%s0 + $0x300] sm:$0xff]
        %v944 = vld [vmem:[%s0 + $0x308] sm:$0xff]
        %v945 = vld [vmem:[%s0 + $0x310] sm:$0xff]
        %v946 = vld [vmem:[%s0 + $0x318] sm:$0xff]
        %v947 = vld [vmem:[%s0 + $0x320] sm:$0xff]
        %v948 = vld [vmem:[%s0 + $0x328] sm:$0xff]
        %v949 = vld [vmem:[%s0 + $0x330] sm:$0xff]
        %v950 = vld [vmem:[%s0 + $0x338] sm:$0xff]
        %v951 = vld [vmem:[%s0 + $0x340] sm:$0xff]
        %v952 = vld [vmem:[%s0 + $0x348] sm:$0xff]
        %v953 = vld [vmem:[%s0 + $0x350] sm:$0xff]
        %v954 = vld [vmem:[%s0 + $0x358] sm:$0xff]
        %v955 = vld [vmem:[%s0 + $0x360] sm:$0xff]
        %v956 = vld [vmem:[%s0 + $0x368] sm:$0xff]
        %v957 = vld [vmem:[%s0 + $0x370] sm:$0xff]
        %v958 = vld [vmem:[%s0 + $0x378] sm:$0xff]
        %v959 = vld [vmem:[%s0 + $0x380] sm:$0xff]
        %v960 = vld [vmem:[%s0 + $0x388] sm:$0xff]
        %v961 = vld [vmem:[%s0 + $0x390] sm:$0xff]
        %v962 = vld [vmem:[%s0 + $0x398] sm:$0xff]
        %v963 = vld [vmem:[%s0 + $0x3a0] sm:$0xff]
        %v964 = vld [vmem:[%s0 + $0x3a8] sm:$0xff]
        %v965 = vld [vmem:[%s0 + $0x3b0] sm:$0xff]
        %v966 = vld [vmem:[%s0 + $0x3b8] sm:$0xff]
        %v967 = vld [vmem:[%s0 + $0x3c0] sm:$0xff]
        %v968 = vld [vmem:[%s0 + $0x3c8] sm:$0xff]
        %v969 = vld [vmem:[%s0 + $0x3d0] sm:$0xff]
        %v970 = vld [vmem:[%s0 + $0x3d8] sm:$0xff]
        %v971 = vld [vmem:[%s0 + $0x3e0] sm:$0xff]
        %v972 = vld [vmem:[%s0 + $0x3e8] sm:$0xff]
        %v973 = vld [vmem:[%s0 + $0x3f0] sm:$0xff]
        %v974 = vld [vmem:[%s0 + $0x3f8] sm:$0xff]
        %v975 = vpack.c.bf16 %v596, %v593
        %v976 = vpack.c.bf16 %v604, %v601
        %v977 = vpack.c.bf16 %v612, %v609
        %v978 = vpack.c.bf16 %v620, %v617
        %v979 = vpack.c.bf16 %v628, %v625
        %v980 = vpack.c.bf16 %v636, %v633
        %v981 = vpack.c.bf16 %v644, %v641
        %v982 = vpack.c.bf16 %v652, %v649
        %v983 = vpack.c.bf16 %v660, %v657
        %v984 = vpack.c.bf16 %v668, %v665
        %v985 = vpack.c.bf16 %v676, %v673
        %v986 = vpack.c.bf16 %v684, %v681
        %v987 = vpack.c.bf16 %v692, %v689
        %v988 = vpack.c.bf16 %v700, %v697
        %v989 = vpack.c.bf16 %v708, %v705
        %v990 = vpack.c.bf16 %v716, %v713
        %v991 = vpack.c.bf16 %v724, %v721
        %v992 = vpack.c.bf16 %v732, %v729
        %v993 = vpack.c.bf16 %v740, %v737
        %v994 = vpack.c.bf16 %v748, %v745
        %v995 = vpack.c.bf16 %v756, %v753
        %v996 = vpack.c.bf16 %v764, %v761
        %v997 = vpack.c.bf16 %v772, %v769
        %v998 = vpack.c.bf16 %v780, %v777
        %v999 = vpack.c.bf16 %v788, %v785
        %v1000 = vpack.c.bf16 %v796, %v793
        %v1001 = vpack.c.bf16 %v804, %v801
        %v1002 = vpack.c.bf16 %v812, %v809
        %v1003 = vpack.c.bf16 %v820, %v817
        %v1004 = vpack.c.bf16 %v828, %v825
        %v1005 = vpack.c.bf16 %v836, %v833
        %v1006 = vpack.c.bf16 %v844, %v841
        %v1007 = vld [vmem:[%s3] sm:$0x1]
        %v1009 = vlaneseq
        %v1010 = vshrl.u32 %v1009, 7
        %v1011 = vsub.s32 0, %v1010
        %v1012 = vrot.slane %v1007, %v1011
        %v1142 = vunpack.c.l.b16 %v847
        %v1143 = vunpack.c.h.b16 %v847
        %v1144 = vunpack.c.l.b16 %v848
        %v1145 = vunpack.c.h.b16 %v848
        %v1146 = vunpack.c.l.b16 %v849
        %v1147 = vunpack.c.h.b16 %v849
        %v1148 = vunpack.c.l.b16 %v850
        %v1149 = vunpack.c.h.b16 %v850
        %v1150 = vunpack.c.l.b16 %v851
        %v1151 = vunpack.c.h.b16 %v851
        %v1152 = vunpack.c.l.b16 %v852
        %v1153 = vunpack.c.h.b16 %v852
        %v1154 = vunpack.c.l.b16 %v853
        %v1155 = vunpack.c.h.b16 %v853
        %v1156 = vunpack.c.l.b16 %v854
        %v1157 = vunpack.c.h.b16 %v854
        %v1158 = vunpack.c.l.b16 %v855
        %v1159 = vunpack.c.h.b16 %v855
        %v1160 = vunpack.c.l.b16 %v856
        %v1161 = vunpack.c.h.b16 %v856
        %v1162 = vunpack.c.l.b16 %v857
        %v1163 = vunpack.c.h.b16 %v857
        %v1164 = vunpack.c.l.b16 %v858
        %v1165 = vunpack.c.h.b16 %v858
        %v1166 = vunpack.c.l.b16 %v859
        %v1167 = vunpack.c.h.b16 %v859
        %v1168 = vunpack.c.l.b16 %v860
        %v1169 = vunpack.c.h.b16 %v860
        %v1170 = vunpack.c.l.b16 %v861
        %v1171 = vunpack.c.h.b16 %v861
        %v1172 = vunpack.c.l.b16 %v862
        %v1173 = vunpack.c.h.b16 %v862
        %v1174 = vunpack.c.l.b16 %v863
        %v1175 = vunpack.c.h.b16 %v863
        %v1176 = vunpack.c.l.b16 %v864
        %v1177 = vunpack.c.h.b16 %v864
        %v1178 = vunpack.c.l.b16 %v865
        %v1179 = vunpack.c.h.b16 %v865
        %v1180 = vunpack.c.l.b16 %v866
        %v1181 = vunpack.c.h.b16 %v866
        %v1182 = vunpack.c.l.b16 %v867
        %v1183 = vunpack.c.h.b16 %v867
        %v1184 = vunpack.c.l.b16 %v868
        %v1185 = vunpack.c.h.b16 %v868
        %v1186 = vunpack.c.l.b16 %v869
        %v1187 = vunpack.c.h.b16 %v869
        %v1188 = vunpack.c.l.b16 %v870
        %v1189 = vunpack.c.h.b16 %v870
        %v1190 = vunpack.c.l.b16 %v871
        %v1191 = vunpack.c.h.b16 %v871
        %v1192 = vunpack.c.l.b16 %v872
        %v1193 = vunpack.c.h.b16 %v872
        %v1194 = vunpack.c.l.b16 %v873
        %v1195 = vunpack.c.h.b16 %v873
        %v1196 = vunpack.c.l.b16 %v874
        %v1197 = vunpack.c.h.b16 %v874
        %v1198 = vunpack.c.l.b16 %v875
        %v1199 = vunpack.c.h.b16 %v875
        %v1200 = vunpack.c.l.b16 %v876
        %v1201 = vunpack.c.h.b16 %v876
        %v1202 = vunpack.c.l.b16 %v877
        %v1203 = vunpack.c.h.b16 %v877
        %v1204 = vunpack.c.l.b16 %v878
        %v1205 = vunpack.c.h.b16 %v878
        %v1206 = vunpack.c.l.b16 %v879
        %v1207 = vunpack.c.h.b16 %v879
        %v1208 = vunpack.c.l.b16 %v880
        %v1209 = vunpack.c.h.b16 %v880
        %v1210 = vunpack.c.l.b16 %v881
        %v1211 = vunpack.c.h.b16 %v881
        %v1212 = vunpack.c.l.b16 %v882
        %v1213 = vunpack.c.h.b16 %v882
        %v1214 = vunpack.c.l.b16 %v883
        %v1215 = vunpack.c.h.b16 %v883
        %v1216 = vunpack.c.l.b16 %v884
        %v1217 = vunpack.c.h.b16 %v884
        %v1218 = vunpack.c.l.b16 %v885
        %v1219 = vunpack.c.h.b16 %v885
        %v1220 = vunpack.c.l.b16 %v886
        %v1221 = vunpack.c.h.b16 %v886
        %v1222 = vunpack.c.l.b16 %v887
        %v1223 = vunpack.c.h.b16 %v887
        %v1224 = vunpack.c.l.b16 %v888
        %v1225 = vunpack.c.h.b16 %v888
        %v1226 = vunpack.c.l.b16 %v889
        %v1227 = vunpack.c.h.b16 %v889
        %v1228 = vunpack.c.l.b16 %v890
        %v1229 = vunpack.c.h.b16 %v890
        %v1230 = vunpack.c.l.b16 %v891
        %v1231 = vunpack.c.h.b16 %v891
        %v1232 = vunpack.c.l.b16 %v892
        %v1233 = vunpack.c.h.b16 %v892
        %v1234 = vunpack.c.l.b16 %v893
        %v1235 = vunpack.c.h.b16 %v893
        %v1236 = vunpack.c.l.b16 %v894
        %v1237 = vunpack.c.h.b16 %v894
        %v1238 = vunpack.c.l.b16 %v895
        %v1239 = vunpack.c.h.b16 %v895
        %v1240 = vunpack.c.l.b16 %v896
        %v1241 = vunpack.c.h.b16 %v896
        %v1242 = vunpack.c.l.b16 %v897
        %v1243 = vunpack.c.h.b16 %v897
        %v1244 = vunpack.c.l.b16 %v898
        %v1245 = vunpack.c.h.b16 %v898
        %v1246 = vunpack.c.l.b16 %v899
        %v1247 = vunpack.c.h.b16 %v899
        %v1248 = vunpack.c.l.b16 %v900
        %v1249 = vunpack.c.h.b16 %v900
        %v1250 = vunpack.c.l.b16 %v901
        %v1251 = vunpack.c.h.b16 %v901
        %v1252 = vunpack.c.l.b16 %v902
        %v1253 = vunpack.c.h.b16 %v902
        %v1254 = vunpack.c.l.b16 %v903
        %v1255 = vunpack.c.h.b16 %v903
        %v1256 = vunpack.c.l.b16 %v904
        %v1257 = vunpack.c.h.b16 %v904
        %v1258 = vunpack.c.l.b16 %v905
        %v1259 = vunpack.c.h.b16 %v905
        %v1260 = vunpack.c.l.b16 %v906
        %v1261 = vunpack.c.h.b16 %v906
        %v1262 = vunpack.c.l.b16 %v907
        %v1263 = vunpack.c.h.b16 %v907
        %v1264 = vunpack.c.l.b16 %v908
        %v1265 = vunpack.c.h.b16 %v908
        %v1266 = vunpack.c.l.b16 %v909
        %v1267 = vunpack.c.h.b16 %v909
        %v1268 = vunpack.c.l.b16 %v910
        %v1269 = vunpack.c.h.b16 %v910
        %v1270 = vunpack.c.l.b16 %v911
        %v1271 = vunpack.c.h.b16 %v911
        %v1272 = vunpack.c.l.b16 %v912
        %v1273 = vunpack.c.h.b16 %v912
        %v1274 = vunpack.c.l.b16 %v913
        %v1275 = vunpack.c.h.b16 %v913
        %v1276 = vunpack.c.l.b16 %v914
        %v1277 = vunpack.c.h.b16 %v914
        %v1278 = vunpack.c.l.b16 %v915
        %v1279 = vunpack.c.h.b16 %v915
        %v1280 = vunpack.c.l.b16 %v916
        %v1281 = vunpack.c.h.b16 %v916
        %v1282 = vunpack.c.l.b16 %v917
        %v1283 = vunpack.c.h.b16 %v917
        %v1284 = vunpack.c.l.b16 %v918
        %v1285 = vunpack.c.h.b16 %v918
        %v1286 = vunpack.c.l.b16 %v919
        %v1287 = vunpack.c.h.b16 %v919
        %v1288 = vunpack.c.l.b16 %v920
        %v1289 = vunpack.c.h.b16 %v920
        %v1290 = vunpack.c.l.b16 %v921
        %v1291 = vunpack.c.h.b16 %v921
        %v1292 = vunpack.c.l.b16 %v922
        %v1293 = vunpack.c.h.b16 %v922
        %v1294 = vunpack.c.l.b16 %v923
        %v1295 = vunpack.c.h.b16 %v923
        %v1296 = vunpack.c.l.b16 %v924
        %v1297 = vunpack.c.h.b16 %v924
        %v1298 = vunpack.c.l.b16 %v925
        %v1299 = vunpack.c.h.b16 %v925
        %v1300 = vunpack.c.l.b16 %v926
        %v1301 = vunpack.c.h.b16 %v926
        %v1302 = vunpack.c.l.b16 %v927
        %v1303 = vunpack.c.h.b16 %v927
        %v1304 = vunpack.c.l.b16 %v928
        %v1305 = vunpack.c.h.b16 %v928
        %v1306 = vunpack.c.l.b16 %v929
        %v1307 = vunpack.c.h.b16 %v929
        %v1308 = vunpack.c.l.b16 %v930
        %v1309 = vunpack.c.h.b16 %v930
        %v1310 = vunpack.c.l.b16 %v931
        %v1311 = vunpack.c.h.b16 %v931
        %v1312 = vunpack.c.l.b16 %v932
        %v1313 = vunpack.c.h.b16 %v932
        %v1314 = vunpack.c.l.b16 %v933
        %v1315 = vunpack.c.h.b16 %v933
        %v1316 = vunpack.c.l.b16 %v934
        %v1317 = vunpack.c.h.b16 %v934
        %v1318 = vunpack.c.l.b16 %v935
        %v1319 = vunpack.c.h.b16 %v935
        %v1320 = vunpack.c.l.b16 %v936
        %v1321 = vunpack.c.h.b16 %v936
        %v1322 = vunpack.c.l.b16 %v937
        %v1323 = vunpack.c.h.b16 %v937
        %v1324 = vunpack.c.l.b16 %v938
        %v1325 = vunpack.c.h.b16 %v938
        %v1326 = vunpack.c.l.b16 %v939
        %v1327 = vunpack.c.h.b16 %v939
        %v1328 = vunpack.c.l.b16 %v940
        %v1329 = vunpack.c.h.b16 %v940
        %v1330 = vunpack.c.l.b16 %v941
        %v1331 = vunpack.c.h.b16 %v941
        %v1332 = vunpack.c.l.b16 %v942
        %v1333 = vunpack.c.h.b16 %v942
        %v1334 = vunpack.c.l.b16 %v943
        %v1335 = vunpack.c.h.b16 %v943
        %v1336 = vunpack.c.l.b16 %v944
        %v1337 = vunpack.c.h.b16 %v944
        %v1338 = vunpack.c.l.b16 %v945
        %v1339 = vunpack.c.h.b16 %v945
        %v1340 = vunpack.c.l.b16 %v946
        %v1341 = vunpack.c.h.b16 %v946
        %v1342 = vunpack.c.l.b16 %v947
        %v1343 = vunpack.c.h.b16 %v947
        %v1344 = vunpack.c.l.b16 %v948
        %v1345 = vunpack.c.h.b16 %v948
        %v1346 = vunpack.c.l.b16 %v949
        %v1347 = vunpack.c.h.b16 %v949
        %v1348 = vunpack.c.l.b16 %v950
        %v1349 = vunpack.c.h.b16 %v950
        %v1350 = vunpack.c.l.b16 %v951
        %v1351 = vunpack.c.h.b16 %v951
        %v1352 = vunpack.c.l.b16 %v952
        %v1353 = vunpack.c.h.b16 %v952
        %v1354 = vunpack.c.l.b16 %v953
        %v1355 = vunpack.c.h.b16 %v953
        %v1356 = vunpack.c.l.b16 %v954
        %v1357 = vunpack.c.h.b16 %v954
        %v1358 = vunpack.c.l.b16 %v955
        %v1359 = vunpack.c.h.b16 %v955
        %v1360 = vunpack.c.l.b16 %v956
        %v1361 = vunpack.c.h.b16 %v956
        %v1362 = vunpack.c.l.b16 %v957
        %v1363 = vunpack.c.h.b16 %v957
        %v1364 = vunpack.c.l.b16 %v958
        %v1365 = vunpack.c.h.b16 %v958
        %v1366 = vunpack.c.l.b16 %v959
        %v1367 = vunpack.c.h.b16 %v959
        %v1368 = vunpack.c.l.b16 %v960
        %v1369 = vunpack.c.h.b16 %v960
        %v1370 = vunpack.c.l.b16 %v961
        %v1371 = vunpack.c.h.b16 %v961
        %v1372 = vunpack.c.l.b16 %v962
        %v1373 = vunpack.c.h.b16 %v962
        %v1374 = vunpack.c.l.b16 %v963
        %v1375 = vunpack.c.h.b16 %v963
        %v1376 = vunpack.c.l.b16 %v964
        %v1377 = vunpack.c.h.b16 %v964
        %v1378 = vunpack.c.l.b16 %v965
        %v1379 = vunpack.c.h.b16 %v965
        %v1380 = vunpack.c.l.b16 %v966
        %v1381 = vunpack.c.h.b16 %v966
        %v1382 = vunpack.c.l.b16 %v967
        %v1383 = vunpack.c.h.b16 %v967
        %v1384 = vunpack.c.l.b16 %v968
        %v1385 = vunpack.c.h.b16 %v968
        %v1386 = vunpack.c.l.b16 %v969
        %v1387 = vunpack.c.h.b16 %v969
        %v1388 = vunpack.c.l.b16 %v970
        %v1389 = vunpack.c.h.b16 %v970
        %v1390 = vunpack.c.l.b16 %v971
        %v1391 = vunpack.c.h.b16 %v971
        %v1392 = vunpack.c.l.b16 %v972
        %v1393 = vunpack.c.h.b16 %v972
        %v1394 = vunpack.c.l.b16 %v973
        %v1395 = vunpack.c.h.b16 %v973
        %v1396 = vunpack.c.l.b16 %v974
        %v1397 = vunpack.c.h.b16 %v974
        %v1398 = vpack.c.b16 %v1146, %v1142
        %v1399 = vpack.c.b16 %v1147, %v1143
        %v1400 = vpack.c.b16 %v1148, %v1144
        %v1401 = vpack.c.b16 %v1149, %v1145
        %v1402 = vpack.c.b16 %v1154, %v1150
        %v1403 = vpack.c.b16 %v1155, %v1151
        %v1404 = vpack.c.b16 %v1156, %v1152
        %v1405 = vpack.c.b16 %v1157, %v1153
        %v1406 = vpack.c.b16 %v1162, %v1158
        %v1407 = vpack.c.b16 %v1163, %v1159
        %v1408 = vpack.c.b16 %v1164, %v1160
        %v1409 = vpack.c.b16 %v1165, %v1161
        %v1410 = vpack.c.b16 %v1170, %v1166
        %v1411 = vpack.c.b16 %v1171, %v1167
        %v1412 = vpack.c.b16 %v1172, %v1168
        %v1413 = vpack.c.b16 %v1173, %v1169
        %v1414 = vpack.c.b16 %v1178, %v1174
        %v1415 = vpack.c.b16 %v1179, %v1175
        %v1416 = vpack.c.b16 %v1180, %v1176
        %v1417 = vpack.c.b16 %v1181, %v1177
        %v1418 = vpack.c.b16 %v1186, %v1182
        %v1419 = vpack.c.b16 %v1187, %v1183
        %v1420 = vpack.c.b16 %v1188, %v1184
        %v1421 = vpack.c.b16 %v1189, %v1185
        %v1422 = vpack.c.b16 %v1194, %v1190
        %v1423 = vpack.c.b16 %v1195, %v1191
        %v1424 = vpack.c.b16 %v1196, %v1192
        %v1425 = vpack.c.b16 %v1197, %v1193
        %v1426 = vpack.c.b16 %v1202, %v1198
        %v1427 = vpack.c.b16 %v1203, %v1199
        %v1428 = vpack.c.b16 %v1204, %v1200
        %v1429 = vpack.c.b16 %v1205, %v1201
        %v1430 = vpack.c.b16 %v1210, %v1206
        %v1431 = vpack.c.b16 %v1211, %v1207
        %v1432 = vpack.c.b16 %v1212, %v1208
        %v1433 = vpack.c.b16 %v1213, %v1209
        %v1434 = vpack.c.b16 %v1218, %v1214
        %v1435 = vpack.c.b16 %v1219, %v1215
        %v1436 = vpack.c.b16 %v1220, %v1216
        %v1437 = vpack.c.b16 %v1221, %v1217
        %v1438 = vpack.c.b16 %v1226, %v1222
        %v1439 = vpack.c.b16 %v1227, %v1223
        %v1440 = vpack.c.b16 %v1228, %v1224
        %v1441 = vpack.c.b16 %v1229, %v1225
        %v1442 = vpack.c.b16 %v1234, %v1230
        %v1443 = vpack.c.b16 %v1235, %v1231
        %v1444 = vpack.c.b16 %v1236, %v1232
        %v1445 = vpack.c.b16 %v1237, %v1233
        %v1446 = vpack.c.b16 %v1242, %v1238
        %v1447 = vpack.c.b16 %v1243, %v1239
        %v1448 = vpack.c.b16 %v1244, %v1240
        %v1449 = vpack.c.b16 %v1245, %v1241
        %v1450 = vpack.c.b16 %v1250, %v1246
        %v1451 = vpack.c.b16 %v1251, %v1247
        %v1452 = vpack.c.b16 %v1252, %v1248
        %v1453 = vpack.c.b16 %v1253, %v1249
        %v1454 = vpack.c.b16 %v1258, %v1254
        %v1455 = vpack.c.b16 %v1259, %v1255
        %v1456 = vpack.c.b16 %v1260, %v1256
        %v1457 = vpack.c.b16 %v1261, %v1257
        %v1458 = vpack.c.b16 %v1266, %v1262
        %v1459 = vpack.c.b16 %v1267, %v1263
        %v1460 = vpack.c.b16 %v1268, %v1264
        %v1461 = vpack.c.b16 %v1269, %v1265
        %v1462 = vpack.c.b16 %v1274, %v1270
        %v1463 = vpack.c.b16 %v1275, %v1271
        %v1464 = vpack.c.b16 %v1276, %v1272
        %v1465 = vpack.c.b16 %v1277, %v1273
        %v1466 = vpack.c.b16 %v1282, %v1278
        %v1467 = vpack.c.b16 %v1283, %v1279
        %v1468 = vpack.c.b16 %v1284, %v1280
        %v1469 = vpack.c.b16 %v1285, %v1281
        %v1470 = vpack.c.b16 %v1290, %v1286
        %v1471 = vpack.c.b16 %v1291, %v1287
        %v1472 = vpack.c.b16 %v1292, %v1288
        %v1473 = vpack.c.b16 %v1293, %v1289
        %v1474 = vpack.c.b16 %v1298, %v1294
        %v1475 = vpack.c.b16 %v1299, %v1295
        %v1476 = vpack.c.b16 %v1300, %v1296
        %v1477 = vpack.c.b16 %v1301, %v1297
        %v1478 = vpack.c.b16 %v1306, %v1302
        %v1479 = vpack.c.b16 %v1307, %v1303
        %v1480 = vpack.c.b16 %v1308, %v1304
        %v1481 = vpack.c.b16 %v1309, %v1305
        %v1482 = vpack.c.b16 %v1314, %v1310
        %v1483 = vpack.c.b16 %v1315, %v1311
        %v1484 = vpack.c.b16 %v1316, %v1312
        %v1485 = vpack.c.b16 %v1317, %v1313
        %v1486 = vpack.c.b16 %v1322, %v1318
        %v1487 = vpack.c.b16 %v1323, %v1319
        %v1488 = vpack.c.b16 %v1324, %v1320
        %v1489 = vpack.c.b16 %v1325, %v1321
        %v1490 = vpack.c.b16 %v1330, %v1326
        %v1491 = vpack.c.b16 %v1331, %v1327
        %v1492 = vpack.c.b16 %v1332, %v1328
        %v1493 = vpack.c.b16 %v1333, %v1329
        %v1494 = vpack.c.b16 %v1338, %v1334
        %v1495 = vpack.c.b16 %v1339, %v1335
        %v1496 = vpack.c.b16 %v1340, %v1336
        %v1497 = vpack.c.b16 %v1341, %v1337
        %v1498 = vpack.c.b16 %v1346, %v1342
        %v1499 = vpack.c.b16 %v1347, %v1343
        %v1500 = vpack.c.b16 %v1348, %v1344
        %v1501 = vpack.c.b16 %v1349, %v1345
        %v1502 = vpack.c.b16 %v1354, %v1350
        %v1503 = vpack.c.b16 %v1355, %v1351
        %v1504 = vpack.c.b16 %v1356, %v1352
        %v1505 = vpack.c.b16 %v1357, %v1353
        %v1506 = vpack.c.b16 %v1362, %v1358
        %v1507 = vpack.c.b16 %v1363, %v1359
        %v1508 = vpack.c.b16 %v1364, %v1360
        %v1509 = vpack.c.b16 %v1365, %v1361
        %v1510 = vpack.c.b16 %v1370, %v1366
        %v1511 = vpack.c.b16 %v1371, %v1367
        %v1512 = vpack.c.b16 %v1372, %v1368
        %v1513 = vpack.c.b16 %v1373, %v1369
        %v1514 = vpack.c.b16 %v1378, %v1374
        %v1515 = vpack.c.b16 %v1379, %v1375
        %v1516 = vpack.c.b16 %v1380, %v1376
        %v1517 = vpack.c.b16 %v1381, %v1377
        %v1518 = vpack.c.b16 %v1386, %v1382
        %v1519 = vpack.c.b16 %v1387, %v1383
        %v1520 = vpack.c.b16 %v1388, %v1384
        %v1521 = vpack.c.b16 %v1389, %v1385
        %v1522 = vpack.c.b16 %v1394, %v1390
        %v1523 = vpack.c.b16 %v1395, %v1391
        %v1524 = vpack.c.b16 %v1396, %v1392
        %v1525 = vpack.c.b16 %v1397, %v1393
        %1654 = vmatprep.subr.bf16.mxu0 0
        %1655 = vmatpush1.bf16.msra.mxu0 %v975
        %1656 = vmatprep.subr.bf16.mxu0 0
        %1657 = vmatpush1.bf16.msra.mxu0 %v976
        %1658 = vmatprep.subr.bf16.mxu0 0
        %1659 = vmatpush1.bf16.msra.mxu0 %v977
        %1660 = vmatprep.subr.bf16.mxu0 0
        %1661 = vmatpush1.bf16.msra.mxu0 %v978
        %1662 = vmatprep.subr.bf16.mxu0 0
        %1663 = vmatpush1.bf16.msra.mxu0 %v979
        %1664 = vmatprep.subr.bf16.mxu0 0
        %1665 = vmatpush1.bf16.msra.mxu0 %v980
        %1666 = vmatprep.subr.bf16.mxu0 0
        %1667 = vmatpush1.bf16.msra.mxu0 %v981
        %1668 = vmatprep.subr.bf16.mxu0 0
        %1669 = vmatpush1.bf16.msra.mxu0 %v982
        %1670 = vmatprep.subr.bf16.mxu0 0
        %1671 = vmatpush1.bf16.msra.mxu0 %v983
        %1672 = vmatprep.subr.bf16.mxu0 0
        %1673 = vmatpush1.bf16.msra.mxu0 %v984
        %1674 = vmatprep.subr.bf16.mxu0 0
        %1675 = vmatpush1.bf16.msra.mxu0 %v985
        %1676 = vmatprep.subr.bf16.mxu0 0
        %1677 = vmatpush1.bf16.msra.mxu0 %v986
        %1678 = vmatprep.subr.bf16.mxu0 0
        %1679 = vmatpush1.bf16.msra.mxu0 %v987
        %1680 = vmatprep.subr.bf16.mxu0 0
        %1681 = vmatpush1.bf16.msra.mxu0 %v988
        %1682 = vmatprep.subr.bf16.mxu0 0
        %1683 = vmatpush1.bf16.msra.mxu0 %v989
        %1684 = vmatprep.subr.bf16.mxu0 0
        %1685 = vmatpush1.bf16.msra.mxu0 %v990
        %1686 = vmatprep.mubr.bf16.mxu0 %v1399
        %1687 = vmatmul.mubr.bf16.gmra.mrb[0].mxu0 %v1398
        %v1688 = vpop.f32.mrb[0].mxu0
        %v1689 = vadd.f32 %v1012, %v1688
        %v1690 = vpop.f32.mrb[0].mxu0
        %v1691 = vpop.f32.mrb[0].mxu0
        %v1692 = vadd.f32 %v1012, %v1691
        %v1693 = vpop.f32.mrb[0].mxu0
        %1694 = vmatprep.mubr.bf16.mxu0 %v1403
        %1695 = vmatmul.mubr.bf16.gmra.mrb[0].mxu0 %v1402
        %v1696 = vpop.f32.mrb[0].mxu0
        %v1697 = vadd.f32 %v1012, %v1696
        %v1698 = vpop.f32.mrb[0].mxu0
        %v1699 = vpop.f32.mrb[0].mxu0
        %v1700 = vadd.f32 %v1012, %v1699
        %v1701 = vpop.f32.mrb[0].mxu0
        %1702 = vmatprep.mubr.bf16.mxu0 %v1407
        %1703 = vmatmul.mubr.bf16.gmra.mrb[0].mxu0 %v1406
        %v1704 = vpop.f32.mrb[0].mxu0
        %v1705 = vadd.f32 %v1012, %v1704
        %v1706 = vpop.f32.mrb[0].mxu0
        %v1707 = vpop.f32.mrb[0].mxu0
        %v1708 = vadd.f32 %v1012, %v1707
        %v1709 = vpop.f32.mrb[0].mxu0
        %1710 = vmatprep.mubr.bf16.mxu0 %v1411
        %1711 = vmatmul.mubr.bf16.gmra.mrb[0].mxu0 %v1410
        %v1712 = vpop.f32.mrb[0].mxu0
        %v1713 = vadd.f32 %v1012, %v1712
        %v1714 = vpop.f32.mrb[0].mxu0
        %v1715 = vpop.f32.mrb[0].mxu0
        %v1716 = vadd.f32 %v1012, %v1715
        %v1717 = vpop.f32.mrb[0].mxu0
        %1718 = vmatprep.mubr.bf16.mxu0 %v1415
        %1719 = vmatmul.mubr.bf16.gmra.mrb[0].mxu0 %v1414
        %v1720 = vpop.f32.mrb[0].mxu0
        %v1721 = vadd.f32 %v1012, %v1720
        %v1722 = vpop.f32.mrb[0].mxu0
        %v1723 = vpop.f32.mrb[0].mxu0
        %v1724 = vadd.f32 %v1012, %v1723
        %v1725 = vpop.f32.mrb[0].mxu0
        %1726 = vmatprep.mubr.bf16.mxu0 %v1419
        %1727 = vmatmul.mubr.bf16.gmra.mrb[0].mxu0 %v1418
        %v1728 = vpop.f32.mrb[0].mxu0
        %v1729 = vadd.f32 %v1012, %v1728
        %v1730 = vpop.f32.mrb[0].mxu0
        %v1731 = vpop.f32.mrb[0].mxu0
        %v1732 = vadd.f32 %v1012, %v1731
        %v1733 = vpop.f32.mrb[0].mxu0
        %1734 = vmatprep.mubr.bf16.mxu0 %v1423
        %1735 = vmatmul.mubr.bf16.gmra.mrb[0].mxu0 %v1422
        %v1736 = vpop.f32.mrb[0].mxu0
        %v1737 = vadd.f32 %v1012, %v1736
        %v1738 = vpop.f32.mrb[0].mxu0
        %v1739 = vpop.f32.mrb[0].mxu0
        %v1740 = vadd.f32 %v1012, %v1739
        %v1741 = vpop.f32.mrb[0].mxu0
        %1742 = vmatprep.mubr.bf16.mxu0 %v1427
        %1743 = vmatmul.mubr.bf16.gmra.mrb[0].mxu0 %v1426
        %v1744 = vpop.f32.mrb[0].mxu0
        %v1745 = vadd.f32 %v1012, %v1744
        %v1746 = vpop.f32.mrb[0].mxu0
        %v1747 = vpop.f32.mrb[0].mxu0
        %v1748 = vadd.f32 %v1012, %v1747
        %v1749 = vpop.f32.mrb[0].mxu0
        %1750 = vmatprep.mubr.bf16.mxu0 %v1431
        %1751 = vmatmul.mubr.bf16.gmra.mrb[0].mxu0 %v1430
        %v1752 = vpop.f32.mrb[0].mxu0
        %v1753 = vadd.f32 %v1012, %v1752
        %v1754 = vpop.f32.mrb[0].mxu0
        %v1755 = vpop.f32.mrb[0].mxu0
        %v1756 = vadd.f32 %v1012, %v1755
        %v1757 = vpop.f32.mrb[0].mxu0
        %1758 = vmatprep.mubr.bf16.mxu0 %v1435
        %1759 = vmatmul.mubr.bf16.gmra.mrb[0].mxu0 %v1434
        %v1760 = vpop.f32.mrb[0].mxu0
        %v1761 = vadd.f32 %v1012, %v1760
        %v1762 = vpop.f32.mrb[0].mxu0
        %v1763 = vpop.f32.mrb[0].mxu0
        %v1764 = vadd.f32 %v1012, %v1763
        %v1765 = vpop.f32.mrb[0].mxu0
        %1766 = vmatprep.mubr.bf16.mxu0 %v1439
        %1767 = vmatmul.mubr.bf16.gmra.mrb[0].mxu0 %v1438
        %v1768 = vpop.f32.mrb[0].mxu0
        %v1769 = vadd.f32 %v1012, %v1768
        %v1770 = vpop.f32.mrb[0].mxu0
        %v1771 = vpop.f32.mrb[0].mxu0
        %v1772 = vadd.f32 %v1012, %v1771
        %v1773 = vpop.f32.mrb[0].mxu0
        %1774 = vmatprep.mubr.bf16.mxu0 %v1443
        %1775 = vmatmul.mubr.bf16.gmra.mrb[0].mxu0 %v1442
        %v1776 = vpop.f32.mrb[0].mxu0
        %v1777 = vadd.f32 %v1012, %v1776
        %v1778 = vpop.f32.mrb[0].mxu0
        %v1779 = vpop.f32.mrb[0].mxu0
        %v1780 = vadd.f32 %v1012, %v1779
        %v1781 = vpop.f32.mrb[0].mxu0
        %1782 = vmatprep.mubr.bf16.mxu0 %v1447
        %1783 = vmatmul.mubr.bf16.gmra.mrb[0].mxu0 %v1446
        %v1784 = vpop.f32.mrb[0].mxu0
        %v1785 = vadd.f32 %v1012, %v1784
        %v1786 = vpop.f32.mrb[0].mxu0
        %v1787 = vpop.f32.mrb[0].mxu0
        %v1788 = vadd.f32 %v1012, %v1787
        %v1789 = vpop.f32.mrb[0].mxu0
        %1790 = vmatprep.mubr.bf16.mxu0 %v1451
        %1791 = vmatmul.mubr.bf16.gmra.mrb[0].mxu0 %v1450
        %v1792 = vpop.f32.mrb[0].mxu0
        %v1793 = vadd.f32 %v1012, %v1792
        %v1794 = vpop.f32.mrb[0].mxu0
        %v1795 = vpop.f32.mrb[0].mxu0
        %v1796 = vadd.f32 %v1012, %v1795
        %v1797 = vpop.f32.mrb[0].mxu0
        %1798 = vmatprep.mubr.bf16.mxu0 %v1455
        %1799 = vmatmul.mubr.bf16.gmra.mrb[0].mxu0 %v1454
        %v1800 = vpop.f32.mrb[0].mxu0
        %v1801 = vadd.f32 %v1012, %v1800
        %v1802 = vpop.f32.mrb[0].mxu0
        %v1803 = vpop.f32.mrb[0].mxu0
        %v1804 = vadd.f32 %v1012, %v1803
        %v1805 = vpop.f32.mrb[0].mxu0
        %1806 = vmatprep.mubr.bf16.mxu0 %v1459
        %1807 = vmatmul.mubr.bf16.gmra.mrb[0].mxu0 %v1458
        %v1808 = vpop.f32.mrb[0].mxu0
        %v1809 = vadd.f32 %v1012, %v1808
        %v1810 = vpop.f32.mrb[0].mxu0
        %v1811 = vpop.f32.mrb[0].mxu0
        %v1812 = vadd.f32 %v1012, %v1811
        %v1813 = vpop.f32.mrb[0].mxu0
        %1814 = vmatprep.mubr.bf16.mxu0 %v1463
        %1815 = vmatmul.mubr.bf16.gmra.mrb[0].mxu0 %v1462
        %v1816 = vpop.f32.mrb[0].mxu0
        %v1817 = vadd.f32 %v1012, %v1816
        %v1818 = vpop.f32.mrb[0].mxu0
        %v1819 = vpop.f32.mrb[0].mxu0
        %v1820 = vadd.f32 %v1012, %v1819
        %v1821 = vpop.f32.mrb[0].mxu0
        %1822 = vmatprep.mubr.bf16.mxu0 %v1467
        %1823 = vmatmul.mubr.bf16.gmra.mrb[0].mxu0 %v1466
        %v1824 = vpop.f32.mrb[0].mxu0
        %v1825 = vadd.f32 %v1012, %v1824
        %v1826 = vpop.f32.mrb[0].mxu0
        %v1827 = vpop.f32.mrb[0].mxu0
        %v1828 = vadd.f32 %v1012, %v1827
        %v1829 = vpop.f32.mrb[0].mxu0
        %1830 = vmatprep.mubr.bf16.mxu0 %v1471
        %1831 = vmatmul.mubr.bf16.gmra.mrb[0].mxu0 %v1470
        %v1832 = vpop.f32.mrb[0].mxu0
        %v1833 = vadd.f32 %v1012, %v1832
        %v1834 = vpop.f32.mrb[0].mxu0
        %v1835 = vpop.f32.mrb[0].mxu0
        %v1836 = vadd.f32 %v1012, %v1835
        %v1837 = vpop.f32.mrb[0].mxu0
        %1838 = vmatprep.mubr.bf16.mxu0 %v1475
        %1839 = vmatmul.mubr.bf16.gmra.mrb[0].mxu0 %v1474
        %v1840 = vpop.f32.mrb[0].mxu0
        %v1841 = vadd.f32 %v1012, %v1840
        %v1842 = vpop.f32.mrb[0].mxu0
        %v1843 = vpop.f32.mrb[0].mxu0
        %v1844 = vadd.f32 %v1012, %v1843
        %v1845 = vpop.f32.mrb[0].mxu0
        %1846 = vmatprep.mubr.bf16.mxu0 %v1479
        %1847 = vmatmul.mubr.bf16.gmra.mrb[0].mxu0 %v1478
        %v1848 = vpop.f32.mrb[0].mxu0
        %v1849 = vadd.f32 %v1012, %v1848
        %v1850 = vpop.f32.mrb[0].mxu0
        %v1851 = vpop.f32.mrb[0].mxu0
        %v1852 = vadd.f32 %v1012, %v1851
        %v1853 = vpop.f32.mrb[0].mxu0
        %1854 = vmatprep.mubr.bf16.mxu0 %v1483
        %1855 = vmatmul.mubr.bf16.gmra.mrb[0].mxu0 %v1482
        %v1856 = vpop.f32.mrb[0].mxu0
        %v1857 = vadd.f32 %v1012, %v1856
        %v1858 = vpop.f32.mrb[0].mxu0
        %v1859 = vpop.f32.mrb[0].mxu0
        %v1860 = vadd.f32 %v1012, %v1859
        %v1861 = vpop.f32.mrb[0].mxu0
        %1862 = vmatprep.mubr.bf16.mxu0 %v1487
        %1863 = vmatmul.mubr.bf16.gmra.mrb[0].mxu0 %v1486
        %v1864 = vpop.f32.mrb[0].mxu0
        %v1865 = vadd.f32 %v1012, %v1864
        %v1866 = vpop.f32.mrb[0].mxu0
        %v1867 = vpop.f32.mrb[0].mxu0
        %v1868 = vadd.f32 %v1012, %v1867
        %v1869 = vpop.f32.mrb[0].mxu0
        %1870 = vmatprep.mubr.bf16.mxu0 %v1491
        %1871 = vmatmul.mubr.bf16.gmra.mrb[0].mxu0 %v1490
        %v1872 = vpop.f32.mrb[0].mxu0
        %v1873 = vadd.f32 %v1012, %v1872
        %v1874 = vpop.f32.mrb[0].mxu0
        %v1875 = vpop.f32.mrb[0].mxu0
        %v1876 = vadd.f32 %v1012, %v1875
        %v1877 = vpop.f32.mrb[0].mxu0
        %1878 = vmatprep.mubr.bf16.mxu0 %v1495
        %1879 = vmatmul.mubr.bf16.gmra.mrb[0].mxu0 %v1494
        %v1880 = vpop.f32.mrb[0].mxu0
        %v1881 = vadd.f32 %v1012, %v1880
        %v1882 = vpop.f32.mrb[0].mxu0
        %v1883 = vpop.f32.mrb[0].mxu0
        %v1884 = vadd.f32 %v1012, %v1883
        %v1885 = vpop.f32.mrb[0].mxu0
        %1886 = vmatprep.mubr.bf16.mxu0 %v1499
        %1887 = vmatmul.mubr.bf16.gmra.mrb[0].mxu0 %v1498
        %v1888 = vpop.f32.mrb[0].mxu0
        %v1889 = vadd.f32 %v1012, %v1888
        %v1890 = vpop.f32.mrb[0].mxu0
        %v1891 = vpop.f32.mrb[0].mxu0
        %v1892 = vadd.f32 %v1012, %v1891
        %v1893 = vpop.f32.mrb[0].mxu0
        %1894 = vmatprep.mubr.bf16.mxu0 %v1503
        %1895 = vmatmul.mubr.bf16.gmra.mrb[0].mxu0 %v1502
        %v1896 = vpop.f32.mrb[0].mxu0
        %v1897 = vadd.f32 %v1012, %v1896
        %v1898 = vpop.f32.mrb[0].mxu0
        %v1899 = vpop.f32.mrb[0].mxu0
        %v1900 = vadd.f32 %v1012, %v1899
        %v1901 = vpop.f32.mrb[0].mxu0
        %1902 = vmatprep.mubr.bf16.mxu0 %v1507
        %1903 = vmatmul.mubr.bf16.gmra.mrb[0].mxu0 %v1506
        %v1904 = vpop.f32.mrb[0].mxu0
        %v1905 = vadd.f32 %v1012, %v1904
        %v1906 = vpop.f32.mrb[0].mxu0
        %v1907 = vpop.f32.mrb[0].mxu0
        %v1908 = vadd.f32 %v1012, %v1907
        %v1909 = vpop.f32.mrb[0].mxu0
        %1910 = vmatprep.mubr.bf16.mxu0 %v1511
        %1911 = vmatmul.mubr.bf16.gmra.mrb[0].mxu0 %v1510
        %v1912 = vpop.f32.mrb[0].mxu0
        %v1913 = vadd.f32 %v1012, %v1912
        %v1914 = vpop.f32.mrb[0].mxu0
        %v1915 = vpop.f32.mrb[0].mxu0
        %v1916 = vadd.f32 %v1012, %v1915
        %v1917 = vpop.f32.mrb[0].mxu0
        %1918 = vmatprep.mubr.bf16.mxu0 %v1515
        %1919 = vmatmul.mubr.bf16.gmra.mrb[0].mxu0 %v1514
        %v1920 = vpop.f32.mrb[0].mxu0
        %v1921 = vadd.f32 %v1012, %v1920
        %v1922 = vpop.f32.mrb[0].mxu0
        %v1923 = vpop.f32.mrb[0].mxu0
        %v1924 = vadd.f32 %v1012, %v1923
        %v1925 = vpop.f32.mrb[0].mxu0
        %1926 = vmatprep.mubr.bf16.mxu0 %v1519
        %1927 = vmatmul.mubr.bf16.gmra.mrb[0].mxu0 %v1518
        %v1928 = vpop.f32.mrb[0].mxu0
        %v1929 = vadd.f32 %v1012, %v1928
        %v1930 = vpop.f32.mrb[0].mxu0
        %v1931 = vpop.f32.mrb[0].mxu0
        %v1932 = vadd.f32 %v1012, %v1931
        %v1933 = vpop.f32.mrb[0].mxu0
        %1934 = vmatprep.mubr.bf16.mxu0 %v1523
        %1935 = vmatmul.mubr.bf16.gmra.mrb[0].mxu0 %v1522
        %v1936 = vpop.f32.mrb[0].mxu0
        %v1937 = vadd.f32 %v1012, %v1936
        %v1938 = vpop.f32.mrb[0].mxu0
        %v1939 = vpop.f32.mrb[0].mxu0
        %v1940 = vadd.f32 %v1012, %v1939
        %v1941 = vpop.f32.mrb[0].mxu0
        %1942 = vdwg.mxu0
        %1943 = vmatprep.subr.bf16.mxu0 0
        %1944 = vmatpush1.bf16.msra.mxu0 %v991
        %1945 = vmatprep.subr.bf16.mxu0 0
        %1946 = vmatpush1.bf16.msra.mxu0 %v992
        %1947 = vmatprep.subr.bf16.mxu0 0
        %1948 = vmatpush1.bf16.msra.mxu0 %v993
        %1949 = vmatprep.subr.bf16.mxu0 0
        %1950 = vmatpush1.bf16.msra.mxu0 %v994
        %1951 = vmatprep.subr.bf16.mxu0 0
        %1952 = vmatpush1.bf16.msra.mxu0 %v995
        %1953 = vmatprep.subr.bf16.mxu0 0
        %1954 = vmatpush1.bf16.msra.mxu0 %v996
        %1955 = vmatprep.subr.bf16.mxu0 0
        %1956 = vmatpush1.bf16.msra.mxu0 %v997
        %1957 = vmatprep.subr.bf16.mxu0 0
        %1958 = vmatpush1.bf16.msra.mxu0 %v998
        %1959 = vmatprep.subr.bf16.mxu0 0
        %1960 = vmatpush1.bf16.msra.mxu0 %v999
        %1961 = vmatprep.subr.bf16.mxu0 0
        %1962 = vmatpush1.bf16.msra.mxu0 %v1000
        %1963 = vmatprep.subr.bf16.mxu0 0
        %1964 = vmatpush1.bf16.msra.mxu0 %v1001
        %1965 = vmatprep.subr.bf16.mxu0 0
        %1966 = vmatpush1.bf16.msra.mxu0 %v1002
        %1967 = vmatprep.subr.bf16.mxu0 0
        %1968 = vmatpush1.bf16.msra.mxu0 %v1003
        %1969 = vmatprep.subr.bf16.mxu0 0
        %1970 = vmatpush1.bf16.msra.mxu0 %v1004
        %1971 = vmatprep.subr.bf16.mxu0 0
        %1972 = vmatpush1.bf16.msra.mxu0 %v1005
        %1973 = vmatprep.subr.bf16.mxu0 0
        %1974 = vmatpush1.bf16.msra.mxu0 %v1006
        %1975 = vmatprep.mubr.bf16.mxu0 %v1401
        %1976 = vmatmul.mubr.bf16.gmra.mrb[0].mxu0 %v1400
        %v1977 = vpop.f32.mrb[0].mxu0
        %v1978 = vadd.f32 %v1689, %v1977
        %v1979 = vpop.f32.mrb[0].mxu0
        %v1980 = vpop.f32.mrb[0].mxu0
        %v1981 = vadd.f32 %v1692, %v1980
        %v1982 = vpop.f32.mrb[0].mxu0
        %1983 = vmatprep.mubr.bf16.mxu0 %v1405
        %1984 = vmatmul.mubr.bf16.gmra.mrb[0].mxu0 %v1404
        %v1985 = vpop.f32.mrb[0].mxu0
        %v1986 = vadd.f32 %v1697, %v1985
        %v1987 = vpop.f32.mrb[0].mxu0
        %v1988 = vpop.f32.mrb[0].mxu0
        %v1989 = vadd.f32 %v1700, %v1988
        %v1990 = vpop.f32.mrb[0].mxu0
        %1991 = vmatprep.mubr.bf16.mxu0 %v1409
        %1992 = vmatmul.mubr.bf16.gmra.mrb[0].mxu0 %v1408
        %v1993 = vpop.f32.mrb[0].mxu0
        %v1994 = vadd.f32 %v1705, %v1993
        %v1995 = vpop.f32.mrb[0].mxu0
        %v1996 = vpop.f32.mrb[0].mxu0
        %v1997 = vadd.f32 %v1708, %v1996
        %v1998 = vpop.f32.mrb[0].mxu0
        %1999 = vmatprep.mubr.bf16.mxu0 %v1413
        %2000 = vmatmul.mubr.bf16.gmra.mrb[0].mxu0 %v1412
        %v2001 = vpop.f32.mrb[0].mxu0
        %v2002 = vadd.f32 %v1713, %v2001
        %v2003 = vpop.f32.mrb[0].mxu0
        %v2004 = vpop.f32.mrb[0].mxu0
        %v2005 = vadd.f32 %v1716, %v2004
        %v2006 = vpop.f32.mrb[0].mxu0
        %2007 = vmatprep.mubr.bf16.mxu0 %v1417
        %2008 = vmatmul.mubr.bf16.gmra.mrb[0].mxu0 %v1416
        %v2009 = vpop.f32.mrb[0].mxu0
        %v2010 = vadd.f32 %v1721, %v2009
        %v2011 = vpop.f32.mrb[0].mxu0
        %v2012 = vpop.f32.mrb[0].mxu0
        %v2013 = vadd.f32 %v1724, %v2012
        %v2014 = vpop.f32.mrb[0].mxu0
        %2015 = vmatprep.mubr.bf16.mxu0 %v1421
        %2016 = vmatmul.mubr.bf16.gmra.mrb[0].mxu0 %v1420
        %v2017 = vpop.f32.mrb[0].mxu0
        %v2018 = vadd.f32 %v1729, %v2017
        %v2019 = vpop.f32.mrb[0].mxu0
        %v2020 = vpop.f32.mrb[0].mxu0
        %v2021 = vadd.f32 %v1732, %v2020
        %v2022 = vpop.f32.mrb[0].mxu0
        %2023 = vmatprep.mubr.bf16.mxu0 %v1425
        %2024 = vmatmul.mubr.bf16.gmra.mrb[0].mxu0 %v1424
        %v2025 = vpop.f32.mrb[0].mxu0
        %v2026 = vadd.f32 %v1737, %v2025
        %v2027 = vpop.f32.mrb[0].mxu0
        %v2028 = vpop.f32.mrb[0].mxu0
        %v2029 = vadd.f32 %v1740, %v2028
        %v2030 = vpop.f32.mrb[0].mxu0
        %2031 = vmatprep.mubr.bf16.mxu0 %v1429
        %2032 = vmatmul.mubr.bf16.gmra.mrb[0].mxu0 %v1428
        %v2033 = vpop.f32.mrb[0].mxu0
        %v2034 = vadd.f32 %v1745, %v2033
        %v2035 = vpop.f32.mrb[0].mxu0
        %v2036 = vpop.f32.mrb[0].mxu0
        %v2037 = vadd.f32 %v1748, %v2036
        %v2038 = vpop.f32.mrb[0].mxu0
        %2039 = vmatprep.mubr.bf16.mxu0 %v1433
        %2040 = vmatmul.mubr.bf16.gmra.mrb[0].mxu0 %v1432
        %v2041 = vpop.f32.mrb[0].mxu0
        %v2042 = vadd.f32 %v1753, %v2041
        %v2043 = vpop.f32.mrb[0].mxu0
        %v2044 = vpop.f32.mrb[0].mxu0
        %v2045 = vadd.f32 %v1756, %v2044
        %v2046 = vpop.f32.mrb[0].mxu0
        %2047 = vmatprep.mubr.bf16.mxu0 %v1437
        %2048 = vmatmul.mubr.bf16.gmra.mrb[0].mxu0 %v1436
        %v2049 = vpop.f32.mrb[0].mxu0
        %v2050 = vadd.f32 %v1761, %v2049
        %v2051 = vpop.f32.mrb[0].mxu0
        %v2052 = vpop.f32.mrb[0].mxu0
        %v2053 = vadd.f32 %v1764, %v2052
        %v2054 = vpop.f32.mrb[0].mxu0
        %2055 = vmatprep.mubr.bf16.mxu0 %v1441
        %2056 = vmatmul.mubr.bf16.gmra.mrb[0].mxu0 %v1440
        %v2057 = vpop.f32.mrb[0].mxu0
        %v2058 = vadd.f32 %v1769, %v2057
        %v2059 = vpop.f32.mrb[0].mxu0
        %v2060 = vpop.f32.mrb[0].mxu0
        %v2061 = vadd.f32 %v1772, %v2060
        %v2062 = vpop.f32.mrb[0].mxu0
        %2063 = vmatprep.mubr.bf16.mxu0 %v1445
        %2064 = vmatmul.mubr.bf16.gmra.mrb[0].mxu0 %v1444
        %v2065 = vpop.f32.mrb[0].mxu0
        %v2066 = vadd.f32 %v1777, %v2065
        %v2067 = vpop.f32.mrb[0].mxu0
        %v2068 = vpop.f32.mrb[0].mxu0
        %v2069 = vadd.f32 %v1780, %v2068
        %v2070 = vpop.f32.mrb[0].mxu0
        %2071 = vmatprep.mubr.bf16.mxu0 %v1449
        %2072 = vmatmul.mubr.bf16.gmra.mrb[0].mxu0 %v1448
        %v2073 = vpop.f32.mrb[0].mxu0
        %v2074 = vadd.f32 %v1785, %v2073
        %v2075 = vpop.f32.mrb[0].mxu0
        %v2076 = vpop.f32.mrb[0].mxu0
        %v2077 = vadd.f32 %v1788, %v2076
        %v2078 = vpop.f32.mrb[0].mxu0
        %2079 = vmatprep.mubr.bf16.mxu0 %v1453
        %2080 = vmatmul.mubr.bf16.gmra.mrb[0].mxu0 %v1452
        %v2081 = vpop.f32.mrb[0].mxu0
        %v2082 = vadd.f32 %v1793, %v2081
        %v2083 = vpop.f32.mrb[0].mxu0
        %v2084 = vpop.f32.mrb[0].mxu0
        %v2085 = vadd.f32 %v1796, %v2084
        %v2086 = vpop.f32.mrb[0].mxu0
        %2087 = vmatprep.mubr.bf16.mxu0 %v1457
        %2088 = vmatmul.mubr.bf16.gmra.mrb[0].mxu0 %v1456
        %v2089 = vpop.f32.mrb[0].mxu0
        %v2090 = vadd.f32 %v1801, %v2089
        %v2091 = vpop.f32.mrb[0].mxu0
        %v2092 = vpop.f32.mrb[0].mxu0
        %v2093 = vadd.f32 %v1804, %v2092
        %v2094 = vpop.f32.mrb[0].mxu0
        %2095 = vmatprep.mubr.bf16.mxu0 %v1461
        %2096 = vmatmul.mubr.bf16.gmra.mrb[0].mxu0 %v1460
        %v2097 = vpop.f32.mrb[0].mxu0
        %v2098 = vadd.f32 %v1809, %v2097
        %v2099 = vpop.f32.mrb[0].mxu0
        %v2100 = vpop.f32.mrb[0].mxu0
        %v2101 = vadd.f32 %v1812, %v2100
        %v2102 = vpop.f32.mrb[0].mxu0
        %2103 = vmatprep.mubr.bf16.mxu0 %v1465
        %2104 = vmatmul.mubr.bf16.gmra.mrb[0].mxu0 %v1464
        %v2105 = vpop.f32.mrb[0].mxu0
        %v2106 = vadd.f32 %v1817, %v2105
        %v2107 = vpop.f32.mrb[0].mxu0
        %v2108 = vpop.f32.mrb[0].mxu0
        %v2109 = vadd.f32 %v1820, %v2108
        %v2110 = vpop.f32.mrb[0].mxu0
        %2111 = vmatprep.mubr.bf16.mxu0 %v1469
        %2112 = vmatmul.mubr.bf16.gmra.mrb[0].mxu0 %v1468
        %v2113 = vpop.f32.mrb[0].mxu0
        %v2114 = vadd.f32 %v1825, %v2113
        %v2115 = vpop.f32.mrb[0].mxu0
        %v2116 = vpop.f32.mrb[0].mxu0
        %v2117 = vadd.f32 %v1828, %v2116
        %v2118 = vpop.f32.mrb[0].mxu0
        %2119 = vmatprep.mubr.bf16.mxu0 %v1473
        %2120 = vmatmul.mubr.bf16.gmra.mrb[0].mxu0 %v1472
        %v2121 = vpop.f32.mrb[0].mxu0
        %v2122 = vadd.f32 %v1833, %v2121
        %v2123 = vpop.f32.mrb[0].mxu0
        %v2124 = vpop.f32.mrb[0].mxu0
        %v2125 = vadd.f32 %v1836, %v2124
        %v2126 = vpop.f32.mrb[0].mxu0
        %2127 = vmatprep.mubr.bf16.mxu0 %v1477
        %2128 = vmatmul.mubr.bf16.gmra.mrb[0].mxu0 %v1476
        %v2129 = vpop.f32.mrb[0].mxu0
        %v2130 = vadd.f32 %v1841, %v2129
        %v2131 = vpop.f32.mrb[0].mxu0
        %v2132 = vpop.f32.mrb[0].mxu0
        %v2133 = vadd.f32 %v1844, %v2132
        %v2134 = vpop.f32.mrb[0].mxu0
        %2135 = vmatprep.mubr.bf16.mxu0 %v1481
        %2136 = vmatmul.mubr.bf16.gmra.mrb[0].mxu0 %v1480
        %v2137 = vpop.f32.mrb[0].mxu0
        %v2138 = vadd.f32 %v1849, %v2137
        %v2139 = vpop.f32.mrb[0].mxu0
        %v2140 = vpop.f32.mrb[0].mxu0
        %v2141 = vadd.f32 %v1852, %v2140
        %v2142 = vpop.f32.mrb[0].mxu0
        %2143 = vmatprep.mubr.bf16.mxu0 %v1485
        %2144 = vmatmul.mubr.bf16.gmra.mrb[0].mxu0 %v1484
        %v2145 = vpop.f32.mrb[0].mxu0
        %v2146 = vadd.f32 %v1857, %v2145
        %v2147 = vpop.f32.mrb[0].mxu0
        %v2148 = vpop.f32.mrb[0].mxu0
        %v2149 = vadd.f32 %v1860, %v2148
        %v2150 = vpop.f32.mrb[0].mxu0
        %2151 = vmatprep.mubr.bf16.mxu0 %v1489
        %2152 = vmatmul.mubr.bf16.gmra.mrb[0].mxu0 %v1488
        %v2153 = vpop.f32.mrb[0].mxu0
        %v2154 = vadd.f32 %v1865, %v2153
        %v2155 = vpop.f32.mrb[0].mxu0
        %v2156 = vpop.f32.mrb[0].mxu0
        %v2157 = vadd.f32 %v1868, %v2156
        %v2158 = vpop.f32.mrb[0].mxu0
        %2159 = vmatprep.mubr.bf16.mxu0 %v1493
        %2160 = vmatmul.mubr.bf16.gmra.mrb[0].mxu0 %v1492
        %v2161 = vpop.f32.mrb[0].mxu0
        %v2162 = vadd.f32 %v1873, %v2161
        %v2163 = vpop.f32.mrb[0].mxu0
        %v2164 = vpop.f32.mrb[0].mxu0
        %v2165 = vadd.f32 %v1876, %v2164
        %v2166 = vpop.f32.mrb[0].mxu0
        %2167 = vmatprep.mubr.bf16.mxu0 %v1497
        %2168 = vmatmul.mubr.bf16.gmra.mrb[0].mxu0 %v1496
        %v2169 = vpop.f32.mrb[0].mxu0
        %v2170 = vadd.f32 %v1881, %v2169
        %v2171 = vpop.f32.mrb[0].mxu0
        %v2172 = vpop.f32.mrb[0].mxu0
        %v2173 = vadd.f32 %v1884, %v2172
        %v2174 = vpop.f32.mrb[0].mxu0
        %2175 = vmatprep.mubr.bf16.mxu0 %v1501
        %2176 = vmatmul.mubr.bf16.gmra.mrb[0].mxu0 %v1500
        %v2177 = vpop.f32.mrb[0].mxu0
        %v2178 = vadd.f32 %v1889, %v2177
        %v2179 = vpop.f32.mrb[0].mxu0
        %v2180 = vpop.f32.mrb[0].mxu0
        %v2181 = vadd.f32 %v1892, %v2180
        %v2182 = vpop.f32.mrb[0].mxu0
        %2183 = vmatprep.mubr.bf16.mxu0 %v1505
        %2184 = vmatmul.mubr.bf16.gmra.mrb[0].mxu0 %v1504
        %v2185 = vpop.f32.mrb[0].mxu0
        %v2186 = vadd.f32 %v1897, %v2185
        %v2187 = vpop.f32.mrb[0].mxu0
        %v2188 = vpop.f32.mrb[0].mxu0
        %v2189 = vadd.f32 %v1900, %v2188
        %v2190 = vpop.f32.mrb[0].mxu0
        %2191 = vmatprep.mubr.bf16.mxu0 %v1509
        %2192 = vmatmul.mubr.bf16.gmra.mrb[0].mxu0 %v1508
        %v2193 = vpop.f32.mrb[0].mxu0
        %v2194 = vadd.f32 %v1905, %v2193
        %v2195 = vpop.f32.mrb[0].mxu0
        %v2196 = vpop.f32.mrb[0].mxu0
        %v2197 = vadd.f32 %v1908, %v2196
        %v2198 = vpop.f32.mrb[0].mxu0
        %2199 = vmatprep.mubr.bf16.mxu0 %v1513
        %2200 = vmatmul.mubr.bf16.gmra.mrb[0].mxu0 %v1512
        %v2201 = vpop.f32.mrb[0].mxu0
        %v2202 = vadd.f32 %v1913, %v2201
        %v2203 = vpop.f32.mrb[0].mxu0
        %v2204 = vpop.f32.mrb[0].mxu0
        %v2205 = vadd.f32 %v1916, %v2204
        %v2206 = vpop.f32.mrb[0].mxu0
        %2207 = vmatprep.mubr.bf16.mxu0 %v1517
        %2208 = vmatmul.mubr.bf16.gmra.mrb[0].mxu0 %v1516
        %v2209 = vpop.f32.mrb[0].mxu0
        %v2210 = vadd.f32 %v1921, %v2209
        %v2211 = vpop.f32.mrb[0].mxu0
        %v2212 = vpop.f32.mrb[0].mxu0
        %v2213 = vadd.f32 %v1924, %v2212
        %v2214 = vpop.f32.mrb[0].mxu0
        %2215 = vmatprep.mubr.bf16.mxu0 %v1521
        %2216 = vmatmul.mubr.bf16.gmra.mrb[0].mxu0 %v1520
        %v2217 = vpop.f32.mrb[0].mxu0
        %v2218 = vadd.f32 %v1929, %v2217
        %v2219 = vpop.f32.mrb[0].mxu0
        %v2220 = vpop.f32.mrb[0].mxu0
        %v2221 = vadd.f32 %v1932, %v2220
        %v2222 = vpop.f32.mrb[0].mxu0
        %2223 = vmatprep.mubr.bf16.mxu0 %v1525
        %2224 = vmatmul.mubr.bf16.gmra.mrb[0].mxu0 %v1524
        %v2225 = vpop.f32.mrb[0].mxu0
        %v2226 = vadd.f32 %v1937, %v2225
        %v2227 = vpop.f32.mrb[0].mxu0
        %v2228 = vpop.f32.mrb[0].mxu0
        %v2229 = vadd.f32 %v1940, %v2228
        %v2230 = vpop.f32.mrb[0].mxu0
        %2231 = vdwg.mxu0
        %v2232 = vmax.f32 %v1978, 0.0
        %v2233 = vmax.f32 %v1981, 0.0
        %v2234 = vmax.f32 %v1986, 0.0
        %v2235 = vmax.f32 %v1989, 0.0
        %v2236 = vmax.f32 %v1994, 0.0
        %v2237 = vmax.f32 %v1997, 0.0
        %v2238 = vmax.f32 %v2002, 0.0
        %v2239 = vmax.f32 %v2005, 0.0
        %v2240 = vmax.f32 %v2010, 0.0
        %v2241 = vmax.f32 %v2013, 0.0
        %v2242 = vmax.f32 %v2018, 0.0
        %v2243 = vmax.f32 %v2021, 0.0
        %v2244 = vmax.f32 %v2026, 0.0
        %v2245 = vmax.f32 %v2029, 0.0
        %v2246 = vmax.f32 %v2034, 0.0
        %v2247 = vmax.f32 %v2037, 0.0
        %v2248 = vmax.f32 %v2042, 0.0
        %v2249 = vmax.f32 %v2045, 0.0
        %v2250 = vmax.f32 %v2050, 0.0
        %v2251 = vmax.f32 %v2053, 0.0
        %v2252 = vmax.f32 %v2058, 0.0
        %v2253 = vmax.f32 %v2061, 0.0
        %v2254 = vmax.f32 %v2066, 0.0
        %v2255 = vmax.f32 %v2069, 0.0
        %v2256 = vmax.f32 %v2074, 0.0
        %v2257 = vmax.f32 %v2077, 0.0
        %v2258 = vmax.f32 %v2082, 0.0
        %v2259 = vmax.f32 %v2085, 0.0
        %v2260 = vmax.f32 %v2090, 0.0
        %v2261 = vmax.f32 %v2093, 0.0
        %v2262 = vmax.f32 %v2098, 0.0
        %v2263 = vmax.f32 %v2101, 0.0
        %v2264 = vmax.f32 %v2106, 0.0
        %v2265 = vmax.f32 %v2109, 0.0
        %v2266 = vmax.f32 %v2114, 0.0
        %v2267 = vmax.f32 %v2117, 0.0
        %v2268 = vmax.f32 %v2122, 0.0
        %v2269 = vmax.f32 %v2125, 0.0
        %v2270 = vmax.f32 %v2130, 0.0
        %v2271 = vmax.f32 %v2133, 0.0
        %v2272 = vmax.f32 %v2138, 0.0
        %v2273 = vmax.f32 %v2141, 0.0
        %v2274 = vmax.f32 %v2146, 0.0
        %v2275 = vmax.f32 %v2149, 0.0
        %v2276 = vmax.f32 %v2154, 0.0
        %v2277 = vmax.f32 %v2157, 0.0
        %v2278 = vmax.f32 %v2162, 0.0
        %v2279 = vmax.f32 %v2165, 0.0
        %v2280 = vmax.f32 %v2170, 0.0
        %v2281 = vmax.f32 %v2173, 0.0
        %v2282 = vmax.f32 %v2178, 0.0
        %v2283 = vmax.f32 %v2181, 0.0
        %v2284 = vmax.f32 %v2186, 0.0
        %v2285 = vmax.f32 %v2189, 0.0
        %v2286 = vmax.f32 %v2194, 0.0
        %v2287 = vmax.f32 %v2197, 0.0
        %v2288 = vmax.f32 %v2202, 0.0
        %v2289 = vmax.f32 %v2205, 0.0
        %v2290 = vmax.f32 %v2210, 0.0
        %v2291 = vmax.f32 %v2213, 0.0
        %v2292 = vmax.f32 %v2218, 0.0
        %v2293 = vmax.f32 %v2221, 0.0
        %v2294 = vmax.f32 %v2226, 0.0
        %v2295 = vmax.f32 %v2229, 0.0
        %v2296 = vpack.c.bf16 %v2233, %v2232
        %v2297 = vpack.c.bf16 %v2235, %v2234
        %v2298 = vpack.c.bf16 %v2237, %v2236
        %v2299 = vpack.c.bf16 %v2239, %v2238
        %v2300 = vpack.c.bf16 %v2241, %v2240
        %v2301 = vpack.c.bf16 %v2243, %v2242
        %v2302 = vpack.c.bf16 %v2245, %v2244
        %v2303 = vpack.c.bf16 %v2247, %v2246
        %v2304 = vpack.c.bf16 %v2249, %v2248
        %v2305 = vpack.c.bf16 %v2251, %v2250
        %v2306 = vpack.c.bf16 %v2253, %v2252
        %v2307 = vpack.c.bf16 %v2255, %v2254
        %v2308 = vpack.c.bf16 %v2257, %v2256
        %v2309 = vpack.c.bf16 %v2259, %v2258
        %v2310 = vpack.c.bf16 %v2261, %v2260
        %v2311 = vpack.c.bf16 %v2263, %v2262
        %v2312 = vpack.c.bf16 %v2265, %v2264
        %v2313 = vpack.c.bf16 %v2267, %v2266
        %v2314 = vpack.c.bf16 %v2269, %v2268
        %v2315 = vpack.c.bf16 %v2271, %v2270
        %v2316 = vpack.c.bf16 %v2273, %v2272
        %v2317 = vpack.c.bf16 %v2275, %v2274
        %v2318 = vpack.c.bf16 %v2277, %v2276
        %v2319 = vpack.c.bf16 %v2279, %v2278
        %v2320 = vpack.c.bf16 %v2281, %v2280
        %v2321 = vpack.c.bf16 %v2283, %v2282
        %v2322 = vpack.c.bf16 %v2285, %v2284
        %v2323 = vpack.c.bf16 %v2287, %v2286
        %v2324 = vpack.c.bf16 %v2289, %v2288
        %v2325 = vpack.c.bf16 %v2291, %v2290
        %v2326 = vpack.c.bf16 %v2293, %v2292
        %v2327 = vpack.c.bf16 %v2295, %v2294
        %v2328 = vld [vmem:[%s4] sm:$0xf]
        %v2329 = vld [vmem:[%s4 + $0x4] sm:$0xf]
        %v2330 = vld [vmem:[%s4 + $0x8] sm:$0xf]
        %v2331 = vld [vmem:[%s4 + $0xc] sm:$0xf]
        %v2332 = vld [vmem:[%s4 + $0x10] sm:$0xf]
        %v2333 = vld [vmem:[%s4 + $0x14] sm:$0xf]
        %v2334 = vld [vmem:[%s4 + $0x18] sm:$0xf]
        %v2335 = vld [vmem:[%s4 + $0x1c] sm:$0xf]
        %v2336 = vld [vmem:[%s4 + $0x20] sm:$0xf]
        %v2337 = vld [vmem:[%s4 + $0x24] sm:$0xf]
        %v2338 = vld [vmem:[%s4 + $0x28] sm:$0xf]
        %v2339 = vld [vmem:[%s4 + $0x2c] sm:$0xf]
        %v2340 = vld [vmem:[%s4 + $0x30] sm:$0xf]
        %v2341 = vld [vmem:[%s4 + $0x34] sm:$0xf]
        %v2342 = vld [vmem:[%s4 + $0x38] sm:$0xf]
        %v2343 = vld [vmem:[%s4 + $0x3c] sm:$0xf]
        %v2360 = vunpack.c.l.b16 %v2328
        %v2361 = vunpack.c.l.b16 %v2329
        %v2362 = vunpack.c.l.b16 %v2330
        %v2363 = vunpack.c.l.b16 %v2331
        %v2364 = vunpack.c.l.b16 %v2332
        %v2365 = vunpack.c.l.b16 %v2333
        %v2366 = vunpack.c.l.b16 %v2334
        %v2367 = vunpack.c.l.b16 %v2335
        %v2368 = vunpack.c.l.b16 %v2336
        %v2369 = vunpack.c.l.b16 %v2337
        %v2370 = vunpack.c.l.b16 %v2338
        %v2371 = vunpack.c.l.b16 %v2339
        %v2372 = vunpack.c.l.b16 %v2340
        %v2373 = vunpack.c.l.b16 %v2341
        %v2374 = vunpack.c.l.b16 %v2342
        %v2375 = vunpack.c.l.b16 %v2343
        %v2376 = vpack.c.b16 %v2361, %v2360
        %v2377 = vpack.c.b16 %v2363, %v2362
        %v2378 = vpack.c.b16 %v2365, %v2364
        %v2379 = vpack.c.b16 %v2367, %v2366
        %v2380 = vpack.c.b16 %v2369, %v2368
        %v2381 = vpack.c.b16 %v2371, %v2370
        %v2382 = vpack.c.b16 %v2373, %v2372
        %v2383 = vpack.c.b16 %v2375, %v2374
        %2392 = vmatprep.subr.bf16.mxu0 0
        %2393 = vmatpush1.bf16.msra.mxu0 %v2376
        %2394 = vmatprep.subr.bf16.mxu0 0
        %2395 = vmatpush1.bf16.msra.mxu0 %v2377
        %2396 = vmatprep.subr.bf16.mxu0 0
        %2397 = vmatpush1.bf16.msra.mxu0 %v2378
        %2398 = vmatprep.subr.bf16.mxu0 0
        %2399 = vmatpush1.bf16.msra.mxu0 %v2379
        %2400 = vmatprep.subr.bf16.mxu0 0
        %2401 = vmatpush1.bf16.msra.mxu0 %v2380
        %2402 = vmatprep.subr.bf16.mxu0 0
        %2403 = vmatpush1.bf16.msra.mxu0 %v2381
        %2404 = vmatprep.subr.bf16.mxu0 0
        %2405 = vmatpush1.bf16.msra.mxu0 %v2382
        %2406 = vmatprep.subr.bf16.mxu0 0
        %2407 = vmatpush1.bf16.msra.mxu0 %v2383
        %2408 = vmatprep.subr.bf16.mxu0 0
        %2409 = vmatpush1.bf16.msra.mxu0 0
        %2410 = vmatprep.subr.bf16.mxu0 0
        %2411 = vmatpush1.bf16.msra.mxu0 0
        %2412 = vmatprep.subr.bf16.mxu0 0
        %2413 = vmatpush1.bf16.msra.mxu0 0
        %2414 = vmatprep.subr.bf16.mxu0 0
        %2415 = vmatpush1.bf16.msra.mxu0 0
        %2416 = vmatprep.subr.bf16.mxu0 0
        %2417 = vmatpush1.bf16.msra.mxu0 0
        %2418 = vmatprep.subr.bf16.mxu0 0
        %2419 = vmatpush1.bf16.msra.mxu0 0
        %2420 = vmatprep.subr.bf16.mxu0 0
        %2421 = vmatpush1.bf16.msra.mxu0 0
        %2422 = vmatprep.subr.bf16.mxu0 0
        %2423 = vmatpush1.bf16.msra.mxu0 0
        %2424 = vmatprep.mubr.bf16.mxu0 0
        %2425 = vmatmul.mubr.bf16.gmra.mrb[0].mxu0 %v2296
        %v2426 = vpop.f32.mrb[0].mxu0
        %v2427 = vadd.f32 0.0, %v2426
        %v2428 = vpop.f32.mrb[0].mxu0
        %v2429 = vpop.f32.mrb[0].mxu0
        %v2430 = vadd.f32 0.0, %v2429
        %v2431 = vpop.f32.mrb[0].mxu0
        %2432 = vmatprep.mubr.bf16.mxu0 0
        %2433 = vmatmul.mubr.bf16.gmra.mrb[0].mxu0 %v2297
        %v2434 = vpop.f32.mrb[0].mxu0
        %v2435 = vadd.f32 0.0, %v2434
        %v2436 = vpop.f32.mrb[0].mxu0
        %v2437 = vpop.f32.mrb[0].mxu0
        %v2438 = vadd.f32 0.0, %v2437
        %v2439 = vpop.f32.mrb[0].mxu0
        %2440 = vmatprep.mubr.bf16.mxu0 0
        %2441 = vmatmul.mubr.bf16.gmra.mrb[0].mxu0 %v2298
        %v2442 = vpop.f32.mrb[0].mxu0
        %v2443 = vadd.f32 0.0, %v2442
        %v2444 = vpop.f32.mrb[0].mxu0
        %v2445 = vpop.f32.mrb[0].mxu0
        %v2446 = vadd.f32 0.0, %v2445
        %v2447 = vpop.f32.mrb[0].mxu0
        %2448 = vmatprep.mubr.bf16.mxu0 0
        %2449 = vmatmul.mubr.bf16.gmra.mrb[0].mxu0 %v2299
        %v2450 = vpop.f32.mrb[0].mxu0
        %v2451 = vadd.f32 0.0, %v2450
        %v2452 = vpop.f32.mrb[0].mxu0
        %v2453 = vpop.f32.mrb[0].mxu0
        %v2454 = vadd.f32 0.0, %v2453
        %v2455 = vpop.f32.mrb[0].mxu0
        %2456 = vmatprep.mubr.bf16.mxu0 0
        %2457 = vmatmul.mubr.bf16.gmra.mrb[0].mxu0 %v2300
        %v2458 = vpop.f32.mrb[0].mxu0
        %v2459 = vadd.f32 0.0, %v2458
        %v2460 = vpop.f32.mrb[0].mxu0
        %v2461 = vpop.f32.mrb[0].mxu0
        %v2462 = vadd.f32 0.0, %v2461
        %v2463 = vpop.f32.mrb[0].mxu0
        %2464 = vmatprep.mubr.bf16.mxu0 0
        %2465 = vmatmul.mubr.bf16.gmra.mrb[0].mxu0 %v2301
        %v2466 = vpop.f32.mrb[0].mxu0
        %v2467 = vadd.f32 0.0, %v2466
        %v2468 = vpop.f32.mrb[0].mxu0
        %v2469 = vpop.f32.mrb[0].mxu0
        %v2470 = vadd.f32 0.0, %v2469
        %v2471 = vpop.f32.mrb[0].mxu0
        %2472 = vmatprep.mubr.bf16.mxu0 0
        %2473 = vmatmul.mubr.bf16.gmra.mrb[0].mxu0 %v2302
        %v2474 = vpop.f32.mrb[0].mxu0
        %v2475 = vadd.f32 0.0, %v2474
        %v2476 = vpop.f32.mrb[0].mxu0
        %v2477 = vpop.f32.mrb[0].mxu0
        %v2478 = vadd.f32 0.0, %v2477
        %v2479 = vpop.f32.mrb[0].mxu0
        %2480 = vmatprep.mubr.bf16.mxu0 0
        %2481 = vmatmul.mubr.bf16.gmra.mrb[0].mxu0 %v2303
        %v2482 = vpop.f32.mrb[0].mxu0
        %v2483 = vadd.f32 0.0, %v2482
        %v2484 = vpop.f32.mrb[0].mxu0
        %v2485 = vpop.f32.mrb[0].mxu0
        %v2486 = vadd.f32 0.0, %v2485
        %v2487 = vpop.f32.mrb[0].mxu0
        %2488 = vmatprep.mubr.bf16.mxu0 0
        %2489 = vmatmul.mubr.bf16.gmra.mrb[0].mxu0 %v2304
        %v2490 = vpop.f32.mrb[0].mxu0
        %v2491 = vadd.f32 0.0, %v2490
        %v2492 = vpop.f32.mrb[0].mxu0
        %v2493 = vpop.f32.mrb[0].mxu0
        %v2494 = vadd.f32 0.0, %v2493
        %v2495 = vpop.f32.mrb[0].mxu0
        %2496 = vmatprep.mubr.bf16.mxu0 0
        %2497 = vmatmul.mubr.bf16.gmra.mrb[0].mxu0 %v2305
        %v2498 = vpop.f32.mrb[0].mxu0
        %v2499 = vadd.f32 0.0, %v2498
        %v2500 = vpop.f32.mrb[0].mxu0
        %v2501 = vpop.f32.mrb[0].mxu0
        %v2502 = vadd.f32 0.0, %v2501
        %v2503 = vpop.f32.mrb[0].mxu0
        %2504 = vmatprep.mubr.bf16.mxu0 0
        %2505 = vmatmul.mubr.bf16.gmra.mrb[0].mxu0 %v2306
        %v2506 = vpop.f32.mrb[0].mxu0
        %v2507 = vadd.f32 0.0, %v2506
        %v2508 = vpop.f32.mrb[0].mxu0
        %v2509 = vpop.f32.mrb[0].mxu0
        %v2510 = vadd.f32 0.0, %v2509
        %v2511 = vpop.f32.mrb[0].mxu0
        %2512 = vmatprep.mubr.bf16.mxu0 0
        %2513 = vmatmul.mubr.bf16.gmra.mrb[0].mxu0 %v2307
        %v2514 = vpop.f32.mrb[0].mxu0
        %v2515 = vadd.f32 0.0, %v2514
        %v2516 = vpop.f32.mrb[0].mxu0
        %v2517 = vpop.f32.mrb[0].mxu0
        %v2518 = vadd.f32 0.0, %v2517
        %v2519 = vpop.f32.mrb[0].mxu0
        %2520 = vmatprep.mubr.bf16.mxu0 0
        %2521 = vmatmul.mubr.bf16.gmra.mrb[0].mxu0 %v2308
        %v2522 = vpop.f32.mrb[0].mxu0
        %v2523 = vadd.f32 0.0, %v2522
        %v2524 = vpop.f32.mrb[0].mxu0
        %v2525 = vpop.f32.mrb[0].mxu0
        %v2526 = vadd.f32 0.0, %v2525
        %v2527 = vpop.f32.mrb[0].mxu0
        %2528 = vmatprep.mubr.bf16.mxu0 0
        %2529 = vmatmul.mubr.bf16.gmra.mrb[0].mxu0 %v2309
        %v2530 = vpop.f32.mrb[0].mxu0
        %v2531 = vadd.f32 0.0, %v2530
        %v2532 = vpop.f32.mrb[0].mxu0
        %v2533 = vpop.f32.mrb[0].mxu0
        %v2534 = vadd.f32 0.0, %v2533
        %v2535 = vpop.f32.mrb[0].mxu0
        %2536 = vmatprep.mubr.bf16.mxu0 0
        %2537 = vmatmul.mubr.bf16.gmra.mrb[0].mxu0 %v2310
        %v2538 = vpop.f32.mrb[0].mxu0
        %v2539 = vadd.f32 0.0, %v2538
        %v2540 = vpop.f32.mrb[0].mxu0
        %v2541 = vpop.f32.mrb[0].mxu0
        %v2542 = vadd.f32 0.0, %v2541
        %v2543 = vpop.f32.mrb[0].mxu0
        %2544 = vmatprep.mubr.bf16.mxu0 0
        %2545 = vmatmul.mubr.bf16.gmra.mrb[0].mxu0 %v2311
        %v2546 = vpop.f32.mrb[0].mxu0
        %v2547 = vadd.f32 0.0, %v2546
        %v2548 = vpop.f32.mrb[0].mxu0
        %v2549 = vpop.f32.mrb[0].mxu0
        %v2550 = vadd.f32 0.0, %v2549
        %v2551 = vpop.f32.mrb[0].mxu0
        %2552 = vmatprep.mubr.bf16.mxu0 0
        %2553 = vmatmul.mubr.bf16.gmra.mrb[0].mxu0 %v2312
        %v2554 = vpop.f32.mrb[0].mxu0
        %v2555 = vadd.f32 0.0, %v2554
        %v2556 = vpop.f32.mrb[0].mxu0
        %v2557 = vpop.f32.mrb[0].mxu0
        %v2558 = vadd.f32 0.0, %v2557
        %v2559 = vpop.f32.mrb[0].mxu0
        %2560 = vmatprep.mubr.bf16.mxu0 0
        %2561 = vmatmul.mubr.bf16.gmra.mrb[0].mxu0 %v2313
        %v2562 = vpop.f32.mrb[0].mxu0
        %v2563 = vadd.f32 0.0, %v2562
        %v2564 = vpop.f32.mrb[0].mxu0
        %v2565 = vpop.f32.mrb[0].mxu0
        %v2566 = vadd.f32 0.0, %v2565
        %v2567 = vpop.f32.mrb[0].mxu0
        %2568 = vmatprep.mubr.bf16.mxu0 0
        %2569 = vmatmul.mubr.bf16.gmra.mrb[0].mxu0 %v2314
        %v2570 = vpop.f32.mrb[0].mxu0
        %v2571 = vadd.f32 0.0, %v2570
        %v2572 = vpop.f32.mrb[0].mxu0
        %v2573 = vpop.f32.mrb[0].mxu0
        %v2574 = vadd.f32 0.0, %v2573
        %v2575 = vpop.f32.mrb[0].mxu0
        %2576 = vmatprep.mubr.bf16.mxu0 0
        %2577 = vmatmul.mubr.bf16.gmra.mrb[0].mxu0 %v2315
        %v2578 = vpop.f32.mrb[0].mxu0
        %v2579 = vadd.f32 0.0, %v2578
        %v2580 = vpop.f32.mrb[0].mxu0
        %v2581 = vpop.f32.mrb[0].mxu0
        %v2582 = vadd.f32 0.0, %v2581
        %v2583 = vpop.f32.mrb[0].mxu0
        %2584 = vmatprep.mubr.bf16.mxu0 0
        %2585 = vmatmul.mubr.bf16.gmra.mrb[0].mxu0 %v2316
        %v2586 = vpop.f32.mrb[0].mxu0
        %v2587 = vadd.f32 0.0, %v2586
        %v2588 = vpop.f32.mrb[0].mxu0
        %v2589 = vpop.f32.mrb[0].mxu0
        %v2590 = vadd.f32 0.0, %v2589
        %v2591 = vpop.f32.mrb[0].mxu0
        %2592 = vmatprep.mubr.bf16.mxu0 0
        %2593 = vmatmul.mubr.bf16.gmra.mrb[0].mxu0 %v2317
        %v2594 = vpop.f32.mrb[0].mxu0
        %v2595 = vadd.f32 0.0, %v2594
        %v2596 = vpop.f32.mrb[0].mxu0
        %v2597 = vpop.f32.mrb[0].mxu0
        %v2598 = vadd.f32 0.0, %v2597
        %v2599 = vpop.f32.mrb[0].mxu0
        %2600 = vmatprep.mubr.bf16.mxu0 0
        %2601 = vmatmul.mubr.bf16.gmra.mrb[0].mxu0 %v2318
        %v2602 = vpop.f32.mrb[0].mxu0
        %v2603 = vadd.f32 0.0, %v2602
        %v2604 = vpop.f32.mrb[0].mxu0
        %v2605 = vpop.f32.mrb[0].mxu0
        %v2606 = vadd.f32 0.0, %v2605
        %v2607 = vpop.f32.mrb[0].mxu0
        %2608 = vmatprep.mubr.bf16.mxu0 0
        %2609 = vmatmul.mubr.bf16.gmra.mrb[0].mxu0 %v2319
        %v2610 = vpop.f32.mrb[0].mxu0
        %v2611 = vadd.f32 0.0, %v2610
        %v2612 = vpop.f32.mrb[0].mxu0
        %v2613 = vpop.f32.mrb[0].mxu0
        %v2614 = vadd.f32 0.0, %v2613
        %v2615 = vpop.f32.mrb[0].mxu0
        %2616 = vmatprep.mubr.bf16.mxu0 0
        %2617 = vmatmul.mubr.bf16.gmra.mrb[0].mxu0 %v2320
        %v2618 = vpop.f32.mrb[0].mxu0
        %v2619 = vadd.f32 0.0, %v2618
        %v2620 = vpop.f32.mrb[0].mxu0
        %v2621 = vpop.f32.mrb[0].mxu0
        %v2622 = vadd.f32 0.0, %v2621
        %v2623 = vpop.f32.mrb[0].mxu0
        %2624 = vmatprep.mubr.bf16.mxu0 0
        %2625 = vmatmul.mubr.bf16.gmra.mrb[0].mxu0 %v2321
        %v2626 = vpop.f32.mrb[0].mxu0
        %v2627 = vadd.f32 0.0, %v2626
        %v2628 = vpop.f32.mrb[0].mxu0
        %v2629 = vpop.f32.mrb[0].mxu0
        %v2630 = vadd.f32 0.0, %v2629
        %v2631 = vpop.f32.mrb[0].mxu0
        %2632 = vmatprep.mubr.bf16.mxu0 0
        %2633 = vmatmul.mubr.bf16.gmra.mrb[0].mxu0 %v2322
        %v2634 = vpop.f32.mrb[0].mxu0
        %v2635 = vadd.f32 0.0, %v2634
        %v2636 = vpop.f32.mrb[0].mxu0
        %v2637 = vpop.f32.mrb[0].mxu0
        %v2638 = vadd.f32 0.0, %v2637
        %v2639 = vpop.f32.mrb[0].mxu0
        %2640 = vmatprep.mubr.bf16.mxu0 0
        %2641 = vmatmul.mubr.bf16.gmra.mrb[0].mxu0 %v2323
        %v2642 = vpop.f32.mrb[0].mxu0
        %v2643 = vadd.f32 0.0, %v2642
        %v2644 = vpop.f32.mrb[0].mxu0
        %v2645 = vpop.f32.mrb[0].mxu0
        %v2646 = vadd.f32 0.0, %v2645
        %v2647 = vpop.f32.mrb[0].mxu0
        %2648 = vmatprep.mubr.bf16.mxu0 0
        %2649 = vmatmul.mubr.bf16.gmra.mrb[0].mxu0 %v2324
        %v2650 = vpop.f32.mrb[0].mxu0
        %v2651 = vadd.f32 0.0, %v2650
        %v2652 = vpop.f32.mrb[0].mxu0
        %v2653 = vpop.f32.mrb[0].mxu0
        %v2654 = vadd.f32 0.0, %v2653
        %v2655 = vpop.f32.mrb[0].mxu0
        %2656 = vmatprep.mubr.bf16.mxu0 0
        %2657 = vmatmul.mubr.bf16.gmra.mrb[0].mxu0 %v2325
        %v2658 = vpop.f32.mrb[0].mxu0
        %v2659 = vadd.f32 0.0, %v2658
        %v2660 = vpop.f32.mrb[0].mxu0
        %v2661 = vpop.f32.mrb[0].mxu0
        %v2662 = vadd.f32 0.0, %v2661
        %v2663 = vpop.f32.mrb[0].mxu0
        %2664 = vmatprep.mubr.bf16.mxu0 0
        %2665 = vmatmul.mubr.bf16.gmra.mrb[0].mxu0 %v2326
        %v2666 = vpop.f32.mrb[0].mxu0
        %v2667 = vadd.f32 0.0, %v2666
        %v2668 = vpop.f32.mrb[0].mxu0
        %v2669 = vpop.f32.mrb[0].mxu0
        %v2670 = vadd.f32 0.0, %v2669
        %v2671 = vpop.f32.mrb[0].mxu0
        %2672 = vmatprep.mubr.bf16.mxu0 0
        %2673 = vmatmul.mubr.bf16.gmra.mrb[0].mxu0 %v2327
        %v2674 = vpop.f32.mrb[0].mxu0
        %v2675 = vadd.f32 0.0, %v2674
        %v2676 = vpop.f32.mrb[0].mxu0
        %v2677 = vpop.f32.mrb[0].mxu0
        %v2678 = vadd.f32 0.0, %v2677
        %v2679 = vpop.f32.mrb[0].mxu0
        %2680 = vdwg.mxu0
        %v2681 = vpack.c.bf16 %v2430, %v2427
        %v2682 = vpack.c.bf16 %v2438, %v2435
        %v2683 = vpack.c.bf16 %v2446, %v2443
        %v2684 = vpack.c.bf16 %v2454, %v2451
        %v2685 = vpack.c.bf16 %v2462, %v2459
        %v2686 = vpack.c.bf16 %v2470, %v2467
        %v2687 = vpack.c.bf16 %v2478, %v2475
        %v2688 = vpack.c.bf16 %v2486, %v2483
        %v2689 = vpack.c.bf16 %v2494, %v2491
        %v2690 = vpack.c.bf16 %v2502, %v2499
        %v2691 = vpack.c.bf16 %v2510, %v2507
        %v2692 = vpack.c.bf16 %v2518, %v2515
        %v2693 = vpack.c.bf16 %v2526, %v2523
        %v2694 = vpack.c.bf16 %v2534, %v2531
        %v2695 = vpack.c.bf16 %v2542, %v2539
        %v2696 = vpack.c.bf16 %v2550, %v2547
        %v2697 = vpack.c.bf16 %v2558, %v2555
        %v2698 = vpack.c.bf16 %v2566, %v2563
        %v2699 = vpack.c.bf16 %v2574, %v2571
        %v2700 = vpack.c.bf16 %v2582, %v2579
        %v2701 = vpack.c.bf16 %v2590, %v2587
        %v2702 = vpack.c.bf16 %v2598, %v2595
        %v2703 = vpack.c.bf16 %v2606, %v2603
        %v2704 = vpack.c.bf16 %v2614, %v2611
        %v2705 = vpack.c.bf16 %v2622, %v2619
        %v2706 = vpack.c.bf16 %v2630, %v2627
        %v2707 = vpack.c.bf16 %v2638, %v2635
        %v2708 = vpack.c.bf16 %v2646, %v2643
        %v2709 = vpack.c.bf16 %v2654, %v2651
        %v2710 = vpack.c.bf16 %v2662, %v2659
        %v2711 = vpack.c.bf16 %v2670, %v2667
        %v2712 = vpack.c.bf16 %v2678, %v2675
        %2713 = vst [vmem:[#allocation2] sm:$0xff] %v2681
        %2714 = vst [vmem:[#allocation2 + $0x8] sm:$0xff] %v2682
        %2715 = vst [vmem:[#allocation2 + $0x10] sm:$0xff] %v2683
        %2716 = vst [vmem:[#allocation2 + $0x18] sm:$0xff] %v2684
        %2717 = vst [vmem:[#allocation2 + $0x20] sm:$0xff] %v2685
        %2718 = vst [vmem:[#allocation2 + $0x28] sm:$0xff] %v2686
        %2719 = vst [vmem:[#allocation2 + $0x30] sm:$0xff] %v2687
        %2720 = vst [vmem:[#allocation2 + $0x38] sm:$0xff] %v2688
        %2721 = vst [vmem:[#allocation2 + $0x40] sm:$0xff] %v2689
        %2722 = vst [vmem:[#allocation2 + $0x48] sm:$0xff] %v2690
        %2723 = vst [vmem:[#allocation2 + $0x50] sm:$0xff] %v2691
        %2724 = vst [vmem:[#allocation2 + $0x58] sm:$0xff] %v2692
        %2725 = vst [vmem:[#allocation2 + $0x60] sm:$0xff] %v2693
        %2726 = vst [vmem:[#allocation2 + $0x68] sm:$0xff] %v2694
        %2727 = vst [vmem:[#allocation2 + $0x70] sm:$0xff] %v2695
        %2728 = vst [vmem:[#allocation2 + $0x78] sm:$0xff] %v2696
        %2729 = vst [vmem:[#allocation2 + $0x80] sm:$0xff] %v2697
        %2730 = vst [vmem:[#allocation2 + $0x88] sm:$0xff] %v2698
        %2731 = vst [vmem:[#allocation2 + $0x90] sm:$0xff] %v2699
        %2732 = vst [vmem:[#allocation2 + $0x98] sm:$0xff] %v2700
        %2733 = vst [vmem:[#allocation2 + $0xa0] sm:$0xff] %v2701
        %2734 = vst [vmem:[#allocation2 + $0xa8] sm:$0xff] %v2702
        %2735 = vst [vmem:[#allocation2 + $0xb0] sm:$0xff] %v2703
        %2736 = vst [vmem:[#allocation2 + $0xb8] sm:$0xff] %v2704
        %2737 = vst [vmem:[#allocation2 + $0xc0] sm:$0xff] %v2705
        %2738 = vst [vmem:[#allocation2 + $0xc8] sm:$0xff] %v2706
        %2739 = vst [vmem:[#allocation2 + $0xd0] sm:$0xff] %v2707
        %2740 = vst [vmem:[#allocation2 + $0xd8] sm:$0xff] %v2708
        %2741 = vst [vmem:[#allocation2 + $0xe0] sm:$0xff] %v2709
        %2742 = vst [vmem:[#allocation2 + $0xe8] sm:$0xff] %v2710
        %2743 = vst [vmem:[#allocation2 + $0xf0] sm:$0xff] %v2711
        %2744 = vst [vmem:[#allocation2 + $0xf8] sm:$0xff] %v2712
      $region48: #{gcn_forward.1} parent=43 // pred_fallthru
        _
      %s2745 = smul.u32 %s17, 256
      %s2746 = sshra.s32 %s2745, 3
      %s2747 = sand.u32 %s2745, 7
      %s2748 = smul.u32 %s2746, 4
      %s2749 = smul.addr %s2748, 4
      %s2750 = scalar_lea.vmem %s0, %s2749
      %v2751 = vld [vmem:[%s2750] sm:$0xff]
      %v2752 = vld [vmem:[%s2750 + $0x8] sm:$0xff]
      %v2753 = vld [vmem:[%s2750 + $0x10] sm:$0xff]
      %v2754 = vld [vmem:[%s2750 + $0x18] sm:$0xff]
      %v2755 = vld [vmem:[%s2750 + $0x20] sm:$0xff]
      %v2756 = vld [vmem:[%s2750 + $0x28] sm:$0xff]
      %v2757 = vld [vmem:[%s2750 + $0x30] sm:$0xff]
      %v2758 = vld [vmem:[%s2750 + $0x38] sm:$0xff]
      %v2759 = vld [vmem:[%s2750 + $0x40] sm:$0xff]
      %v2760 = vld [vmem:[%s2750 + $0x48] sm:$0xff]
      %v2761 = vld [vmem:[%s2750 + $0x50] sm:$0xff]
      %v2762 = vld [vmem:[%s2750 + $0x58] sm:$0xff]
      %v2763 = vld [vmem:[%s2750 + $0x60] sm:$0xff]
      %v2764 = vld [vmem:[%s2750 + $0x68] sm:$0xff]
      %v2765 = vld [vmem:[%s2750 + $0x70] sm:$0xff]
      %v2766 = vld [vmem:[%s2750 + $0x78] sm:$0xff]
      %v2767 = vld [vmem:[%s2750 + $0x80] sm:$0xff]
      %v2768 = vld [vmem:[%s2750 + $0x88] sm:$0xff]
      %v2769 = vld [vmem:[%s2750 + $0x90] sm:$0xff]
      %v2770 = vld [vmem:[%s2750 + $0x98] sm:$0xff]
      %v2771 = vld [vmem:[%s2750 + $0xa0] sm:$0xff]
      %v2772 = vld [vmem:[%s2750 + $0xa8] sm:$0xff]
      %v2773 = vld [vmem:[%s2750 + $0xb0] sm:$0xff]
      %v2774 = vld [vmem:[%s2750 + $0xb8] sm:$0xff]
      %v2775 = vld [vmem:[%s2750 + $0xc0] sm:$0xff]
      %v2776 = vld [vmem:[%s2750 + $0xc8] sm:$0xff]
      %v2777 = vld [vmem:[%s2750 + $0xd0] sm:$0xff]
      %v2778 = vld [vmem:[%s2750 + $0xd8] sm:$0xff]
      %v2779 = vld [vmem:[%s2750 + $0xe0] sm:$0xff]
      %v2780 = vld [vmem:[%s2750 + $0xe8] sm:$0xff]
      %v2781 = vld [vmem:[%s2750 + $0xf0] sm:$0xff]
      %v2782 = vld [vmem:[%s2750 + $0xf8] sm:$0xff]
      %v2783 = vld [vmem:[%s2750 + $0x100] sm:$0xff]
      %v2784 = vld [vmem:[%s2750 + $0x108] sm:$0xff]
      %v2785 = vld [vmem:[%s2750 + $0x110] sm:$0xff]
      %v2786 = vld [vmem:[%s2750 + $0x118] sm:$0xff]
      %v2787 = vld [vmem:[%s2750 + $0x120] sm:$0xff]
      %v2788 = vld [vmem:[%s2750 + $0x128] sm:$0xff]
      %v2789 = vld [vmem:[%s2750 + $0x130] sm:$0xff]
      %v2790 = vld [vmem:[%s2750 + $0x138] sm:$0xff]
      %v2791 = vld [vmem:[%s2750 + $0x140] sm:$0xff]
      %v2792 = vld [vmem:[%s2750 + $0x148] sm:$0xff]
      %v2793 = vld [vmem:[%s2750 + $0x150] sm:$0xff]
      %v2794 = vld [vmem:[%s2750 + $0x158] sm:$0xff]
      %v2795 = vld [vmem:[%s2750 + $0x160] sm:$0xff]
      %v2796 = vld [vmem:[%s2750 + $0x168] sm:$0xff]
      %v2797 = vld [vmem:[%s2750 + $0x170] sm:$0xff]
      %v2798 = vld [vmem:[%s2750 + $0x178] sm:$0xff]
      %v2799 = vld [vmem:[%s2750 + $0x180] sm:$0xff]
      %v2800 = vld [vmem:[%s2750 + $0x188] sm:$0xff]
      %v2801 = vld [vmem:[%s2750 + $0x190] sm:$0xff]
      %v2802 = vld [vmem:[%s2750 + $0x198] sm:$0xff]
      %v2803 = vld [vmem:[%s2750 + $0x1a0] sm:$0xff]
      %v2804 = vld [vmem:[%s2750 + $0x1a8] sm:$0xff]
      %v2805 = vld [vmem:[%s2750 + $0x1b0] sm:$0xff]
      %v2806 = vld [vmem:[%s2750 + $0x1b8] sm:$0xff]
      %v2807 = vld [vmem:[%s2750 + $0x1c0] sm:$0xff]
      %v2808 = vld [vmem:[%s2750 + $0x1c8] sm:$0xff]
      %v2809 = vld [vmem:[%s2750 + $0x1d0] sm:$0xff]
      %v2810 = vld [vmem:[%s2750 + $0x1d8] sm:$0xff]
      %v2811 = vld [vmem:[%s2750 + $0x1e0] sm:$0xff]
      %v2812 = vld [vmem:[%s2750 + $0x1e8] sm:$0xff]
      %v2813 = vld [vmem:[%s2750 + $0x1f0] sm:$0xff]
      %v2814 = vld [vmem:[%s2750 + $0x1f8] sm:$0xff]
      %v2815 = vld [vmem:[#allocation2] sm:$0xff]
      %v2816 = vld [vmem:[#allocation2 + $0x8] sm:$0xff]
      %v2817 = vld [vmem:[#allocation2 + $0x10] sm:$0xff]
      %v2818 = vld [vmem:[#allocation2 + $0x18] sm:$0xff]
      %v2819 = vld [vmem:[#allocation2 + $0x20] sm:$0xff]
      %v2820 = vld [vmem:[#allocation2 + $0x28] sm:$0xff]
      %v2821 = vld [vmem:[#allocation2 + $0x30] sm:$0xff]
      %v2822 = vld [vmem:[#allocation2 + $0x38] sm:$0xff]
      %v2823 = vld [vmem:[#allocation2 + $0x40] sm:$0xff]
      %v2824 = vld [vmem:[#allocation2 + $0x48] sm:$0xff]
      %v2825 = vld [vmem:[#allocation2 + $0x50] sm:$0xff]
      %v2826 = vld [vmem:[#allocation2 + $0x58] sm:$0xff]
      %v2827 = vld [vmem:[#allocation2 + $0x60] sm:$0xff]
      %v2828 = vld [vmem:[#allocation2 + $0x68] sm:$0xff]
      %v2829 = vld [vmem:[#allocation2 + $0x70] sm:$0xff]
      %v2830 = vld [vmem:[#allocation2 + $0x78] sm:$0xff]
      %v2831 = vld [vmem:[#allocation2 + $0x80] sm:$0xff]
      %v2832 = vld [vmem:[#allocation2 + $0x88] sm:$0xff]
      %v2833 = vld [vmem:[#allocation2 + $0x90] sm:$0xff]
      %v2834 = vld [vmem:[#allocation2 + $0x98] sm:$0xff]
      %v2835 = vld [vmem:[#allocation2 + $0xa0] sm:$0xff]
      %v2836 = vld [vmem:[#allocation2 + $0xa8] sm:$0xff]
      %v2837 = vld [vmem:[#allocation2 + $0xb0] sm:$0xff]
      %v2838 = vld [vmem:[#allocation2 + $0xb8] sm:$0xff]
      %v2839 = vld [vmem:[#allocation2 + $0xc0] sm:$0xff]
      %v2840 = vld [vmem:[#allocation2 + $0xc8] sm:$0xff]
      %v2841 = vld [vmem:[#allocation2 + $0xd0] sm:$0xff]
      %v2842 = vld [vmem:[#allocation2 + $0xd8] sm:$0xff]
      %v2843 = vld [vmem:[#allocation2 + $0xe0] sm:$0xff]
      %v2844 = vld [vmem:[#allocation2 + $0xe8] sm:$0xff]
      %v2845 = vld [vmem:[#allocation2 + $0xf0] sm:$0xff]
      %v2846 = vld [vmem:[#allocation2 + $0xf8] sm:$0xff]
      %v2847 = vld [vmem:[%s5] sm:$0x1]
      %v2849 = vlaneseq
      %v2850 = vshrl.u32 %v2849, 7
      %v2851 = vsub.s32 0, %v2850
      %v2852 = vrot.slane %v2847, %v2851
      %v2918 = vunpack.c.l.b16 %v2751
      %v2919 = vunpack.c.h.b16 %v2751
      %v2920 = vunpack.c.l.b16 %v2752
      %v2921 = vunpack.c.h.b16 %v2752
      %v2922 = vunpack.c.l.b16 %v2753
      %v2923 = vunpack.c.h.b16 %v2753
      %v2924 = vunpack.c.l.b16 %v2754
      %v2925 = vunpack.c.h.b16 %v2754
      %v2926 = vunpack.c.l.b16 %v2755
      %v2927 = vunpack.c.h.b16 %v2755
      %v2928 = vunpack.c.l.b16 %v2756
      %v2929 = vunpack.c.h.b16 %v2756
      %v2930 = vunpack.c.l.b16 %v2757
      %v2931 = vunpack.c.h.b16 %v2757
      %v2932 = vunpack.c.l.b16 %v2758
      %v2933 = vunpack.c.h.b16 %v2758
      %v2934 = vunpack.c.l.b16 %v2759
      %v2935 = vunpack.c.h.b16 %v2759
      %v2936 = vunpack.c.l.b16 %v2760
      %v2937 = vunpack.c.h.b16 %v2760
      %v2938 = vunpack.c.l.b16 %v2761
      %v2939 = vunpack.c.h.b16 %v2761
      %v2940 = vunpack.c.l.b16 %v2762
      %v2941 = vunpack.c.h.b16 %v2762
      %v2942 = vunpack.c.l.b16 %v2763
      %v2943 = vunpack.c.h.b16 %v2763
      %v2944 = vunpack.c.l.b16 %v2764
      %v2945 = vunpack.c.h.b16 %v2764
      %v2946 = vunpack.c.l.b16 %v2765
      %v2947 = vunpack.c.h.b16 %v2765
      %v2948 = vunpack.c.l.b16 %v2766
      %v2949 = vunpack.c.h.b16 %v2766
      %v2950 = vunpack.c.l.b16 %v2767
      %v2951 = vunpack.c.h.b16 %v2767
      %v2952 = vunpack.c.l.b16 %v2768
      %v2953 = vunpack.c.h.b16 %v2768
      %v2954 = vunpack.c.l.b16 %v2769
      %v2955 = vunpack.c.h.b16 %v2769
      %v2956 = vunpack.c.l.b16 %v2770
      %v2957 = vunpack.c.h.b16 %v2770
      %v2958 = vunpack.c.l.b16 %v2771
      %v2959 = vunpack.c.h.b16 %v2771
      %v2960 = vunpack.c.l.b16 %v2772
      %v2961 = vunpack.c.h.b16 %v2772
      %v2962 = vunpack.c.l.b16 %v2773
      %v2963 = vunpack.c.h.b16 %v2773
      %v2964 = vunpack.c.l.b16 %v2774
      %v2965 = vunpack.c.h.b16 %v2774
      %v2966 = vunpack.c.l.b16 %v2775
      %v2967 = vunpack.c.h.b16 %v2775
      %v2968 = vunpack.c.l.b16 %v2776
      %v2969 = vunpack.c.h.b16 %v2776
      %v2970 = vunpack.c.l.b16 %v2777
      %v2971 = vunpack.c.h.b16 %v2777
      %v2972 = vunpack.c.l.b16 %v2778
      %v2973 = vunpack.c.h.b16 %v2778
      %v2974 = vunpack.c.l.b16 %v2779
      %v2975 = vunpack.c.h.b16 %v2779
      %v2976 = vunpack.c.l.b16 %v2780
      %v2977 = vunpack.c.h.b16 %v2780
      %v2978 = vunpack.c.l.b16 %v2781
      %v2979 = vunpack.c.h.b16 %v2781
      %v2980 = vunpack.c.l.b16 %v2782
      %v2981 = vunpack.c.h.b16 %v2782
      %v2982 = vunpack.c.l.b16 %v2783
      %v2983 = vunpack.c.h.b16 %v2783
      %v2984 = vunpack.c.l.b16 %v2784
      %v2985 = vunpack.c.h.b16 %v2784
      %v2986 = vunpack.c.l.b16 %v2785
      %v2987 = vunpack.c.h.b16 %v2785
      %v2988 = vunpack.c.l.b16 %v2786
      %v2989 = vunpack.c.h.b16 %v2786
      %v2990 = vunpack.c.l.b16 %v2787
      %v2991 = vunpack.c.h.b16 %v2787
      %v2992 = vunpack.c.l.b16 %v2788
      %v2993 = vunpack.c.h.b16 %v2788
      %v2994 = vunpack.c.l.b16 %v2789
      %v2995 = vunpack.c.h.b16 %v2789
      %v2996 = vunpack.c.l.b16 %v2790
      %v2997 = vunpack.c.h.b16 %v2790
      %v2998 = vunpack.c.l.b16 %v2791
      %v2999 = vunpack.c.h.b16 %v2791
      %v3000 = vunpack.c.l.b16 %v2792
      %v3001 = vunpack.c.h.b16 %v2792
      %v3002 = vunpack.c.l.b16 %v2793
      %v3003 = vunpack.c.h.b16 %v2793
      %v3004 = vunpack.c.l.b16 %v2794
      %v3005 = vunpack.c.h.b16 %v2794
      %v3006 = vunpack.c.l.b16 %v2795
      %v3007 = vunpack.c.h.b16 %v2795
      %v3008 = vunpack.c.l.b16 %v2796
      %v3009 = vunpack.c.h.b16 %v2796
      %v3010 = vunpack.c.l.b16 %v2797
      %v3011 = vunpack.c.h.b16 %v2797
      %v3012 = vunpack.c.l.b16 %v2798
      %v3013 = vunpack.c.h.b16 %v2798
      %v3014 = vunpack.c.l.b16 %v2799
      %v3015 = vunpack.c.h.b16 %v2799
      %v3016 = vunpack.c.l.b16 %v2800
      %v3017 = vunpack.c.h.b16 %v2800
      %v3018 = vunpack.c.l.b16 %v2801
      %v3019 = vunpack.c.h.b16 %v2801
      %v3020 = vunpack.c.l.b16 %v2802
      %v3021 = vunpack.c.h.b16 %v2802
      %v3022 = vunpack.c.l.b16 %v2803
      %v3023 = vunpack.c.h.b16 %v2803
      %v3024 = vunpack.c.l.b16 %v2804
      %v3025 = vunpack.c.h.b16 %v2804
      %v3026 = vunpack.c.l.b16 %v2805
      %v3027 = vunpack.c.h.b16 %v2805
      %v3028 = vunpack.c.l.b16 %v2806
      %v3029 = vunpack.c.h.b16 %v2806
      %v3030 = vunpack.c.l.b16 %v2807
      %v3031 = vunpack.c.h.b16 %v2807
      %v3032 = vunpack.c.l.b16 %v2808
      %v3033 = vunpack.c.h.b16 %v2808
      %v3034 = vunpack.c.l.b16 %v2809
      %v3035 = vunpack.c.h.b16 %v2809
      %v3036 = vunpack.c.l.b16 %v2810
      %v3037 = vunpack.c.h.b16 %v2810
      %v3038 = vunpack.c.l.b16 %v2811
      %v3039 = vunpack.c.h.b16 %v2811
      %v3040 = vunpack.c.l.b16 %v2812
      %v3041 = vunpack.c.h.b16 %v2812
      %v3042 = vunpack.c.l.b16 %v2813
      %v3043 = vunpack.c.h.b16 %v2813
      %v3044 = vunpack.c.l.b16 %v2814
      %v3045 = vunpack.c.h.b16 %v2814
      %v3046 = vpack.c.b16 %v2922, %v2918
      %v3047 = vpack.c.b16 %v2923, %v2919
      %v3048 = vpack.c.b16 %v2924, %v2920
      %v3049 = vpack.c.b16 %v2925, %v2921
      %v3050 = vpack.c.b16 %v2930, %v2926
      %v3051 = vpack.c.b16 %v2931, %v2927
      %v3052 = vpack.c.b16 %v2932, %v2928
      %v3053 = vpack.c.b16 %v2933, %v2929
      %v3054 = vpack.c.b16 %v2938, %v2934
      %v3055 = vpack.c.b16 %v2939, %v2935
      %v3056 = vpack.c.b16 %v2940, %v2936
      %v3057 = vpack.c.b16 %v2941, %v2937
      %v3058 = vpack.c.b16 %v2946, %v2942
      %v3059 = vpack.c.b16 %v2947, %v2943
      %v3060 = vpack.c.b16 %v2948, %v2944
      %v3061 = vpack.c.b16 %v2949, %v2945
      %v3062 = vpack.c.b16 %v2954, %v2950
      %v3063 = vpack.c.b16 %v2955, %v2951
      %v3064 = vpack.c.b16 %v2956, %v2952
      %v3065 = vpack.c.b16 %v2957, %v2953
      %v3066 = vpack.c.b16 %v2962, %v2958
      %v3067 = vpack.c.b16 %v2963, %v2959
      %v3068 = vpack.c.b16 %v2964, %v2960
      %v3069 = vpack.c.b16 %v2965, %v2961
      %v3070 = vpack.c.b16 %v2970, %v2966
      %v3071 = vpack.c.b16 %v2971, %v2967
      %v3072 = vpack.c.b16 %v2972, %v2968
      %v3073 = vpack.c.b16 %v2973, %v2969
      %v3074 = vpack.c.b16 %v2978, %v2974
      %v3075 = vpack.c.b16 %v2979, %v2975
      %v3076 = vpack.c.b16 %v2980, %v2976
      %v3077 = vpack.c.b16 %v2981, %v2977
      %v3078 = vpack.c.b16 %v2986, %v2982
      %v3079 = vpack.c.b16 %v2987, %v2983
      %v3080 = vpack.c.b16 %v2988, %v2984
      %v3081 = vpack.c.b16 %v2989, %v2985
      %v3082 = vpack.c.b16 %v2994, %v2990
      %v3083 = vpack.c.b16 %v2995, %v2991
      %v3084 = vpack.c.b16 %v2996, %v2992
      %v3085 = vpack.c.b16 %v2997, %v2993
      %v3086 = vpack.c.b16 %v3002, %v2998
      %v3087 = vpack.c.b16 %v3003, %v2999
      %v3088 = vpack.c.b16 %v3004, %v3000
      %v3089 = vpack.c.b16 %v3005, %v3001
      %v3090 = vpack.c.b16 %v3010, %v3006
      %v3091 = vpack.c.b16 %v3011, %v3007
      %v3092 = vpack.c.b16 %v3012, %v3008
      %v3093 = vpack.c.b16 %v3013, %v3009
      %v3094 = vpack.c.b16 %v3018, %v3014
      %v3095 = vpack.c.b16 %v3019, %v3015
      %v3096 = vpack.c.b16 %v3020, %v3016
      %v3097 = vpack.c.b16 %v3021, %v3017
      %v3098 = vpack.c.b16 %v3026, %v3022
      %v3099 = vpack.c.b16 %v3027, %v3023
      %v3100 = vpack.c.b16 %v3028, %v3024
      %v3101 = vpack.c.b16 %v3029, %v3025
      %v3102 = vpack.c.b16 %v3034, %v3030
      %v3103 = vpack.c.b16 %v3035, %v3031
      %v3104 = vpack.c.b16 %v3036, %v3032
      %v3105 = vpack.c.b16 %v3037, %v3033
      %v3106 = vpack.c.b16 %v3042, %v3038
      %v3107 = vpack.c.b16 %v3043, %v3039
      %v3108 = vpack.c.b16 %v3044, %v3040
      %v3109 = vpack.c.b16 %v3045, %v3041
      %3174 = vmatprep.subr.bf16.mxu0 0
      %3175 = vmatpush1.bf16.msra.mxu0 %v2815
      %3176 = vmatprep.subr.bf16.mxu0 0
      %3177 = vmatpush1.bf16.msra.mxu0 %v2816
      %3178 = vmatprep.subr.bf16.mxu0 0
      %3179 = vmatpush1.bf16.msra.mxu0 %v2817
      %3180 = vmatprep.subr.bf16.mxu0 0
      %3181 = vmatpush1.bf16.msra.mxu0 %v2818
      %3182 = vmatprep.subr.bf16.mxu0 0
      %3183 = vmatpush1.bf16.msra.mxu0 %v2819
      %3184 = vmatprep.subr.bf16.mxu0 0
      %3185 = vmatpush1.bf16.msra.mxu0 %v2820
      %3186 = vmatprep.subr.bf16.mxu0 0
      %3187 = vmatpush1.bf16.msra.mxu0 %v2821
      %3188 = vmatprep.subr.bf16.mxu0 0
      %3189 = vmatpush1.bf16.msra.mxu0 %v2822
      %3190 = vmatprep.subr.bf16.mxu0 0
      %3191 = vmatpush1.bf16.msra.mxu0 %v2823
      %3192 = vmatprep.subr.bf16.mxu0 0
      %3193 = vmatpush1.bf16.msra.mxu0 %v2824
      %3194 = vmatprep.subr.bf16.mxu0 0
      %3195 = vmatpush1.bf16.msra.mxu0 %v2825
      %3196 = vmatprep.subr.bf16.mxu0 0
      %3197 = vmatpush1.bf16.msra.mxu0 %v2826
      %3198 = vmatprep.subr.bf16.mxu0 0
      %3199 = vmatpush1.bf16.msra.mxu0 %v2827
      %3200 = vmatprep.subr.bf16.mxu0 0
      %3201 = vmatpush1.bf16.msra.mxu0 %v2828
      %3202 = vmatprep.subr.bf16.mxu0 0
      %3203 = vmatpush1.bf16.msra.mxu0 %v2829
      %3204 = vmatprep.subr.bf16.mxu0 0
      %3205 = vmatpush1.bf16.msra.mxu0 %v2830
      %3206 = vmatprep.mubr.bf16.mxu0 %v3047
      %3207 = vmatmul.mubr.bf16.gmra.mrb[0].mxu0 %v3046
      %v3208 = vpop.f32.mrb[0].mxu0
      %v3209 = vadd.f32 %v2852, %v3208
      %v3210 = vpop.f32.mrb[0].mxu0
      %v3211 = vpop.f32.mrb[0].mxu0
      %v3212 = vadd.f32 %v2852, %v3211
      %v3213 = vpop.f32.mrb[0].mxu0
      %3214 = vmatprep.mubr.bf16.mxu0 %v3051
      %3215 = vmatmul.mubr.bf16.gmra.mrb[0].mxu0 %v3050
      %v3216 = vpop.f32.mrb[0].mxu0
      %v3217 = vadd.f32 %v2852, %v3216
      %v3218 = vpop.f32.mrb[0].mxu0
      %v3219 = vpop.f32.mrb[0].mxu0
      %v3220 = vadd.f32 %v2852, %v3219
      %v3221 = vpop.f32.mrb[0].mxu0
      %3222 = vmatprep.mubr.bf16.mxu0 %v3055
      %3223 = vmatmul.mubr.bf16.gmra.mrb[0].mxu0 %v3054
      %v3224 = vpop.f32.mrb[0].mxu0
      %v3225 = vadd.f32 %v2852, %v3224
      %v3226 = vpop.f32.mrb[0].mxu0
      %v3227 = vpop.f32.mrb[0].mxu0
      %v3228 = vadd.f32 %v2852, %v3227
      %v3229 = vpop.f32.mrb[0].mxu0
      %3230 = vmatprep.mubr.bf16.mxu0 %v3059
      %3231 = vmatmul.mubr.bf16.gmra.mrb[0].mxu0 %v3058
      %v3232 = vpop.f32.mrb[0].mxu0
      %v3233 = vadd.f32 %v2852, %v3232
      %v3234 = vpop.f32.mrb[0].mxu0
      %v3235 = vpop.f32.mrb[0].mxu0
      %v3236 = vadd.f32 %v2852, %v3235
      %v3237 = vpop.f32.mrb[0].mxu0
      %3238 = vmatprep.mubr.bf16.mxu0 %v3063
      %3239 = vmatmul.mubr.bf16.gmra.mrb[0].mxu0 %v3062
      %v3240 = vpop.f32.mrb[0].mxu0
      %v3241 = vadd.f32 %v2852, %v3240
      %v3242 = vpop.f32.mrb[0].mxu0
      %v3243 = vpop.f32.mrb[0].mxu0
      %v3244 = vadd.f32 %v2852, %v3243
      %v3245 = vpop.f32.mrb[0].mxu0
      %3246 = vmatprep.mubr.bf16.mxu0 %v3067
      %3247 = vmatmul.mubr.bf16.gmra.mrb[0].mxu0 %v3066
      %v3248 = vpop.f32.mrb[0].mxu0
      %v3249 = vadd.f32 %v2852, %v3248
      %v3250 = vpop.f32.mrb[0].mxu0
      %v3251 = vpop.f32.mrb[0].mxu0
      %v3252 = vadd.f32 %v2852, %v3251
      %v3253 = vpop.f32.mrb[0].mxu0
      %3254 = vmatprep.mubr.bf16.mxu0 %v3071
      %3255 = vmatmul.mubr.bf16.gmra.mrb[0].mxu0 %v3070
      %v3256 = vpop.f32.mrb[0].mxu0
      %v3257 = vadd.f32 %v2852, %v3256
      %v3258 = vpop.f32.mrb[0].mxu0
      %v3259 = vpop.f32.mrb[0].mxu0
      %v3260 = vadd.f32 %v2852, %v3259
      %v3261 = vpop.f32.mrb[0].mxu0
      %3262 = vmatprep.mubr.bf16.mxu0 %v3075
      %3263 = vmatmul.mubr.bf16.gmra.mrb[0].mxu0 %v3074
      %v3264 = vpop.f32.mrb[0].mxu0
      %v3265 = vadd.f32 %v2852, %v3264
      %v3266 = vpop.f32.mrb[0].mxu0
      %v3267 = vpop.f32.mrb[0].mxu0
      %v3268 = vadd.f32 %v2852, %v3267
      %v3269 = vpop.f32.mrb[0].mxu0
      %3270 = vmatprep.mubr.bf16.mxu0 %v3079
      %3271 = vmatmul.mubr.bf16.gmra.mrb[0].mxu0 %v3078
      %v3272 = vpop.f32.mrb[0].mxu0
      %v3273 = vadd.f32 %v2852, %v3272
      %v3274 = vpop.f32.mrb[0].mxu0
      %v3275 = vpop.f32.mrb[0].mxu0
      %v3276 = vadd.f32 %v2852, %v3275
      %v3277 = vpop.f32.mrb[0].mxu0
      %3278 = vmatprep.mubr.bf16.mxu0 %v3083
      %3279 = vmatmul.mubr.bf16.gmra.mrb[0].mxu0 %v3082
      %v3280 = vpop.f32.mrb[0].mxu0
      %v3281 = vadd.f32 %v2852, %v3280
      %v3282 = vpop.f32.mrb[0].mxu0
      %v3283 = vpop.f32.mrb[0].mxu0
      %v3284 = vadd.f32 %v2852, %v3283
      %v3285 = vpop.f32.mrb[0].mxu0
      %3286 = vmatprep.mubr.bf16.mxu0 %v3087
      %3287 = vmatmul.mubr.bf16.gmra.mrb[0].mxu0 %v3086
      %v3288 = vpop.f32.mrb[0].mxu0
      %v3289 = vadd.f32 %v2852, %v3288
      %v3290 = vpop.f32.mrb[0].mxu0
      %v3291 = vpop.f32.mrb[0].mxu0
      %v3292 = vadd.f32 %v2852, %v3291
      %v3293 = vpop.f32.mrb[0].mxu0
      %3294 = vmatprep.mubr.bf16.mxu0 %v3091
      %3295 = vmatmul.mubr.bf16.gmra.mrb[0].mxu0 %v3090
      %v3296 = vpop.f32.mrb[0].mxu0
      %v3297 = vadd.f32 %v2852, %v3296
      %v3298 = vpop.f32.mrb[0].mxu0
      %v3299 = vpop.f32.mrb[0].mxu0
      %v3300 = vadd.f32 %v2852, %v3299
      %v3301 = vpop.f32.mrb[0].mxu0
      %3302 = vmatprep.mubr.bf16.mxu0 %v3095
      %3303 = vmatmul.mubr.bf16.gmra.mrb[0].mxu0 %v3094
      %v3304 = vpop.f32.mrb[0].mxu0
      %v3305 = vadd.f32 %v2852, %v3304
      %v3306 = vpop.f32.mrb[0].mxu0
      %v3307 = vpop.f32.mrb[0].mxu0
      %v3308 = vadd.f32 %v2852, %v3307
      %v3309 = vpop.f32.mrb[0].mxu0
      %3310 = vmatprep.mubr.bf16.mxu0 %v3099
      %3311 = vmatmul.mubr.bf16.gmra.mrb[0].mxu0 %v3098
      %v3312 = vpop.f32.mrb[0].mxu0
      %v3313 = vadd.f32 %v2852, %v3312
      %v3314 = vpop.f32.mrb[0].mxu0
      %v3315 = vpop.f32.mrb[0].mxu0
      %v3316 = vadd.f32 %v2852, %v3315
      %v3317 = vpop.f32.mrb[0].mxu0
      %3318 = vmatprep.mubr.bf16.mxu0 %v3103
      %3319 = vmatmul.mubr.bf16.gmra.mrb[0].mxu0 %v3102
      %v3320 = vpop.f32.mrb[0].mxu0
      %v3321 = vadd.f32 %v2852, %v3320
      %v3322 = vpop.f32.mrb[0].mxu0
      %v3323 = vpop.f32.mrb[0].mxu0
      %v3324 = vadd.f32 %v2852, %v3323
      %v3325 = vpop.f32.mrb[0].mxu0
      %3326 = vmatprep.mubr.bf16.mxu0 %v3107
      %3327 = vmatmul.mubr.bf16.gmra.mrb[0].mxu0 %v3106
      %v3328 = vpop.f32.mrb[0].mxu0
      %v3329 = vadd.f32 %v2852, %v3328
      %v3330 = vpop.f32.mrb[0].mxu0
      %v3331 = vpop.f32.mrb[0].mxu0
      %v3332 = vadd.f32 %v2852, %v3331
      %v3333 = vpop.f32.mrb[0].mxu0
      %3334 = vdwg.mxu0
      %3335 = vmatprep.subr.bf16.mxu0 0
      %3336 = vmatpush1.bf16.msra.mxu0 %v2831
      %3337 = vmatprep.subr.bf16.mxu0 0
      %3338 = vmatpush1.bf16.msra.mxu0 %v2832
      %3339 = vmatprep.subr.bf16.mxu0 0
      %3340 = vmatpush1.bf16.msra.mxu0 %v2833
      %3341 = vmatprep.subr.bf16.mxu0 0
      %3342 = vmatpush1.bf16.msra.mxu0 %v2834
      %3343 = vmatprep.subr.bf16.mxu0 0
      %3344 = vmatpush1.bf16.msra.mxu0 %v2835
      %3345 = vmatprep.subr.bf16.mxu0 0
      %3346 = vmatpush1.bf16.msra.mxu0 %v2836
      %3347 = vmatprep.subr.bf16.mxu0 0
      %3348 = vmatpush1.bf16.msra.mxu0 %v2837
      %3349 = vmatprep.subr.bf16.mxu0 0
      %3350 = vmatpush1.bf16.msra.mxu0 %v2838
      %3351 = vmatprep.subr.bf16.mxu0 0
      %3352 = vmatpush1.bf16.msra.mxu0 %v2839
      %3353 = vmatprep.subr.bf16.mxu0 0
      %3354 = vmatpush1.bf16.msra.mxu0 %v2840
      %3355 = vmatprep.subr.bf16.mxu0 0
      %3356 = vmatpush1.bf16.msra.mxu0 %v2841
      %3357 = vmatprep.subr.bf16.mxu0 0
      %3358 = vmatpush1.bf16.msra.mxu0 %v2842
      %3359 = vmatprep.subr.bf16.mxu0 0
      %3360 = vmatpush1.bf16.msra.mxu0 %v2843
      %3361 = vmatprep.subr.bf16.mxu0 0
      %3362 = vmatpush1.bf16.msra.mxu0 %v2844
      %3363 = vmatprep.subr.bf16.mxu0 0
      %3364 = vmatpush1.bf16.msra.mxu0 %v2845
      %3365 = vmatprep.subr.bf16.mxu0 0
      %3366 = vmatpush1.bf16.msra.mxu0 %v2846
      %3367 = vmatprep.mubr.bf16.mxu0 %v3049
      %3368 = vmatmul.mubr.bf16.gmra.mrb[0].mxu0 %v3048
      %v3369 = vpop.f32.mrb[0].mxu0
      %v3370 = vadd.f32 %v3209, %v3369
      %v3371 = vpop.f32.mrb[0].mxu0
      %v3372 = vpop.f32.mrb[0].mxu0
      %v3373 = vadd.f32 %v3212, %v3372
      %v3374 = vpop.f32.mrb[0].mxu0
      %3375 = vmatprep.mubr.bf16.mxu0 %v3053
      %3376 = vmatmul.mubr.bf16.gmra.mrb[0].mxu0 %v3052
      %v3377 = vpop.f32.mrb[0].mxu0
      %v3378 = vadd.f32 %v3217, %v3377
      %v3379 = vpop.f32.mrb[0].mxu0
      %v3380 = vpop.f32.mrb[0].mxu0
      %v3381 = vadd.f32 %v3220, %v3380
      %v3382 = vpop.f32.mrb[0].mxu0
      %3383 = vmatprep.mubr.bf16.mxu0 %v3057
      %3384 = vmatmul.mubr.bf16.gmra.mrb[0].mxu0 %v3056
      %v3385 = vpop.f32.mrb[0].mxu0
      %v3386 = vadd.f32 %v3225, %v3385
      %v3387 = vpop.f32.mrb[0].mxu0
      %v3388 = vpop.f32.mrb[0].mxu0
      %v3389 = vadd.f32 %v3228, %v3388
      %v3390 = vpop.f32.mrb[0].mxu0
      %3391 = vmatprep.mubr.bf16.mxu0 %v3061
      %3392 = vmatmul.mubr.bf16.gmra.mrb[0].mxu0 %v3060
      %v3393 = vpop.f32.mrb[0].mxu0
      %v3394 = vadd.f32 %v3233, %v3393
      %v3395 = vpop.f32.mrb[0].mxu0
      %v3396 = vpop.f32.mrb[0].mxu0
      %v3397 = vadd.f32 %v3236, %v3396
      %v3398 = vpop.f32.mrb[0].mxu0
      %3399 = vmatprep.mubr.bf16.mxu0 %v3065
      %3400 = vmatmul.mubr.bf16.gmra.mrb[0].mxu0 %v3064
      %v3401 = vpop.f32.mrb[0].mxu0
      %v3402 = vadd.f32 %v3241, %v3401
      %v3403 = vpop.f32.mrb[0].mxu0
      %v3404 = vpop.f32.mrb[0].mxu0
      %v3405 = vadd.f32 %v3244, %v3404
      %v3406 = vpop.f32.mrb[0].mxu0
      %3407 = vmatprep.mubr.bf16.mxu0 %v3069
      %3408 = vmatmul.mubr.bf16.gmra.mrb[0].mxu0 %v3068
      %v3409 = vpop.f32.mrb[0].mxu0
      %v3410 = vadd.f32 %v3249, %v3409
      %v3411 = vpop.f32.mrb[0].mxu0
      %v3412 = vpop.f32.mrb[0].mxu0
      %v3413 = vadd.f32 %v3252, %v3412
      %v3414 = vpop.f32.mrb[0].mxu0
      %3415 = vmatprep.mubr.bf16.mxu0 %v3073
      %3416 = vmatmul.mubr.bf16.gmra.mrb[0].mxu0 %v3072
      %v3417 = vpop.f32.mrb[0].mxu0
      %v3418 = vadd.f32 %v3257, %v3417
      %v3419 = vpop.f32.mrb[0].mxu0
      %v3420 = vpop.f32.mrb[0].mxu0
      %v3421 = vadd.f32 %v3260, %v3420
      %v3422 = vpop.f32.mrb[0].mxu0
      %3423 = vmatprep.mubr.bf16.mxu0 %v3077
      %3424 = vmatmul.mubr.bf16.gmra.mrb[0].mxu0 %v3076
      %v3425 = vpop.f32.mrb[0].mxu0
      %v3426 = vadd.f32 %v3265, %v3425
      %v3427 = vpop.f32.mrb[0].mxu0
      %v3428 = vpop.f32.mrb[0].mxu0
      %v3429 = vadd.f32 %v3268, %v3428
      %v3430 = vpop.f32.mrb[0].mxu0
      %3431 = vmatprep.mubr.bf16.mxu0 %v3081
      %3432 = vmatmul.mubr.bf16.gmra.mrb[0].mxu0 %v3080
      %v3433 = vpop.f32.mrb[0].mxu0
      %v3434 = vadd.f32 %v3273, %v3433
      %v3435 = vpop.f32.mrb[0].mxu0
      %v3436 = vpop.f32.mrb[0].mxu0
      %v3437 = vadd.f32 %v3276, %v3436
      %v3438 = vpop.f32.mrb[0].mxu0
      %3439 = vmatprep.mubr.bf16.mxu0 %v3085
      %3440 = vmatmul.mubr.bf16.gmra.mrb[0].mxu0 %v3084
      %v3441 = vpop.f32.mrb[0].mxu0
      %v3442 = vadd.f32 %v3281, %v3441
      %v3443 = vpop.f32.mrb[0].mxu0
      %v3444 = vpop.f32.mrb[0].mxu0
      %v3445 = vadd.f32 %v3284, %v3444
      %v3446 = vpop.f32.mrb[0].mxu0
      %3447 = vmatprep.mubr.bf16.mxu0 %v3089
      %3448 = vmatmul.mubr.bf16.gmra.mrb[0].mxu0 %v3088
      %v3449 = vpop.f32.mrb[0].mxu0
      %v3450 = vadd.f32 %v3289, %v3449
      %v3451 = vpop.f32.mrb[0].mxu0
      %v3452 = vpop.f32.mrb[0].mxu0
      %v3453 = vadd.f32 %v3292, %v3452
      %v3454 = vpop.f32.mrb[0].mxu0
      %3455 = vmatprep.mubr.bf16.mxu0 %v3093
      %3456 = vmatmul.mubr.bf16.gmra.mrb[0].mxu0 %v3092
      %v3457 = vpop.f32.mrb[0].mxu0
      %v3458 = vadd.f32 %v3297, %v3457
      %v3459 = vpop.f32.mrb[0].mxu0
      %v3460 = vpop.f32.mrb[0].mxu0
      %v3461 = vadd.f32 %v3300, %v3460
      %v3462 = vpop.f32.mrb[0].mxu0
      %3463 = vmatprep.mubr.bf16.mxu0 %v3097
      %3464 = vmatmul.mubr.bf16.gmra.mrb[0].mxu0 %v3096
      %v3465 = vpop.f32.mrb[0].mxu0
      %v3466 = vadd.f32 %v3305, %v3465
      %v3467 = vpop.f32.mrb[0].mxu0
      %v3468 = vpop.f32.mrb[0].mxu0
      %v3469 = vadd.f32 %v3308, %v3468
      %v3470 = vpop.f32.mrb[0].mxu0
      %3471 = vmatprep.mubr.bf16.mxu0 %v3101
      %3472 = vmatmul.mubr.bf16.gmra.mrb[0].mxu0 %v3100
      %v3473 = vpop.f32.mrb[0].mxu0
      %v3474 = vadd.f32 %v3313, %v3473
      %v3475 = vpop.f32.mrb[0].mxu0
      %v3476 = vpop.f32.mrb[0].mxu0
      %v3477 = vadd.f32 %v3316, %v3476
      %v3478 = vpop.f32.mrb[0].mxu0
      %3479 = vmatprep.mubr.bf16.mxu0 %v3105
      %3480 = vmatmul.mubr.bf16.gmra.mrb[0].mxu0 %v3104
      %v3481 = vpop.f32.mrb[0].mxu0
      %v3482 = vadd.f32 %v3321, %v3481
      %v3483 = vpop.f32.mrb[0].mxu0
      %v3484 = vpop.f32.mrb[0].mxu0
      %v3485 = vadd.f32 %v3324, %v3484
      %v3486 = vpop.f32.mrb[0].mxu0
      %3487 = vmatprep.mubr.bf16.mxu0 %v3109
      %3488 = vmatmul.mubr.bf16.gmra.mrb[0].mxu0 %v3108
      %v3489 = vpop.f32.mrb[0].mxu0
      %v3490 = vadd.f32 %v3329, %v3489
      %v3491 = vpop.f32.mrb[0].mxu0
      %v3492 = vpop.f32.mrb[0].mxu0
      %v3493 = vadd.f32 %v3332, %v3492
      %v3494 = vpop.f32.mrb[0].mxu0
      %3495 = vdwg.mxu0
      %v3496 = vlaneseq
      %v3497 = vand.u32 %v3496, 127
      %vm3498 = vcmp.lt.s32.totalorder %v3497, 8
      %v3499 = vsel %vm3498, %v3370, -inf
      %v3500 = vsel %vm3498, %v3373, -inf
      %v3501 = vsel %vm3498, %v3378, -inf
      %v3502 = vsel %vm3498, %v3381, -inf
      %v3503 = vsel %vm3498, %v3386, -inf
      %v3504 = vsel %vm3498, %v3389, -inf
      %v3505 = vsel %vm3498, %v3394, -inf
      %v3506 = vsel %vm3498, %v3397, -inf
      %v3507 = vsel %vm3498, %v3402, -inf
      %v3508 = vsel %vm3498, %v3405, -inf
      %v3509 = vsel %vm3498, %v3410, -inf
      %v3510 = vsel %vm3498, %v3413, -inf
      %v3511 = vsel %vm3498, %v3418, -inf
      %v3512 = vsel %vm3498, %v3421, -inf
      %v3513 = vsel %vm3498, %v3426, -inf
      %v3514 = vsel %vm3498, %v3429, -inf
      %v3515 = vsel %vm3498, %v3434, -inf
      %v3516 = vsel %vm3498, %v3437, -inf
      %v3517 = vsel %vm3498, %v3442, -inf
      %v3518 = vsel %vm3498, %v3445, -inf
      %v3519 = vsel %vm3498, %v3450, -inf
      %v3520 = vsel %vm3498, %v3453, -inf
      %v3521 = vsel %vm3498, %v3458, -inf
      %v3522 = vsel %vm3498, %v3461, -inf
      %v3523 = vsel %vm3498, %v3466, -inf
      %v3524 = vsel %vm3498, %v3469, -inf
      %v3525 = vsel %vm3498, %v3474, -inf
      %v3526 = vsel %vm3498, %v3477, -inf
      %v3527 = vsel %vm3498, %v3482, -inf
      %v3528 = vsel %vm3498, %v3485, -inf
      %v3529 = vsel %vm3498, %v3490, -inf
      %v3530 = vsel %vm3498, %v3493, -inf
      %3531 = vmax.xlane.f32.xlu0 %v3499
      %v3532 = vpop.xlane.xlu0 %3531
      %3533 = vmax.xlane.f32.xlu0 %v3500
      %v3534 = vpop.xlane.xlu0 %3533
      %3535 = vmax.xlane.f32.xlu0 %v3501
      %v3536 = vpop.xlane.xlu0 %3535
      %3537 = vmax.xlane.f32.xlu0 %v3502
      %v3538 = vpop.xlane.xlu0 %3537
      %3539 = vmax.xlane.f32.xlu0 %v3503
      %v3540 = vpop.xlane.xlu0 %3539
      %3541 = vmax.xlane.f32.xlu0 %v3504
      %v3542 = vpop.xlane.xlu0 %3541
      %3543 = vmax.xlane.f32.xlu0 %v3505
      %v3544 = vpop.xlane.xlu0 %3543
      %3545 = vmax.xlane.f32.xlu0 %v3506
      %v3546 = vpop.xlane.xlu0 %3545
      %3547 = vmax.xlane.f32.xlu0 %v3507
      %v3548 = vpop.xlane.xlu0 %3547
      %3549 = vmax.xlane.f32.xlu0 %v3508
      %v3550 = vpop.xlane.xlu0 %3549
      %3551 = vmax.xlane.f32.xlu0 %v3509
      %v3552 = vpop.xlane.xlu0 %3551
      %3553 = vmax.xlane.f32.xlu0 %v3510
      %v3554 = vpop.xlane.xlu0 %3553
      %3555 = vmax.xlane.f32.xlu0 %v3511
      %v3556 = vpop.xlane.xlu0 %3555
      %3557 = vmax.xlane.f32.xlu0 %v3512
      %v3558 = vpop.xlane.xlu0 %3557
      %3559 = vmax.xlane.f32.xlu0 %v3513
      %v3560 = vpop.xlane.xlu0 %3559
      %3561 = vmax.xlane.f32.xlu0 %v3514
      %v3562 = vpop.xlane.xlu0 %3561
      %3563 = vmax.xlane.f32.xlu0 %v3515
      %v3564 = vpop.xlane.xlu0 %3563
      %3565 = vmax.xlane.f32.xlu0 %v3516
      %v3566 = vpop.xlane.xlu0 %3565
      %3567 = vmax.xlane.f32.xlu0 %v3517
      %v3568 = vpop.xlane.xlu0 %3567
      %3569 = vmax.xlane.f32.xlu0 %v3518
      %v3570 = vpop.xlane.xlu0 %3569
      %3571 = vmax.xlane.f32.xlu0 %v3519
      %v3572 = vpop.xlane.xlu0 %3571
      %3573 = vmax.xlane.f32.xlu0 %v3520
      %v3574 = vpop.xlane.xlu0 %3573
      %3575 = vmax.xlane.f32.xlu0 %v3521
      %v3576 = vpop.xlane.xlu0 %3575
      %3577 = vmax.xlane.f32.xlu0 %v3522
      %v3578 = vpop.xlane.xlu0 %3577
      %3579 = vmax.xlane.f32.xlu0 %v3523
      %v3580 = vpop.xlane.xlu0 %3579
      %3581 = vmax.xlane.f32.xlu0 %v3524
      %v3582 = vpop.xlane.xlu0 %3581
      %3583 = vmax.xlane.f32.xlu0 %v3525
      %v3584 = vpop.xlane.xlu0 %3583
      %3585 = vmax.xlane.f32.xlu0 %v3526
      %v3586 = vpop.xlane.xlu0 %3585
      %3587 = vmax.xlane.f32.xlu0 %v3527
      %v3588 = vpop.xlane.xlu0 %3587
      %3589 = vmax.xlane.f32.xlu0 %v3528
      %v3590 = vpop.xlane.xlu0 %3589
      %3591 = vmax.xlane.f32.xlu0 %v3529
      %v3592 = vpop.xlane.xlu0 %3591
      %3593 = vmax.xlane.f32.xlu0 %v3530
      %v3594 = vpop.xlane.xlu0 %3593
      %v3595 = vsub.f32 %v3499, %v3532
      %v3596 = vsub.f32 %v3500, %v3534
      %v3597 = vsub.f32 %v3501, %v3536
      %v3598 = vsub.f32 %v3502, %v3538
      %v3599 = vsub.f32 %v3503, %v3540
      %v3600 = vsub.f32 %v3504, %v3542
      %v3601 = vsub.f32 %v3505, %v3544
      %v3602 = vsub.f32 %v3506, %v3546
      %v3603 = vsub.f32 %v3507, %v3548
      %v3604 = vsub.f32 %v3508, %v3550
      %v3605 = vsub.f32 %v3509, %v3552
      %v3606 = vsub.f32 %v3510, %v3554
      %v3607 = vsub.f32 %v3511, %v3556
      %v3608 = vsub.f32 %v3512, %v3558
      %v3609 = vsub.f32 %v3513, %v3560
      %v3610 = vsub.f32 %v3514, %v3562
      %v3611 = vsub.f32 %v3515, %v3564
      %v3612 = vsub.f32 %v3516, %v3566
      %v3613 = vsub.f32 %v3517, %v3568
      %v3614 = vsub.f32 %v3518, %v3570
      %v3615 = vsub.f32 %v3519, %v3572
      %v3616 = vsub.f32 %v3520, %v3574
      %v3617 = vsub.f32 %v3521, %v3576
      %v3618 = vsub.f32 %v3522, %v3578
      %v3619 = vsub.f32 %v3523, %v3580
      %v3620 = vsub.f32 %v3524, %v3582
      %v3621 = vsub.f32 %v3525, %v3584
      %v3622 = vsub.f32 %v3526, %v3586
      %v3623 = vsub.f32 %v3527, %v3588
      %v3624 = vsub.f32 %v3528, %v3590
      %v3625 = vsub.f32 %v3529, %v3592
      %v3626 = vsub.f32 %v3530, %v3594
      %v3627 = vmul.f32 %v3595, 1.442695
      %v3628 = vpow.pop %v3627
      %v3629 = vmul.f32 %v3596, 1.442695
      %v3630 = vpow.pop %v3629
      %v3631 = vmul.f32 %v3597, 1.442695
      %v3632 = vpow.pop %v3631
      %v3633 = vmul.f32 %v3598, 1.442695
      %v3634 = vpow.pop %v3633
      %v3635 = vmul.f32 %v3599, 1.442695
      %v3636 = vpow.pop %v3635
      %v3637 = vmul.f32 %v3600, 1.442695
      %v3638 = vpow.pop %v3637
      %v3639 = vmul.f32 %v3601, 1.442695
      %v3640 = vpow.pop %v3639
      %v3641 = vmul.f32 %v3602, 1.442695
      %v3642 = vpow.pop %v3641
      %v3643 = vmul.f32 %v3603, 1.442695
      %v3644 = vpow.pop %v3643
      %v3645 = vmul.f32 %v3604, 1.442695
      %v3646 = vpow.pop %v3645
      %v3647 = vmul.f32 %v3605, 1.442695
      %v3648 = vpow.pop %v3647
      %v3649 = vmul.f32 %v3606, 1.442695
      %v3650 = vpow.pop %v3649
      %v3651 = vmul.f32 %v3607, 1.442695
      %v3652 = vpow.pop %v3651
      %v3653 = vmul.f32 %v3608, 1.442695
      %v3654 = vpow.pop %v3653
      %v3655 = vmul.f32 %v3609, 1.442695
      %v3656 = vpow.pop %v3655
      %v3657 = vmul.f32 %v3610, 1.442695
      %v3658 = vpow.pop %v3657
      %v3659 = vmul.f32 %v3611, 1.442695
      %v3660 = vpow.pop %v3659
      %v3661 = vmul.f32 %v3612, 1.442695
      %v3662 = vpow.pop %v3661
      %v3663 = vmul.f32 %v3613, 1.442695
      %v3664 = vpow.pop %v3663
      %v3665 = vmul.f32 %v3614, 1.442695
      %v3666 = vpow.pop %v3665
      %v3667 = vmul.f32 %v3615, 1.442695
      %v3668 = vpow.pop %v3667
      %v3669 = vmul.f32 %v3616, 1.442695
      %v3670 = vpow.pop %v3669
      %v3671 = vmul.f32 %v3617, 1.442695
      %v3672 = vpow.pop %v3671
      %v3673 = vmul.f32 %v3618, 1.442695
      %v3674 = vpow.pop %v3673
      %v3675 = vmul.f32 %v3619, 1.442695
      %v3676 = vpow.pop %v3675
      %v3677 = vmul.f32 %v3620, 1.442695
      %v3678 = vpow.pop %v3677
      %v3679 = vmul.f32 %v3621, 1.442695
      %v3680 = vpow.pop %v3679
      %v3681 = vmul.f32 %v3622, 1.442695
      %v3682 = vpow.pop %v3681
      %v3683 = vmul.f32 %v3623, 1.442695
      %v3684 = vpow.pop %v3683
      %v3685 = vmul.f32 %v3624, 1.442695
      %v3686 = vpow.pop %v3685
      %v3687 = vmul.f32 %v3625, 1.442695
      %v3688 = vpow.pop %v3687
      %v3689 = vmul.f32 %v3626, 1.442695
      %v3690 = vpow.pop %v3689
      %3691 = vadd.xlane.f32.xlu0 %v3628
      %v3692 = vpop.xlane.xlu0 %3691
      %3693 = vadd.xlane.f32.xlu0 %v3630
      %v3694 = vpop.xlane.xlu0 %3693
      %3695 = vadd.xlane.f32.xlu0 %v3632
      %v3696 = vpop.xlane.xlu0 %3695
      %3697 = vadd.xlane.f32.xlu0 %v3634
      %v3698 = vpop.xlane.xlu0 %3697
      %3699 = vadd.xlane.f32.xlu0 %v3636
      %v3700 = vpop.xlane.xlu0 %3699
      %3701 = vadd.xlane.f32.xlu0 %v3638
      %v3702 = vpop.xlane.xlu0 %3701
      %3703 = vadd.xlane.f32.xlu0 %v3640
      %v3704 = vpop.xlane.xlu0 %3703
      %3705 = vadd.xlane.f32.xlu0 %v3642
      %v3706 = vpop.xlane.xlu0 %3705
      %3707 = vadd.xlane.f32.xlu0 %v3644
      %v3708 = vpop.xlane.xlu0 %3707
      %3709 = vadd.xlane.f32.xlu0 %v3646
      %v3710 = vpop.xlane.xlu0 %3709
      %3711 = vadd.xlane.f32.xlu0 %v3648
      %v3712 = vpop.xlane.xlu0 %3711
      %3713 = vadd.xlane.f32.xlu0 %v3650
      %v3714 = vpop.xlane.xlu0 %3713
      %3715 = vadd.xlane.f32.xlu0 %v3652
      %v3716 = vpop.xlane.xlu0 %3715
      %3717 = vadd.xlane.f32.xlu0 %v3654
      %v3718 = vpop.xlane.xlu0 %3717
      %3719 = vadd.xlane.f32.xlu0 %v3656
      %v3720 = vpop.xlane.xlu0 %3719
      %3721 = vadd.xlane.f32.xlu0 %v3658
      %v3722 = vpop.xlane.xlu0 %3721
      %3723 = vadd.xlane.f32.xlu0 %v3660
      %v3724 = vpop.xlane.xlu0 %3723
      %3725 = vadd.xlane.f32.xlu0 %v3662
      %v3726 = vpop.xlane.xlu0 %3725
      %3727 = vadd.xlane.f32.xlu0 %v3664
      %v3728 = vpop.xlane.xlu0 %3727
      %3729 = vadd.xlane.f32.xlu0 %v3666
      %v3730 = vpop.xlane.xlu0 %3729
      %3731 = vadd.xlane.f32.xlu0 %v3668
      %v3732 = vpop.xlane.xlu0 %3731
      %3733 = vadd.xlane.f32.xlu0 %v3670
      %v3734 = vpop.xlane.xlu0 %3733
      %3735 = vadd.xlane.f32.xlu0 %v3672
      %v3736 = vpop.xlane.xlu0 %3735
      %3737 = vadd.xlane.f32.xlu0 %v3674
      %v3738 = vpop.xlane.xlu0 %3737
      %3739 = vadd.xlane.f32.xlu0 %v3676
      %v3740 = vpop.xlane.xlu0 %3739
      %3741 = vadd.xlane.f32.xlu0 %v3678
      %v3742 = vpop.xlane.xlu0 %3741
      %3743 = vadd.xlane.f32.xlu0 %v3680
      %v3744 = vpop.xlane.xlu0 %3743
      %3745 = vadd.xlane.f32.xlu0 %v3682
      %v3746 = vpop.xlane.xlu0 %3745
      %3747 = vadd.xlane.f32.xlu0 %v3684
      %v3748 = vpop.xlane.xlu0 %3747
      %3749 = vadd.xlane.f32.xlu0 %v3686
      %v3750 = vpop.xlane.xlu0 %3749
      %3751 = vadd.xlane.f32.xlu0 %v3688
      %v3752 = vpop.xlane.xlu0 %3751
      %3753 = vadd.xlane.f32.xlu0 %v3690
      %v3754 = vpop.xlane.xlu0 %3753
      %v3755 = vlog2.pop %v3692
      %v3756 = vmul.f32 %v3755, 0.6931472
      %v3757 = vlog2.pop %v3694
      %v3758 = vmul.f32 %v3757, 0.6931472
      %v3759 = vlog2.pop %v3696
      %v3760 = vmul.f32 %v3759, 0.6931472
      %v3761 = vlog2.pop %v3698
      %v3762 = vmul.f32 %v3761, 0.6931472
      %v3763 = vlog2.pop %v3700
      %v3764 = vmul.f32 %v3763, 0.6931472
      %v3765 = vlog2.pop %v3702
      %v3766 = vmul.f32 %v3765, 0.6931472
      %v3767 = vlog2.pop %v3704
      %v3768 = vmul.f32 %v3767, 0.6931472
      %v3769 = vlog2.pop %v3706
      %v3770 = vmul.f32 %v3769, 0.6931472
      %v3771 = vlog2.pop %v3708
      %v3772 = vmul.f32 %v3771, 0.6931472
      %v3773 = vlog2.pop %v3710
      %v3774 = vmul.f32 %v3773, 0.6931472
      %v3775 = vlog2.pop %v3712
      %v3776 = vmul.f32 %v3775, 0.6931472
      %v3777 = vlog2.pop %v3714
      %v3778 = vmul.f32 %v3777, 0.6931472
      %v3779 = vlog2.pop %v3716
      %v3780 = vmul.f32 %v3779, 0.6931472
      %v3781 = vlog2.pop %v3718
      %v3782 = vmul.f32 %v3781, 0.6931472
      %v3783 = vlog2.pop %v3720
      %v3784 = vmul.f32 %v3783, 0.6931472
      %v3785 = vlog2.pop %v3722
      %v3786 = vmul.f32 %v3785, 0.6931472
      %v3787 = vlog2.pop %v3724
      %v3788 = vmul.f32 %v3787, 0.6931472
      %v3789 = vlog2.pop %v3726
      %v3790 = vmul.f32 %v3789, 0.6931472
      %v3791 = vlog2.pop %v3728
      %v3792 = vmul.f32 %v3791, 0.6931472
      %v3793 = vlog2.pop %v3730
      %v3794 = vmul.f32 %v3793, 0.6931472
      %v3795 = vlog2.pop %v3732
      %v3796 = vmul.f32 %v3795, 0.6931472
      %v3797 = vlog2.pop %v3734
      %v3798 = vmul.f32 %v3797, 0.6931472
      %v3799 = vlog2.pop %v3736
      %v3800 = vmul.f32 %v3799, 0.6931472
      %v3801 = vlog2.pop %v3738
      %v3802 = vmul.f32 %v3801, 0.6931472
      %v3803 = vlog2.pop %v3740
      %v3804 = vmul.f32 %v3803, 0.6931472
      %v3805 = vlog2.pop %v3742
      %v3806 = vmul.f32 %v3805, 0.6931472
      %v3807 = vlog2.pop %v3744
      %v3808 = vmul.f32 %v3807, 0.6931472
      %v3809 = vlog2.pop %v3746
      %v3810 = vmul.f32 %v3809, 0.6931472
      %v3811 = vlog2.pop %v3748
      %v3812 = vmul.f32 %v3811, 0.6931472
      %v3813 = vlog2.pop %v3750
      %v3814 = vmul.f32 %v3813, 0.6931472
      %v3815 = vlog2.pop %v3752
      %v3816 = vmul.f32 %v3815, 0.6931472
      %v3817 = vlog2.pop %v3754
      %v3818 = vmul.f32 %v3817, 0.6931472
      %v3819 = vsub.f32 %v3595, %v3756
      %v3820 = vsub.f32 %v3596, %v3758
      %v3821 = vsub.f32 %v3597, %v3760
      %v3822 = vsub.f32 %v3598, %v3762
      %v3823 = vsub.f32 %v3599, %v3764
      %v3824 = vsub.f32 %v3600, %v3766
      %v3825 = vsub.f32 %v3601, %v3768
      %v3826 = vsub.f32 %v3602, %v3770
      %v3827 = vsub.f32 %v3603, %v3772
      %v3828 = vsub.f32 %v3604, %v3774
      %v3829 = vsub.f32 %v3605, %v3776
      %v3830 = vsub.f32 %v3606, %v3778
      %v3831 = vsub.f32 %v3607, %v3780
      %v3832 = vsub.f32 %v3608, %v3782
      %v3833 = vsub.f32 %v3609, %v3784
      %v3834 = vsub.f32 %v3610, %v3786
      %v3835 = vsub.f32 %v3611, %v3788
      %v3836 = vsub.f32 %v3612, %v3790
      %v3837 = vsub.f32 %v3613, %v3792
      %v3838 = vsub.f32 %v3614, %v3794
      %v3839 = vsub.f32 %v3615, %v3796
      %v3840 = vsub.f32 %v3616, %v3798
      %v3841 = vsub.f32 %v3617, %v3800
      %v3842 = vsub.f32 %v3618, %v3802
      %v3843 = vsub.f32 %v3619, %v3804
      %v3844 = vsub.f32 %v3620, %v3806
      %v3845 = vsub.f32 %v3621, %v3808
      %v3846 = vsub.f32 %v3622, %v3810
      %v3847 = vsub.f32 %v3623, %v3812
      %v3848 = vsub.f32 %v3624, %v3814
      %v3849 = vsub.f32 %v3625, %v3816
      %v3850 = vsub.f32 %v3626, %v3818
      %3851 = vst [vmem:[%s231] sm:$0xff] %v3819
      %3852 = vst [vmem:[%s231 + $0x8] sm:$0xff] %v3820
      %3853 = vst [vmem:[%s231 + $0x10] sm:$0xff] %v3821
      %3854 = vst [vmem:[%s231 + $0x18] sm:$0xff] %v3822
      %3855 = vst [vmem:[%s231 + $0x20] sm:$0xff] %v3823
      %3856 = vst [vmem:[%s231 + $0x28] sm:$0xff] %v3824
      %3857 = vst [vmem:[%s231 + $0x30] sm:$0xff] %v3825
      %3858 = vst [vmem:[%s231 + $0x38] sm:$0xff] %v3826
      %3859 = vst [vmem:[%s231 + $0x40] sm:$0xff] %v3827
      %3860 = vst [vmem:[%s231 + $0x48] sm:$0xff] %v3828
      %3861 = vst [vmem:[%s231 + $0x50] sm:$0xff] %v3829
      %3862 = vst [vmem:[%s231 + $0x58] sm:$0xff] %v3830
      %3863 = vst [vmem:[%s231 + $0x60] sm:$0xff] %v3831
      %3864 = vst [vmem:[%s231 + $0x68] sm:$0xff] %v3832
      %3865 = vst [vmem:[%s231 + $0x70] sm:$0xff] %v3833
      %3866 = vst [vmem:[%s231 + $0x78] sm:$0xff] %v3834
      %3867 = vst [vmem:[%s231 + $0x80] sm:$0xff] %v3835
      %3868 = vst [vmem:[%s231 + $0x88] sm:$0xff] %v3836
      %3869 = vst [vmem:[%s231 + $0x90] sm:$0xff] %v3837
      %3870 = vst [vmem:[%s231 + $0x98] sm:$0xff] %v3838
      %3871 = vst [vmem:[%s231 + $0xa0] sm:$0xff] %v3839
      %3872 = vst [vmem:[%s231 + $0xa8] sm:$0xff] %v3840
      %3873 = vst [vmem:[%s231 + $0xb0] sm:$0xff] %v3841
      %3874 = vst [vmem:[%s231 + $0xb8] sm:$0xff] %v3842
      %3875 = vst [vmem:[%s231 + $0xc0] sm:$0xff] %v3843
      %3876 = vst [vmem:[%s231 + $0xc8] sm:$0xff] %v3844
      %3877 = vst [vmem:[%s231 + $0xd0] sm:$0xff] %v3845
      %3878 = vst [vmem:[%s231 + $0xd8] sm:$0xff] %v3846
      %3879 = vst [vmem:[%s231 + $0xe0] sm:$0xff] %v3847
      %3880 = vst [vmem:[%s231 + $0xe8] sm:$0xff] %v3848
      %3881 = vst [vmem:[%s231 + $0xf0] sm:$0xff] %v3849
      %3882 = vst [vmem:[%s231 + $0xf8] sm:$0xff] %v3850
      %s3883 = smul.u32 32, %s17
      %p3884 = scmp.lt.s32.totalorder %s3883, 63
      %s3885 = scalar_select %p3884, %s3883, 63
      %s3886 = smul.addr %s3885, 8
      %s3887 = scalar_lea.vmem %s6, %s3886
      // Predicated region
      $region49: #{gcn_forward.1} parent=43 // pred_check
        %p3888 = pneg %p161
      $region50: #{gcn_forward.1} parent=43 // pred_check_branch
        %3890 = sbr.rel (%p3888) target = $region52
      $region51: #{gcn_forward.1} parent=43 // pred_region
        %s3891 = smul.u32 32, %s17
      $region52: #{gcn_forward.1} parent=43 // pred_fallthru
        _
    $region44: #{gcn_forward.1} parent=5 // pred_fallthru
      _
    %p3892 = scmp.le.s32.totalorder 2, %s12
    // Predicated region
    $region53: #{gcn_forward.1} parent=5 // pred_check
      %p3893 = pneg %p3892
    $region54: #{gcn_forward.1} parent=5 // pred_check_branch
      %3895 = sbr.rel (%p3893) target = $region56
    $region55: #{gcn_forward.1} parent=5 // pred_region
      %s3896 = ssub.s32 %s12, 2
      // Predicated region
      $region57: #{gcn_forward.1} parent=55 // pred_check
        %p3897 = pneg %p167
      $region58: #{gcn_forward.1} parent=55 // pred_check_branch
        %3899 = sbr.rel (%p3897) target = $region60
      $region59: #{gcn_forward.1} parent=55 // pred_region
        %s3900 = smul.u32 32, %s18
        %p3901 = scmp.lt.s32.totalorder %s3900, 63
        %s3902 = scalar_select %p3901, %s3900, 63
        %s3903 = smul.addr %s3902, 8
        %s3904 = scalar_lea.vmem %s6, %s3903
      $region60: #{gcn_forward.1} parent=55 // pred_fallthru
        _
    $region56: #{gcn_forward.1} parent=5 // pred_fallthru
      _
  $region6: #{gcn_forward.1} parent=0 // loop_footer
    %s16 = sadd.s32 1, %s12
  $region7: #{gcn_forward.1} parent=0 // loop_footer_branch
    %11 = sbr.rel target = $region3
  $region8: #{gcn_forward.1} parent=0 // loop_exit
    _

</llo_original>
